<compile_context>
chip_gen: v7x
topology: tpu7x:2x2x1
jax: 0.10.0
libtpu: 0.0.40
codegen_flags: <defaults>
</compile_context>

<pallas_src>
import math

import numpy as np
import jax
import jax.numpy as jnp
from jax.experimental import pallas as pl
from jax.experimental.pallas import tpu as pltpu


# ----------------------------------------------------------------------------
# Clebsch-Gordan parameter setup (deterministic, plain numpy glue)
# ----------------------------------------------------------------------------
def _cg_coeff(j1, m1, j2, m2, j3, m3):
    """Complex-basis Clebsch-Gordan coefficient <j1 m1 j2 m2 | j3 m3> (Racah formula)."""
    if m3 != m1 + m2:
        return 0.0
    if j3 < abs(j1 - j2) or j3 > j1 + j2:
        return 0.0
    if abs(m1) > j1 or abs(m2) > j2 or abs(m3) > j3:
        return 0.0
    f = math.factorial
    pre = math.sqrt((2 * j3 + 1) * f(j3 + j1 - j2) * f(j3 - j1 + j2)
                    * f(j1 + j2 - j3) / f(j1 + j2 + j3 + 1))
    pre *= math.sqrt(f(j3 + m3) * f(j3 - m3) * f(j1 - m1) * f(j1 + m1)
                     * f(j2 - m2) * f(j2 + m2))
    total = 0.0
    for k in range(0, j1 + j2 + j3 + 1):
        denoms = (k, j1 + j2 - j3 - k, j1 - m1 - k, j2 + m2 - k,
                  j3 - j2 + m1 + k, j3 - j1 - m2 + k)
        if min(denoms) < 0:
            continue
        d = 1
        for x in denoms:
            d *= f(x)
        total += (-1.0) ** k / d
    return pre * total


def precompute_clebsch(l_max, lambd_max):
    """clebsch[l1, l2, lambd, m1+l1, m2+l2] = <l1 m1 l2 m2 | lambd (m1+m2)>."""
    L = 2 * l_max + 1
    out = np.zeros((l_max + 1, l_max + 1, lambd_max + 1, L, L), dtype=np.float64)
    for l1 in range(l_max + 1):
        for l2 in range(l_max + 1):
            for lam in range(lambd_max + 1):
                for m1 in range(-l1, l1 + 1):
                    for m2 in range(-l2, l2 + 1):
                        out[l1, l2, lam, m1 + l1, m2 + l2] = _cg_coeff(
                            l1, m1, l2, m2, lam, m1 + m2)
    return out


def _real_to_complex(l):
    """A such that c = A @ r : complex SH coefficients from real SH coefficients."""
    U = np.zeros((2 * l + 1, 2 * l + 1), dtype=np.complex128)
    U[l, l] = 1.0
    for m in range(1, l + 1):
        U[l - m, l - m] = 1j / math.sqrt(2)
        U[l - m, l + m] = -1j * (-1) ** m / math.sqrt(2)
        U[l + m, l - m] = 1.0 / math.sqrt(2)
        U[l + m, l + m] = (-1) ** m / math.sqrt(2)
    return U.T


def get_real_clebsch_gordan(clebsch, l1, l2, lambd):
    """Real-basis CG transformation: list over mu of [(m1, m2, multiplier), ...]."""
    A1 = _real_to_complex(l1)
    A2 = _real_to_complex(l2)
    Alam_inv = np.conj(_real_to_complex(lambd)).T
    T = np.zeros((2 * lambd + 1, 2 * l1 + 1, 2 * l2 + 1), dtype=np.complex128)
    for m1 in range(-l1, l1 + 1):
        for m2 in range(-l2, l2 + 1):
            M = m1 + m2
            if abs(M) > lambd:
                continue
            c = clebsch[m1 + l1, m2 + l2]
            if c == 0.0:
                continue
            T += (c * Alam_inv[:, M + lambd][:, None, None]
                  * A1[m1 + l1, :][None, :, None]
                  * A2[m2 + l2, :][None, None, :])
    Treal = T.imag if np.max(np.abs(T.imag)) > np.max(np.abs(T.real)) else T.real
    result = [[] for _ in range(2 * lambd + 1)]
    for mu in range(2 * lambd + 1):
        for i1 in range(2 * l1 + 1):
            for i2 in range(2 * l2 + 1):
                v = Treal[mu, i1, i2]
                if abs(v) > 1e-10:
                    result[mu].append((i1, i2, float(v)))
    return result


# ----------------------------------------------------------------------------
# Fused Pallas forward: every (l1, l2, lambd) combiner in ONE pallas_call
# ----------------------------------------------------------------------------
_LANE = 128                 # batch lane tile (always full / 128-multiple -> unmasked stores)
_MAX_SUBLANE_BLOCK = 8      # batch sublane tile (8 * 128 = 1024 batch elems per grid step)


def clebsch_combine_fused(single_combiners, lambd_max, X1_initial, X2_initial):
    any_x = next(iter(X1_initial.values()))
    B = any_x.shape[0]

    # Batch tiling: lane dim always 128; sublane tile TBS must be a multiple of 8
    # or equal to the full NB extent ((8,128) BlockSpec rule).
    if B <= _MAX_SUBLANE_BLOCK * _LANE:
        B_pad = ((B + _LANE - 1) // _LANE) * _LANE
        NB = B_pad // _LANE
        TBS = NB                                # single (full-extent) batch block
    else:
        TB = _MAX_SUBLANE_BLOCK * _LANE
        B_pad = ((B + TB - 1) // TB) * TB
        NB = B_pad // _LANE
        TBS = _MAX_SUBLANE_BLOCK                # 1024-wide, double-buffered batch tiles
    grid = (NB // TBS,)

    def prep(x):
        # [B, n, 2l+1] -> (2l+1, n, NB, 128) with batch on the minor (lane) axis
        x = jnp.transpose(x, (2, 1, 0))                       # (M, n, B)
        if B_pad != B:
            x = jnp.pad(x, ((0, 0), (0, 0), (0, B_pad - B)))
        return x.reshape(x.shape[0], x.shape[1], NB, _LANE)

    inputs = []          # prepared arrays, in kernel-argument order
    input_pos = {}       # ("1"/"2", l_str) -> index into `inputs`
    input_shape = []     # (M, n) per input

    def get_pos(which, l_str):
        k = (which, l_str)
        if k not in input_pos:
            arr = X1_initial[l_str] if which == "1" else X2_initial[l_str]
            input_pos[k] = len(inputs)
            inputs.append(prep(arr))
            input_shape.append((arr.shape[2], arr.shape[1]))  # (2l+1, n_features)
        return input_pos[k]

    # Static plan: per-lambda slabs (feature offsets assigned in original combiner order,
    # so the fused output equals the original torch.cat ordering).
    lam_slabs = {lam: [] for lam in range(lambd_max + 1)}
    lam_feats = {lam: 0 for lam in range(lambd_max + 1)}
    for key, (lam, entries) in single_combiners.items():
        l1_s, l2_s, _ = key.split("_")
        if l1_s not in X1_initial or l2_s not in X2_initial:
            continue
        p1 = get_pos("1", l1_s)
        p2 = get_pos("2", l2_s)
        n1 = input_shape[p1][1]
        n2 = input_shape[p2][1]
        groups = {}                               # dedupe: one product per distinct (m1, m2)
        for (m1, m2, mu, mult) in entries:
            groups.setdefault((m1, m2), []).append((mu, float(mult)))
        lam_slabs[lam].append((lam_feats[lam], n1, n2, p1, p2,
                               tuple((mm, tuple(u)) for mm, u in groups.items())))
        lam_feats[lam] += n1 * n2

    active_lams = [lam for lam in range(lambd_max + 1) if lam_feats[lam] > 0]
    if not active_lams:
        return {}

    n_in = len(inputs)

    def kernel(*refs):
        in_refs = refs[:n_in]
        out_refs = refs[n_in:]
        row_cache = {}                            # (input_pos, m) -> loaded (n, TBS, 128)

        def rows(p, m):
            if (p, m) not in row_cache:
                row_cache[(p, m)] = in_refs[p][m]
            return row_cache[(p, m)]

        for o_idx, lam in enumerate(active_lams):
            mu_count = 2 * lam + 1
            o_ref = out_refs[o_idx]
            for (off, n1, n2, p1, p2, groups) in lam_slabs[lam]:
                accs = [None] * mu_count
                for (m1, m2), uses in groups:     # statically unrolled sparse real-CG
                    # one feature outer product per distinct (m1, m2); leading-dim broadcast
                    prod = rows(p1, m1)[:, None] * rows(p2, m2)[None, :]  # (n1,n2,TBS,128)
                    for (mu, mult) in uses:
                        c = jnp.float32(mult) * prod
                        accs[mu] = c if accs[mu] is None else accs[mu] + c
                for mu in range(mu_count):
                    if accs[mu] is None:
                        val = jnp.zeros((n1 * n2, TBS, _LANE), jnp.float32)
                    else:
                        # leading-dim collapse only: no sublane/lane relayout
                        val = accs[mu].reshape(n1 * n2, TBS, _LANE)
                    # one wide, lane-dense, unmasked store per (key, mu) slab
                    o_ref[mu, off:off + n1 * n2, :, :] = val

    in_specs = [pl.BlockSpec((M, n, TBS, _LANE), lambda t: (0, 0, t, 0))
                for (M, n) in input_shape]
    out_specs = [pl.BlockSpec((2 * lam + 1, lam_feats[lam], TBS, _LANE),
                              lambda t: (0, 0, t, 0))
                 for lam in active_lams]
    out_shape = [jax.ShapeDtypeStruct((2 * lam + 1, lam_feats[lam], NB, _LANE), jnp.float32)
                 for lam in active_lams]

    # VMEM sizing: per-TBS-row block footprint (f32), double-buffered by the pipeline.
    per_tbs_bytes = 4 * _LANE * (sum(M * n for (M, n) in input_shape)
                                 + sum((2 * lam + 1) * lam_feats[lam] for lam in active_lams))
    block_bytes = per_tbs_bytes * TBS
    vmem_limit = int(min(max(32 * 1024 * 1024, 4 * block_bytes), 64 * 1024 * 1024))

    outs = pl.pallas_call(
        kernel,
        grid=grid,
        in_specs=in_specs,
        out_specs=out_specs,
        out_shape=out_shape,
        compiler_params=pltpu.CompilerParams(
            dimension_semantics=("parallel",),    # batch tiles independent (v7x megacore)
            vmem_limit_bytes=vmem_limit),
    )(*inputs)
    if not isinstance(outs, (list, tuple)):
        outs = (outs,)

    result = {}
    for o_idx, lam in enumerate(active_lams):
        o = outs[o_idx]                                            # (mu, F, NB, 128)
        o = o.reshape(2 * lam + 1, lam_feats[lam], B_pad)[:, :, :B]
        result[str(lam)] = jnp.transpose(o, (2, 1, 0))             # [B, F, 2*lam+1]
    return result


# ----------------------------------------------------------------------------
# Module equivalent
# ----------------------------------------------------------------------------
class ClebschCombining:
    def __init__(self, clebsch, lambd_max):
        self.lambd_max = lambd_max
        self.single_combiners = {}   # key "l1_l2_lambd" -> (lambd, entries[(m1, m2, mu, mult)])
        for l1 in range(clebsch.shape[0]):
            for l2 in range(clebsch.shape[1]):
                for lambd in range(abs(l1 - l2), min(l1 + l2, lambd_max) + 1):
                    if lambd >= clebsch.shape[2]:
                        raise ValueError("insufficient lambda max in precomputed CG coefficients")
                    key = f"{l1}_{l2}_{lambd}"
                    cg_slice = clebsch[l1, l2, lambd, :2 * l1 + 1, :2 * l2 + 1]
                    transformation = get_real_clebsch_gordan(cg_slice, l1, l2, lambd)
                    if lambd == 0:
                        # PyTorch lambd==0 fast path: single multiplier * dot over m
                        # (mirrors the spec exactly, including its single-multiplier assumption)
                        mult0 = transformation[0][0][2]
                        entries = [(m, m, 0, float(mult0)) for m in range(2 * l1 + 1)]
                    else:
                        entries = [(m1, m2, mu, float(mult))
                                   for mu in range(2 * lambd + 1)
                                   for (m1, m2, mult) in transformation[mu]]
                    self.single_combiners[key] = (lambd, entries)

    def __call__(self, X1_initial, X2_initial):
        return clebsch_combine_fused(self.single_combiners, self.lambd_max,
                                     X1_initial, X2_initial)


# ----------------------------------------------------------------------------
# Pure-numpy reference (mirrors the PyTorch forward math) for validation
# ----------------------------------------------------------------------------
def reference_forward(model, X1_initial, X2_initial):
    X1 = {k: np.asarray(v, dtype=np.float64).transpose(2, 1, 0) for k, v in X1_initial.items()}
    X2 = {k: np.asarray(v, dtype=np.float64).transpose(2, 1, 0) for k, v in X2_initial.items()}
    lists = {str(l): [] for l in range(model.lambd_max + 1)}
    for key, (lambd, entries) in model.single_combiners.items():
        l1, l2, lam = key.split("_")
        if l1 in X1 and l2 in X2:
            x1, x2 = X1[l1], X2[l2]
            _, n1, B = x1.shape
            _, n2, _ = x2.shape
            out = np.zeros((2 * lambd + 1, n1, n2, B))
            for (m1, m2, mu, mult) in entries:
                out[mu] += mult * x1[m1][:, None, :] * x2[m2][None, :, :]
            lists[lam].append(out.reshape(2 * lambd + 1, n1 * n2, B))
    result = {}
    for key, vals in lists.items():
        if len(vals) > 0:
            result[key] = np.concatenate(vals, axis=1).transpose(2, 1, 0)
    return result


# ----------------------------------------------------------------------------
if __name__ == "__main__":
    L_MAX = 2
    LAMBD_MAX = 2
    BATCH = 4
    N_FEAT = {"0": 3, "1": 4, "2": 2}

    clebsch = precompute_clebsch(L_MAX, LAMBD_MAX)
    model = ClebschCombining(clebsch, LAMBD_MAX)

    key = jax.random.PRNGKey(0)
    X1, X2 = {}, {}
    for l in range(L_MAX + 1):
        key, k1, k2 = jax.random.split(key, 3)
        X1[str(l)] = jax.random.normal(k1, (BATCH, N_FEAT[str(l)], 2 * l + 1), dtype=jnp.float32)
        X2[str(l)] = jax.random.normal(k2, (BATCH, N_FEAT[str(l)], 2 * l + 1), dtype=jnp.float32)

    out = model(X1, X2)
    out = jax.block_until_ready(out)

    ref = reference_forward(model, X1, X2)
    assert set(out.keys()) == set(ref.keys())
    for k in ref:
        np.testing.assert_allclose(np.asarray(out[k]), ref[k], rtol=1e-4, atol=1e-5)

    print("KERNEL_OK")
</pallas_src>

<mosaic_0001>
module attributes {stable_mosaic.version = 11 : i64} {
  func.func @kernel(%arg0: i32, %arg1: memref<1x3x1x128xf32, #tpu.memory_space<vmem>>, %arg2: memref<1x3x1x128xf32, #tpu.memory_space<vmem>>, %arg3: memref<3x4x1x128xf32, #tpu.memory_space<vmem>>, %arg4: memref<5x2x1x128xf32, #tpu.memory_space<vmem>>, %arg5: memref<3x4x1x128xf32, #tpu.memory_space<vmem>>, %arg6: memref<5x2x1x128xf32, #tpu.memory_space<vmem>>, %arg7: memref<1x29x1x128xf32, #tpu.memory_space<vmem>>, %arg8: memref<3x60x1x128xf32, #tpu.memory_space<vmem>>, %arg9: memref<5x48x1x128xf32, #tpu.memory_space<vmem>>) attributes {dimension_semantics = [#tpu.dimension_semantics<parallel>], iteration_bounds = array<i64: 1>, scalar_prefetch = 0 : i64, scratch_operands = 0 : i64, tpu.core_type = #tpu.core_type<tc>, window_params = [{transform_indices = @transform_0, window_bounds = array<i64: 1, 3, 1, 128>}, {transform_indices = @transform_1, window_bounds = array<i64: 1, 3, 1, 128>}, {transform_indices = @transform_2, window_bounds = array<i64: 3, 4, 1, 128>}, {transform_indices = @transform_3, window_bounds = array<i64: 5, 2, 1, 128>}, {transform_indices = @transform_4, window_bounds = array<i64: 3, 4, 1, 128>}, {transform_indices = @transform_5, window_bounds = array<i64: 5, 2, 1, 128>}, {transform_indices = @transform_6, window_bounds = array<i64: 1, 29, 1, 128>}, {transform_indices = @transform_7, window_bounds = array<i64: 3, 60, 1, 128>}, {transform_indices = @transform_8, window_bounds = array<i64: 5, 48, 1, 128>}]} {
    %c0 = arith.constant 0 : index
    %c0_0 = arith.constant 0 : index
    %c0_1 = arith.constant 0 : index
    %c0_2 = arith.constant 0 : index
    %0 = vector.load %arg1[%c0, %c0_0, %c0_1, %c0_2] : memref<1x3x1x128xf32, #tpu.memory_space<vmem>>, vector<1x3x1x128xf32>
    %1 = vector.shape_cast %0 : vector<1x3x1x128xf32> to vector<3x1x128xf32>
    %2 = vector.shape_cast %1 : vector<3x1x128xf32> to vector<3x1x1x128xf32>
    %c0_3 = arith.constant 0 : index
    %c0_4 = arith.constant 0 : index
    %c0_5 = arith.constant 0 : index
    %c0_6 = arith.constant 0 : index
    %3 = vector.load %arg2[%c0_3, %c0_4, %c0_5, %c0_6] : memref<1x3x1x128xf32, #tpu.memory_space<vmem>>, vector<1x3x1x128xf32>
    %4 = vector.shape_cast %3 : vector<1x3x1x128xf32> to vector<3x1x128xf32>
    %5 = vector.shape_cast %4 : vector<3x1x128xf32> to vector<1x3x1x128xf32>
    %6 = vector.broadcast %2 : vector<3x1x1x128xf32> to vector<3x3x1x128xf32>
    %7 = vector.broadcast %5 : vector<1x3x1x128xf32> to vector<3x3x1x128xf32>
    %8 = arith.mulf %6, %7 : vector<3x3x1x128xf32>
    %cst = arith.constant 1.000000e+00 : f32
    %9 = vector.broadcast %cst : f32 to vector<3x3x1x128xf32>
    %10 = arith.mulf %9, %8 : vector<3x3x1x128xf32>
    %11 = vector.shape_cast %10 : vector<3x3x1x128xf32> to vector<9x1x128xf32>
    %c0_7 = arith.constant 0 : index
    %c0_8 = arith.constant 0 : index
    %c0_9 = arith.constant 0 : index
    %c0_10 = arith.constant 0 : index
    %12 = vector.load %arg7[%c0_7, %c0_8, %c0_9, %c0_10] : memref<1x29x1x128xf32, #tpu.memory_space<vmem>>, vector<1x9x1x128xf32>
    %13 = vector.shape_cast %12 : vector<1x9x1x128xf32> to vector<9x1x128xf32>
    %14 = vector.shape_cast %11 : vector<9x1x128xf32> to vector<1x9x1x128xf32>
    tpu.vector_store %arg7[%c0_7, %c0_8, %c0_9, %c0_10], %14 {strides = array<i32>} : memref<1x29x1x128xf32, #tpu.memory_space<vmem>>, vector<1x9x1x128xf32>,
    %c0_11 = arith.constant 0 : index
    %c0_12 = arith.constant 0 : index
    %c0_13 = arith.constant 0 : index
    %c0_14 = arith.constant 0 : index
    %15 = vector.load %arg5[%c0_11, %c0_12, %c0_13, %c0_14] : memref<3x4x1x128xf32, #tpu.memory_space<vmem>>, vector<1x4x1x128xf32>
    %16 = vector.shape_cast %15 : vector<1x4x1x128xf32> to vector<4x1x128xf32>
    %17 = vector.shape_cast %16 : vector<4x1x128xf32> to vector<4x1x1x128xf32>
    %c0_15 = arith.constant 0 : index
    %c0_16 = arith.constant 0 : index
    %c0_17 = arith.constant 0 : index
    %c0_18 = arith.constant 0 : index
    %18 = vector.load %arg3[%c0_15, %c0_16, %c0_17, %c0_18] : memref<3x4x1x128xf32, #tpu.memory_space<vmem>>, vector<1x4x1x128xf32>
    %19 = vector.shape_cast %18 : vector<1x4x1x128xf32> to vector<4x1x128xf32>
    %20 = vector.shape_cast %19 : vector<4x1x128xf32> to vector<1x4x1x128xf32>
    %21 = vector.broadcast %17 : vector<4x1x1x128xf32> to vector<4x4x1x128xf32>
    %22 = vector.broadcast %20 : vector<1x4x1x128xf32> to vector<4x4x1x128xf32>
    %23 = arith.mulf %21, %22 : vector<4x4x1x128xf32>
    %cst_19 = arith.constant -0.577350259 : f32
    %24 = vector.broadcast %cst_19 : f32 to vector<4x4x1x128xf32>
    %25 = arith.mulf %24, %23 : vector<4x4x1x128xf32>
    %c1 = arith.constant 1 : index
    %c0_20 = arith.constant 0 : index
    %c0_21 = arith.constant 0 : index
    %c0_22 = arith.constant 0 : index
    %26 = vector.load %arg5[%c1, %c0_20, %c0_21, %c0_22] : memref<3x4x1x128xf32, #tpu.memory_space<vmem>>, vector<1x4x1x128xf32>
    %27 = vector.shape_cast %26 : vector<1x4x1x128xf32> to vector<4x1x128xf32>
    %28 = vector.shape_cast %27 : vector<4x1x128xf32> to vector<4x1x1x128xf32>
    %c1_23 = arith.constant 1 : index
    %c0_24 = arith.constant 0 : index
    %c0_25 = arith.constant 0 : index
    %c0_26 = arith.constant 0 : index
    %29 = vector.load %arg3[%c1_23, %c0_24, %c0_25, %c0_26] : memref<3x4x1x128xf32, #tpu.memory_space<vmem>>, vector<1x4x1x128xf32>
    %30 = vector.shape_cast %29 : vector<1x4x1x128xf32> to vector<4x1x128xf32>
    %31 = vector.shape_cast %30 : vector<4x1x128xf32> to vector<1x4x1x128xf32>
    %32 = vector.broadcast %28 : vector<4x1x1x128xf32> to vector<4x4x1x128xf32>
    %33 = vector.broadcast %31 : vector<1x4x1x128xf32> to vector<4x4x1x128xf32>
    %34 = arith.mulf %32, %33 : vector<4x4x1x128xf32>
    %cst_27 = arith.constant -0.577350259 : f32
    %35 = vector.broadcast %cst_27 : f32 to vector<4x4x1x128xf32>
    %36 = arith.mulf %35, %34 : vector<4x4x1x128xf32>
    %37 = arith.addf %25, %36 : vector<4x4x1x128xf32>
    %c2 = arith.constant 2 : index
    %c0_28 = arith.constant 0 : index
    %c0_29 = arith.constant 0 : index
    %c0_30 = arith.constant 0 : index
    %38 = vector.load %arg5[%c2, %c0_28, %c0_29, %c0_30] : memref<3x4x1x128xf32, #tpu.memory_space<vmem>>, vector<1x4x1x128xf32>
    %39 = vector.shape_cast %38 : vector<1x4x1x128xf32> to vector<4x1x128xf32>
    %40 = vector.shape_cast %39 : vector<4x1x128xf32> to vector<4x1x1x128xf32>
    %c2_31 = arith.constant 2 : index
    %c0_32 = arith.constant 0 : index
    %c0_33 = arith.constant 0 : index
    %c0_34 = arith.constant 0 : index
    %41 = vector.load %arg3[%c2_31, %c0_32, %c0_33, %c0_34] : memref<3x4x1x128xf32, #tpu.memory_space<vmem>>, vector<1x4x1x128xf32>
    %42 = vector.shape_cast %41 : vector<1x4x1x128xf32> to vector<4x1x128xf32>
    %43 = vector.shape_cast %42 : vector<4x1x128xf32> to vector<1x4x1x128xf32>
    %44 = vector.broadcast %40 : vector<4x1x1x128xf32> to vector<4x4x1x128xf32>
    %45 = vector.broadcast %43 : vector<1x4x1x128xf32> to vector<4x4x1x128xf32>
    %46 = arith.mulf %44, %45 : vector<4x4x1x128xf32>
    %cst_35 = arith.constant -0.577350259 : f32
    %47 = vector.broadcast %cst_35 : f32 to vector<4x4x1x128xf32>
    %48 = arith.mulf %47, %46 : vector<4x4x1x128xf32>
    %49 = arith.addf %37, %48 : vector<4x4x1x128xf32>
    %50 = vector.shape_cast %49 : vector<4x4x1x128xf32> to vector<16x1x128xf32>
    %c0_36 = arith.constant 0 : index
    %c9 = arith.constant 9 : index
    %c0_37 = arith.constant 0 : index
    %c0_38 = arith.constant 0 : index
    %51 = vector.load %arg7[%c0_36, %c9, %c0_37, %c0_38] : memref<1x29x1x128xf32, #tpu.memory_space<vmem>>, vector<1x16x1x128xf32>
    %52 = vector.shape_cast %51 : vector<1x16x1x128xf32> to vector<16x1x128xf32>
    %53 = vector.shape_cast %50 : vector<16x1x128xf32> to vector<1x16x1x128xf32>
    tpu.vector_store %arg7[%c0_36, %c9, %c0_37, %c0_38], %53 {strides = array<i32>} : memref<1x29x1x128xf32, #tpu.memory_space<vmem>>, vector<1x16x1x128xf32>,
    %c0_39 = arith.constant 0 : index
    %c0_40 = arith.constant 0 : index
    %c0_41 = arith.constant 0 : index
    %c0_42 = arith.constant 0 : index
    %54 = vector.load %arg6[%c0_39, %c0_40, %c0_41, %c0_42] : memref<5x2x1x128xf32, #tpu.memory_space<vmem>>, vector<1x2x1x128xf32>
    %55 = vector.shape_cast %54 : vector<1x2x1x128xf32> to vector<2x1x128xf32>
    %56 = vector.shape_cast %55 : vector<2x1x128xf32> to vector<2x1x1x128xf32>
    %c0_43 = arith.constant 0 : index
    %c0_44 = arith.constant 0 : index
    %c0_45 = arith.constant 0 : index
    %c0_46 = arith.constant 0 : index
    %57 = vector.load %arg4[%c0_43, %c0_44, %c0_45, %c0_46] : memref<5x2x1x128xf32, #tpu.memory_space<vmem>>, vector<1x2x1x128xf32>
    %58 = vector.shape_cast %57 : vector<1x2x1x128xf32> to vector<2x1x128xf32>
    %59 = vector.shape_cast %58 : vector<2x1x128xf32> to vector<1x2x1x128xf32>
    %60 = vector.broadcast %56 : vector<2x1x1x128xf32> to vector<2x2x1x128xf32>
    %61 = vector.broadcast %59 : vector<1x2x1x128xf32> to vector<2x2x1x128xf32>
    %62 = arith.mulf %60, %61 : vector<2x2x1x128xf32>
    %cst_47 = arith.constant 0.44721359 : f32
    %63 = vector.broadcast %cst_47 : f32 to vector<2x2x1x128xf32>
    %64 = arith.mulf %63, %62 : vector<2x2x1x128xf32>
    %c1_48 = arith.constant 1 : index
    %c0_49 = arith.constant 0 : index
    %c0_50 = arith.constant 0 : index
    %c0_51 = arith.constant 0 : index
    %65 = vector.load %arg6[%c1_48, %c0_49, %c0_50, %c0_51] : memref<5x2x1x128xf32, #tpu.memory_space<vmem>>, vector<1x2x1x128xf32>
    %66 = vector.shape_cast %65 : vector<1x2x1x128xf32> to vector<2x1x128xf32>
    %67 = vector.shape_cast %66 : vector<2x1x128xf32> to vector<2x1x1x128xf32>
    %c1_52 = arith.constant 1 : index
    %c0_53 = arith.constant 0 : index
    %c0_54 = arith.constant 0 : index
    %c0_55 = arith.constant 0 : index
    %68 = vector.load %arg4[%c1_52, %c0_53, %c0_54, %c0_55] : memref<5x2x1x128xf32, #tpu.memory_space<vmem>>, vector<1x2x1x128xf32>
    %69 = vector.shape_cast %68 : vector<1x2x1x128xf32> to vector<2x1x128xf32>
    %70 = vector.shape_cast %69 : vector<2x1x128xf32> to vector<1x2x1x128xf32>
    %71 = vector.broadcast %67 : vector<2x1x1x128xf32> to vector<2x2x1x128xf32>
    %72 = vector.broadcast %70 : vector<1x2x1x128xf32> to vector<2x2x1x128xf32>
    %73 = arith.mulf %71, %72 : vector<2x2x1x128xf32>
    %cst_56 = arith.constant 0.44721359 : f32
    %74 = vector.broadcast %cst_56 : f32 to vector<2x2x1x128xf32>
    %75 = arith.mulf %74, %73 : vector<2x2x1x128xf32>
    %76 = arith.addf %64, %75 : vector<2x2x1x128xf32>
    %c2_57 = arith.constant 2 : index
    %c0_58 = arith.constant 0 : index
    %c0_59 = arith.constant 0 : index
    %c0_60 = arith.constant 0 : index
    %77 = vector.load %arg6[%c2_57, %c0_58, %c0_59, %c0_60] : memref<5x2x1x128xf32, #tpu.memory_space<vmem>>, vector<1x2x1x128xf32>
    %78 = vector.shape_cast %77 : vector<1x2x1x128xf32> to vector<2x1x128xf32>
    %79 = vector.shape_cast %78 : vector<2x1x128xf32> to vector<2x1x1x128xf32>
    %c2_61 = arith.constant 2 : index
    %c0_62 = arith.constant 0 : index
    %c0_63 = arith.constant 0 : index
    %c0_64 = arith.constant 0 : index
    %80 = vector.load %arg4[%c2_61, %c0_62, %c0_63, %c0_64] : memref<5x2x1x128xf32, #tpu.memory_space<vmem>>, vector<1x2x1x128xf32>
    %81 = vector.shape_cast %80 : vector<1x2x1x128xf32> to vector<2x1x128xf32>
    %82 = vector.shape_cast %81 : vector<2x1x128xf32> to vector<1x2x1x128xf32>
    %83 = vector.broadcast %79 : vector<2x1x1x128xf32> to vector<2x2x1x128xf32>
    %84 = vector.broadcast %82 : vector<1x2x1x128xf32> to vector<2x2x1x128xf32>
    %85 = arith.mulf %83, %84 : vector<2x2x1x128xf32>
    %cst_65 = arith.constant 0.44721359 : f32
    %86 = vector.broadcast %cst_65 : f32 to vector<2x2x1x128xf32>
    %87 = arith.mulf %86, %85 : vector<2x2x1x128xf32>
    %88 = arith.addf %76, %87 : vector<2x2x1x128xf32>
    %c3 = arith.constant 3 : index
    %c0_66 = arith.constant 0 : index
    %c0_67 = arith.constant 0 : index
    %c0_68 = arith.constant 0 : index
    %89 = vector.load %arg6[%c3, %c0_66, %c0_67, %c0_68] : memref<5x2x1x128xf32, #tpu.memory_space<vmem>>, vector<1x2x1x128xf32>
    %90 = vector.shape_cast %89 : vector<1x2x1x128xf32> to vector<2x1x128xf32>
    %91 = vector.shape_cast %90 : vector<2x1x128xf32> to vector<2x1x1x128xf32>
    %c3_69 = arith.constant 3 : index
    %c0_70 = arith.constant 0 : index
    %c0_71 = arith.constant 0 : index
    %c0_72 = arith.constant 0 : index
    %92 = vector.load %arg4[%c3_69, %c0_70, %c0_71, %c0_72] : memref<5x2x1x128xf32, #tpu.memory_space<vmem>>, vector<1x2x1x128xf32>
    %93 = vector.shape_cast %92 : vector<1x2x1x128xf32> to vector<2x1x128xf32>
    %94 = vector.shape_cast %93 : vector<2x1x128xf32> to vector<1x2x1x128xf32>
    %95 = vector.broadcast %91 : vector<2x1x1x128xf32> to vector<2x2x1x128xf32>
    %96 = vector.broadcast %94 : vector<1x2x1x128xf32> to vector<2x2x1x128xf32>
    %97 = arith.mulf %95, %96 : vector<2x2x1x128xf32>
    %cst_73 = arith.constant 0.44721359 : f32
    %98 = vector.broadcast %cst_73 : f32 to vector<2x2x1x128xf32>
    %99 = arith.mulf %98, %97 : vector<2x2x1x128xf32>
    %100 = arith.addf %88, %99 : vector<2x2x1x128xf32>
    %c4 = arith.constant 4 : index
    %c0_74 = arith.constant 0 : index
    %c0_75 = arith.constant 0 : index
    %c0_76 = arith.constant 0 : index
    %101 = vector.load %arg6[%c4, %c0_74, %c0_75, %c0_76] : memref<5x2x1x128xf32, #tpu.memory_space<vmem>>, vector<1x2x1x128xf32>
    %102 = vector.shape_cast %101 : vector<1x2x1x128xf32> to vector<2x1x128xf32>
    %103 = vector.shape_cast %102 : vector<2x1x128xf32> to vector<2x1x1x128xf32>
    %c4_77 = arith.constant 4 : index
    %c0_78 = arith.constant 0 : index
    %c0_79 = arith.constant 0 : index
    %c0_80 = arith.constant 0 : index
    %104 = vector.load %arg4[%c4_77, %c0_78, %c0_79, %c0_80] : memref<5x2x1x128xf32, #tpu.memory_space<vmem>>, vector<1x2x1x128xf32>
    %105 = vector.shape_cast %104 : vector<1x2x1x128xf32> to vector<2x1x128xf32>
    %106 = vector.shape_cast %105 : vector<2x1x128xf32> to vector<1x2x1x128xf32>
    %107 = vector.broadcast %103 : vector<2x1x1x128xf32> to vector<2x2x1x128xf32>
    %108 = vector.broadcast %106 : vector<1x2x1x128xf32> to vector<2x2x1x128xf32>
    %109 = arith.mulf %107, %108 : vector<2x2x1x128xf32>
    %cst_81 = arith.constant 0.44721359 : f32
    %110 = vector.broadcast %cst_81 : f32 to vector<2x2x1x128xf32>
    %111 = arith.mulf %110, %109 : vector<2x2x1x128xf32>
    %112 = arith.addf %100, %111 : vector<2x2x1x128xf32>
    %113 = vector.shape_cast %112 : vector<2x2x1x128xf32> to vector<4x1x128xf32>
    %c0_82 = arith.constant 0 : index
    %c25 = arith.constant 25 : index
    %c0_83 = arith.constant 0 : index
    %c0_84 = arith.constant 0 : index
    %114 = vector.load %arg7[%c0_82, %c25, %c0_83, %c0_84] : memref<1x29x1x128xf32, #tpu.memory_space<vmem>>, vector<1x4x1x128xf32>
    %115 = vector.shape_cast %114 : vector<1x4x1x128xf32> to vector<4x1x128xf32>
    %116 = vector.shape_cast %113 : vector<4x1x128xf32> to vector<1x4x1x128xf32>
    tpu.vector_store %arg7[%c0_82, %c25, %c0_83, %c0_84], %116 {strides = array<i32>} : memref<1x29x1x128xf32, #tpu.memory_space<vmem>>, vector<1x4x1x128xf32>,
    %117 = vector.shape_cast %1 : vector<3x1x128xf32> to vector<3x1x1x128xf32>
    %118 = vector.shape_cast %19 : vector<4x1x128xf32> to vector<1x4x1x128xf32>
    %119 = vector.broadcast %117 : vector<3x1x1x128xf32> to vector<3x4x1x128xf32>
    %120 = vector.broadcast %118 : vector<1x4x1x128xf32> to vector<3x4x1x128xf32>
    %121 = arith.mulf %119, %120 : vector<3x4x1x128xf32>
    %cst_85 = arith.constant 1.000000e+00 : f32
    %122 = vector.broadcast %cst_85 : f32 to vector<3x4x1x128xf32>
    %123 = arith.mulf %122, %121 : vector<3x4x1x128xf32>
    %124 = vector.shape_cast %1 : vector<3x1x128xf32> to vector<3x1x1x128xf32>
    %125 = vector.shape_cast %30 : vector<4x1x128xf32> to vector<1x4x1x128xf32>
    %126 = vector.broadcast %124 : vector<3x1x1x128xf32> to vector<3x4x1x128xf32>
    %127 = vector.broadcast %125 : vector<1x4x1x128xf32> to vector<3x4x1x128xf32>
    %128 = arith.mulf %126, %127 : vector<3x4x1x128xf32>
    %cst_86 = arith.constant 1.000000e+00 : f32
    %129 = vector.broadcast %cst_86 : f32 to vector<3x4x1x128xf32>
    %130 = arith.mulf %129, %128 : vector<3x4x1x128xf32>
    %131 = vector.shape_cast %1 : vector<3x1x128xf32> to vector<3x1x1x128xf32>
    %132 = vector.shape_cast %42 : vector<4x1x128xf32> to vector<1x4x1x128xf32>
    %133 = vector.broadcast %131 : vector<3x1x1x128xf32> to vector<3x4x1x128xf32>
    %134 = vector.broadcast %132 : vector<1x4x1x128xf32> to vector<3x4x1x128xf32>
    %135 = arith.mulf %133, %134 : vector<3x4x1x128xf32>
    %cst_87 = arith.constant 1.000000e+00 : f32
    %136 = vector.broadcast %cst_87 : f32 to vector<3x4x1x128xf32>
    %137 = arith.mulf %136, %135 : vector<3x4x1x128xf32>
    %138 = vector.shape_cast %123 : vector<3x4x1x128xf32> to vector<12x1x128xf32>
    %c0_88 = arith.constant 0 : index
    %c0_89 = arith.constant 0 : index
    %c0_90 = arith.constant 0 : index
    %c0_91 = arith.constant 0 : index
    %139 = vector.load %arg8[%c0_88, %c0_89, %c0_90, %c0_91] : memref<3x60x1x128xf32, #tpu.memory_space<vmem>>, vector<1x12x1x128xf32>
    %140 = vector.shape_cast %139 : vector<1x12x1x128xf32> to vector<12x1x128xf32>
    %141 = vector.shape_cast %138 : vector<12x1x128xf32> to vector<1x12x1x128xf32>
    tpu.vector_store %arg8[%c0_88, %c0_89, %c0_90, %c0_91], %141 {strides = array<i32>} : memref<3x60x1x128xf32, #tpu.memory_space<vmem>>, vector<1x12x1x128xf32>,
    %142 = vector.shape_cast %130 : vector<3x4x1x128xf32> to vector<12x1x128xf32>
    %c1_92 = arith.constant 1 : index
    %c0_93 = arith.constant 0 : index
    %c0_94 = arith.constant 0 : index
    %c0_95 = arith.constant 0 : index
    %143 = vector.load %arg8[%c1_92, %c0_93, %c0_94, %c0_95] : memref<3x60x1x128xf32, #tpu.memory_space<vmem>>, vector<1x12x1x128xf32>
    %144 = vector.shape_cast %143 : vector<1x12x1x128xf32> to vector<12x1x128xf32>
    %145 = vector.shape_cast %142 : vector<12x1x128xf32> to vector<1x12x1x128xf32>
    tpu.vector_store %arg8[%c1_92, %c0_93, %c0_94, %c0_95], %145 {strides = array<i32>} : memref<3x60x1x128xf32, #tpu.memory_space<vmem>>, vector<1x12x1x128xf32>,
    %146 = vector.shape_cast %137 : vector<3x4x1x128xf32> to vector<12x1x128xf32>
    %c2_96 = arith.constant 2 : index
    %c0_97 = arith.constant 0 : index
    %c0_98 = arith.constant 0 : index
    %c0_99 = arith.constant 0 : index
    %147 = vector.load %arg8[%c2_96, %c0_97, %c0_98, %c0_99] : memref<3x60x1x128xf32, #tpu.memory_space<vmem>>, vector<1x12x1x128xf32>
    %148 = vector.shape_cast %147 : vector<1x12x1x128xf32> to vector<12x1x128xf32>
    %149 = vector.shape_cast %146 : vector<12x1x128xf32> to vector<1x12x1x128xf32>
    tpu.vector_store %arg8[%c2_96, %c0_97, %c0_98, %c0_99], %149 {strides = array<i32>} : memref<3x60x1x128xf32, #tpu.memory_space<vmem>>, vector<1x12x1x128xf32>,
    %150 = vector.shape_cast %16 : vector<4x1x128xf32> to vector<4x1x1x128xf32>
    %151 = vector.shape_cast %4 : vector<3x1x128xf32> to vector<1x3x1x128xf32>
    %152 = vector.broadcast %150 : vector<4x1x1x128xf32> to vector<4x3x1x128xf32>
    %153 = vector.broadcast %151 : vector<1x3x1x128xf32> to vector<4x3x1x128xf32>
    %154 = arith.mulf %152, %153 : vector<4x3x1x128xf32>
    %cst_100 = arith.constant 1.000000e+00 : f32
    %155 = vector.broadcast %cst_100 : f32 to vector<4x3x1x128xf32>
    %156 = arith.mulf %155, %154 : vector<4x3x1x128xf32>
    %157 = vector.shape_cast %27 : vector<4x1x128xf32> to vector<4x1x1x128xf32>
    %158 = vector.shape_cast %4 : vector<3x1x128xf32> to vector<1x3x1x128xf32>
    %159 = vector.broadcast %157 : vector<4x1x1x128xf32> to vector<4x3x1x128xf32>
    %160 = vector.broadcast %158 : vector<1x3x1x128xf32> to vector<4x3x1x128xf32>
    %161 = arith.mulf %159, %160 : vector<4x3x1x128xf32>
    %cst_101 = arith.constant 1.000000e+00 : f32
    %162 = vector.broadcast %cst_101 : f32 to vector<4x3x1x128xf32>
    %163 = arith.mulf %162, %161 : vector<4x3x1x128xf32>
    %164 = vector.shape_cast %39 : vector<4x1x128xf32> to vector<4x1x1x128xf32>
    %165 = vector.shape_cast %4 : vector<3x1x128xf32> to vector<1x3x1x128xf32>
    %166 = vector.broadcast %164 : vector<4x1x1x128xf32> to vector<4x3x1x128xf32>
    %167 = vector.broadcast %165 : vector<1x3x1x128xf32> to vector<4x3x1x128xf32>
    %168 = arith.mulf %166, %167 : vector<4x3x1x128xf32>
    %cst_102 = arith.constant 1.000000e+00 : f32
    %169 = vector.broadcast %cst_102 : f32 to vector<4x3x1x128xf32>
    %170 = arith.mulf %169, %168 : vector<4x3x1x128xf32>
    %171 = vector.shape_cast %156 : vector<4x3x1x128xf32> to vector<12x1x128xf32>
    %c0_103 = arith.constant 0 : index
    %c12 = arith.constant 12 : index
    %c0_104 = arith.constant 0 : index
    %c0_105 = arith.constant 0 : index
    %172 = vector.load %arg8[%c0_103, %c12, %c0_104, %c0_105] : memref<3x60x1x128xf32, #tpu.memory_space<vmem>>, vector<1x12x1x128xf32>
    %173 = vector.shape_cast %172 : vector<1x12x1x128xf32> to vector<12x1x128xf32>
    %174 = vector.shape_cast %171 : vector<12x1x128xf32> to vector<1x12x1x128xf32>
    tpu.vector_store %arg8[%c0_103, %c12, %c0_104, %c0_105], %174 {strides = array<i32>} : memref<3x60x1x128xf32, #tpu.memory_space<vmem>>, vector<1x12x1x128xf32>,
    %175 = vector.shape_cast %163 : vector<4x3x1x128xf32> to vector<12x1x128xf32>
    %c1_106 = arith.constant 1 : index
    %c12_107 = arith.constant 12 : index
    %c0_108 = arith.constant 0 : index
    %c0_109 = arith.constant 0 : index
    %176 = vector.load %arg8[%c1_106, %c12_107, %c0_108, %c0_109] : memref<3x60x1x128xf32, #tpu.memory_space<vmem>>, vector<1x12x1x128xf32>
    %177 = vector.shape_cast %176 : vector<1x12x1x128xf32> to vector<12x1x128xf32>
    %178 = vector.shape_cast %175 : vector<12x1x128xf32> to vector<1x12x1x128xf32>
    tpu.vector_store %arg8[%c1_106, %c12_107, %c0_108, %c0_109], %178 {strides = array<i32>} : memref<3x60x1x128xf32, #tpu.memory_space<vmem>>, vector<1x12x1x128xf32>,
    %179 = vector.shape_cast %170 : vector<4x3x1x128xf32> to vector<12x1x128xf32>
    %c2_110 = arith.constant 2 : index
    %c12_111 = arith.constant 12 : index
    %c0_112 = arith.constant 0 : index
    %c0_113 = arith.constant 0 : index
    %180 = vector.load %arg8[%c2_110, %c12_111, %c0_112, %c0_113] : memref<3x60x1x128xf32, #tpu.memory_space<vmem>>, vector<1x12x1x128xf32>
    %181 = vector.shape_cast %180 : vector<1x12x1x128xf32> to vector<12x1x128xf32>
    %182 = vector.shape_cast %179 : vector<12x1x128xf32> to vector<1x12x1x128xf32>
    tpu.vector_store %arg8[%c2_110, %c12_111, %c0_112, %c0_113], %182 {strides = array<i32>} : memref<3x60x1x128xf32, #tpu.memory_space<vmem>>, vector<1x12x1x128xf32>,
    %183 = vector.shape_cast %27 : vector<4x1x128xf32> to vector<4x1x1x128xf32>
    %184 = vector.shape_cast %42 : vector<4x1x128xf32> to vector<1x4x1x128xf32>
    %185 = vector.broadcast %183 : vector<4x1x1x128xf32> to vector<4x4x1x128xf32>
    %186 = vector.broadcast %184 : vector<1x4x1x128xf32> to vector<4x4x1x128xf32>
    %187 = arith.mulf %185, %186 : vector<4x4x1x128xf32>
    %cst_114 = arith.constant -0.707106769 : f32
    %188 = vector.broadcast %cst_114 : f32 to vector<4x4x1x128xf32>
    %189 = arith.mulf %188, %187 : vector<4x4x1x128xf32>
    %190 = vector.shape_cast %39 : vector<4x1x128xf32> to vector<4x1x1x128xf32>
    %191 = vector.shape_cast %30 : vector<4x1x128xf32> to vector<1x4x1x128xf32>
    %192 = vector.broadcast %190 : vector<4x1x1x128xf32> to vector<4x4x1x128xf32>
    %193 = vector.broadcast %191 : vector<1x4x1x128xf32> to vector<4x4x1x128xf32>
    %194 = arith.mulf %192, %193 : vector<4x4x1x128xf32>
    %cst_115 = arith.constant 0.707106769 : f32
    %195 = vector.broadcast %cst_115 : f32 to vector<4x4x1x128xf32>
    %196 = arith.mulf %195, %194 : vector<4x4x1x128xf32>
    %197 = arith.addf %189, %196 : vector<4x4x1x128xf32>
    %198 = vector.shape_cast %16 : vector<4x1x128xf32> to vector<4x1x1x128xf32>
    %199 = vector.shape_cast %42 : vector<4x1x128xf32> to vector<1x4x1x128xf32>
    %200 = vector.broadcast %198 : vector<4x1x1x128xf32> to vector<4x4x1x128xf32>
    %201 = vector.broadcast %199 : vector<1x4x1x128xf32> to vector<4x4x1x128xf32>
    %202 = arith.mulf %200, %201 : vector<4x4x1x128xf32>
    %cst_116 = arith.constant 0.707106769 : f32
    %203 = vector.broadcast %cst_116 : f32 to vector<4x4x1x128xf32>
    %204 = arith.mulf %203, %202 : vector<4x4x1x128xf32>
    %205 = vector.shape_cast %39 : vector<4x1x128xf32> to vector<4x1x1x128xf32>
    %206 = vector.shape_cast %19 : vector<4x1x128xf32> to vector<1x4x1x128xf32>
    %207 = vector.broadcast %205 : vector<4x1x1x128xf32> to vector<4x4x1x128xf32>
    %208 = vector.broadcast %206 : vector<1x4x1x128xf32> to vector<4x4x1x128xf32>
    %209 = arith.mulf %207, %208 : vector<4x4x1x128xf32>
    %cst_117 = arith.constant -0.707106769 : f32
    %210 = vector.broadcast %cst_117 : f32 to vector<4x4x1x128xf32>
    %211 = arith.mulf %210, %209 : vector<4x4x1x128xf32>
    %212 = arith.addf %204, %211 : vector<4x4x1x128xf32>
    %213 = vector.shape_cast %16 : vector<4x1x128xf32> to vector<4x1x1x128xf32>
    %214 = vector.shape_cast %30 : vector<4x1x128xf32> to vector<1x4x1x128xf32>
    %215 = vector.broadcast %213 : vector<4x1x1x128xf32> to vector<4x4x1x128xf32>
    %216 = vector.broadcast %214 : vector<1x4x1x128xf32> to vector<4x4x1x128xf32>
    %217 = arith.mulf %215, %216 : vector<4x4x1x128xf32>
    %cst_118 = arith.constant -0.707106769 : f32
    %218 = vector.broadcast %cst_118 : f32 to vector<4x4x1x128xf32>
    %219 = arith.mulf %218, %217 : vector<4x4x1x128xf32>
    %220 = vector.shape_cast %27 : vector<4x1x128xf32> to vector<4x1x1x128xf32>
    %221 = vector.shape_cast %19 : vector<4x1x128xf32> to vector<1x4x1x128xf32>
    %222 = vector.broadcast %220 : vector<4x1x1x128xf32> to vector<4x4x1x128xf32>
    %223 = vector.broadcast %221 : vector<1x4x1x128xf32> to vector<4x4x1x128xf32>
    %224 = arith.mulf %222, %223 : vector<4x4x1x128xf32>
    %cst_119 = arith.constant 0.707106769 : f32
    %225 = vector.broadcast %cst_119 : f32 to vector<4x4x1x128xf32>
    %226 = arith.mulf %225, %224 : vector<4x4x1x128xf32>
    %227 = arith.addf %219, %226 : vector<4x4x1x128xf32>
    %228 = vector.shape_cast %197 : vector<4x4x1x128xf32> to vector<16x1x128xf32>
    %c0_120 = arith.constant 0 : index
    %c24 = arith.constant 24 : index
    %c0_121 = arith.constant 0 : index
    %c0_122 = arith.constant 0 : index
    %229 = vector.load %arg8[%c0_120, %c24, %c0_121, %c0_122] : memref<3x60x1x128xf32, #tpu.memory_space<vmem>>, vector<1x16x1x128xf32>
    %230 = vector.shape_cast %229 : vector<1x16x1x128xf32> to vector<16x1x128xf32>
    %231 = vector.shape_cast %228 : vector<16x1x128xf32> to vector<1x16x1x128xf32>
    tpu.vector_store %arg8[%c0_120, %c24, %c0_121, %c0_122], %231 {strides = array<i32>} : memref<3x60x1x128xf32, #tpu.memory_space<vmem>>, vector<1x16x1x128xf32>,
    %232 = vector.shape_cast %212 : vector<4x4x1x128xf32> to vector<16x1x128xf32>
    %c1_123 = arith.constant 1 : index
    %c24_124 = arith.constant 24 : index
    %c0_125 = arith.constant 0 : index
    %c0_126 = arith.constant 0 : index
    %233 = vector.load %arg8[%c1_123, %c24_124, %c0_125, %c0_126] : memref<3x60x1x128xf32, #tpu.memory_space<vmem>>, vector<1x16x1x128xf32>
    %234 = vector.shape_cast %233 : vector<1x16x1x128xf32> to vector<16x1x128xf32>
    %235 = vector.shape_cast %232 : vector<16x1x128xf32> to vector<1x16x1x128xf32>
    tpu.vector_store %arg8[%c1_123, %c24_124, %c0_125, %c0_126], %235 {strides = array<i32>} : memref<3x60x1x128xf32, #tpu.memory_space<vmem>>, vector<1x16x1x128xf32>,
    %236 = vector.shape_cast %227 : vector<4x4x1x128xf32> to vector<16x1x128xf32>
    %c2_127 = arith.constant 2 : index
    %c24_128 = arith.constant 24 : index
    %c0_129 = arith.constant 0 : index
    %c0_130 = arith.constant 0 : index
    %237 = vector.load %arg8[%c2_127, %c24_128, %c0_129, %c0_130] : memref<3x60x1x128xf32, #tpu.memory_space<vmem>>, vector<1x16x1x128xf32>
    %238 = vector.shape_cast %237 : vector<1x16x1x128xf32> to vector<16x1x128xf32>
    %239 = vector.shape_cast %236 : vector<16x1x128xf32> to vector<1x16x1x128xf32>
    tpu.vector_store %arg8[%c2_127, %c24_128, %c0_129, %c0_130], %239 {strides = array<i32>} : memref<3x60x1x128xf32, #tpu.memory_space<vmem>>, vector<1x16x1x128xf32>,
    %240 = vector.shape_cast %16 : vector<4x1x128xf32> to vector<4x1x1x128xf32>
    %241 = vector.shape_cast %81 : vector<2x1x128xf32> to vector<1x2x1x128xf32>
    %242 = vector.broadcast %240 : vector<4x1x1x128xf32> to vector<4x2x1x128xf32>
    %243 = vector.broadcast %241 : vector<1x2x1x128xf32> to vector<4x2x1x128xf32>
    %244 = arith.mulf %242, %243 : vector<4x2x1x128xf32>
    %cst_131 = arith.constant 0.316227764 : f32
    %245 = vector.broadcast %cst_131 : f32 to vector<4x2x1x128xf32>
    %246 = arith.mulf %245, %244 : vector<4x2x1x128xf32>
    %247 = vector.shape_cast %16 : vector<4x1x128xf32> to vector<4x1x1x128xf32>
    %248 = vector.shape_cast %105 : vector<2x1x128xf32> to vector<1x2x1x128xf32>
    %249 = vector.broadcast %247 : vector<4x1x1x128xf32> to vector<4x2x1x128xf32>
    %250 = vector.broadcast %248 : vector<1x2x1x128xf32> to vector<4x2x1x128xf32>
    %251 = arith.mulf %249, %250 : vector<4x2x1x128xf32>
    %cst_132 = arith.constant 0.547722578 : f32
    %252 = vector.broadcast %cst_132 : f32 to vector<4x2x1x128xf32>
    %253 = arith.mulf %252, %251 : vector<4x2x1x128xf32>
    %254 = arith.addf %246, %253 : vector<4x2x1x128xf32>
    %255 = vector.shape_cast %27 : vector<4x1x128xf32> to vector<4x1x1x128xf32>
    %256 = vector.shape_cast %69 : vector<2x1x128xf32> to vector<1x2x1x128xf32>
    %257 = vector.broadcast %255 : vector<4x1x1x128xf32> to vector<4x2x1x128xf32>
    %258 = vector.broadcast %256 : vector<1x2x1x128xf32> to vector<4x2x1x128xf32>
    %259 = arith.mulf %257, %258 : vector<4x2x1x128xf32>
    %cst_133 = arith.constant -0.547722578 : f32
    %260 = vector.broadcast %cst_133 : f32 to vector<4x2x1x128xf32>
    %261 = arith.mulf %260, %259 : vector<4x2x1x128xf32>
    %262 = arith.addf %254, %261 : vector<4x2x1x128xf32>
    %263 = vector.shape_cast %39 : vector<4x1x128xf32> to vector<4x1x1x128xf32>
    %264 = vector.shape_cast %58 : vector<2x1x128xf32> to vector<1x2x1x128xf32>
    %265 = vector.broadcast %263 : vector<4x1x1x128xf32> to vector<4x2x1x128xf32>
    %266 = vector.broadcast %264 : vector<1x2x1x128xf32> to vector<4x2x1x128xf32>
    %267 = arith.mulf %265, %266 : vector<4x2x1x128xf32>
    %cst_134 = arith.constant -0.547722578 : f32
    %268 = vector.broadcast %cst_134 : f32 to vector<4x2x1x128xf32>
    %269 = arith.mulf %268, %267 : vector<4x2x1x128xf32>
    %270 = arith.addf %262, %269 : vector<4x2x1x128xf32>
    %271 = vector.shape_cast %16 : vector<4x1x128xf32> to vector<4x1x1x128xf32>
    %272 = vector.shape_cast %69 : vector<2x1x128xf32> to vector<1x2x1x128xf32>
    %273 = vector.broadcast %271 : vector<4x1x1x128xf32> to vector<4x2x1x128xf32>
    %274 = vector.broadcast %272 : vector<1x2x1x128xf32> to vector<4x2x1x128xf32>
    %275 = arith.mulf %273, %274 : vector<4x2x1x128xf32>
    %cst_135 = arith.constant -0.547722578 : f32
    %276 = vector.broadcast %cst_135 : f32 to vector<4x2x1x128xf32>
    %277 = arith.mulf %276, %275 : vector<4x2x1x128xf32>
    %278 = vector.shape_cast %27 : vector<4x1x128xf32> to vector<4x1x1x128xf32>
    %279 = vector.shape_cast %81 : vector<2x1x128xf32> to vector<1x2x1x128xf32>
    %280 = vector.broadcast %278 : vector<4x1x1x128xf32> to vector<4x2x1x128xf32>
    %281 = vector.broadcast %279 : vector<1x2x1x128xf32> to vector<4x2x1x128xf32>
    %282 = arith.mulf %280, %281 : vector<4x2x1x128xf32>
    %cst_136 = arith.constant -0.632455527 : f32
    %283 = vector.broadcast %cst_136 : f32 to vector<4x2x1x128xf32>
    %284 = arith.mulf %283, %282 : vector<4x2x1x128xf32>
    %285 = arith.addf %277, %284 : vector<4x2x1x128xf32>
    %286 = vector.shape_cast %39 : vector<4x1x128xf32> to vector<4x1x1x128xf32>
    %287 = vector.shape_cast %93 : vector<2x1x128xf32> to vector<1x2x1x128xf32>
    %288 = vector.broadcast %286 : vector<4x1x1x128xf32> to vector<4x2x1x128xf32>
    %289 = vector.broadcast %287 : vector<1x2x1x128xf32> to vector<4x2x1x128xf32>
    %290 = arith.mulf %288, %289 : vector<4x2x1x128xf32>
    %cst_137 = arith.constant -0.547722578 : f32
    %291 = vector.broadcast %cst_137 : f32 to vector<4x2x1x128xf32>
    %292 = arith.mulf %291, %290 : vector<4x2x1x128xf32>
    %293 = arith.addf %285, %292 : vector<4x2x1x128xf32>
    %294 = vector.shape_cast %16 : vector<4x1x128xf32> to vector<4x1x1x128xf32>
    %295 = vector.shape_cast %58 : vector<2x1x128xf32> to vector<1x2x1x128xf32>
    %296 = vector.broadcast %294 : vector<4x1x1x128xf32> to vector<4x2x1x128xf32>
    %297 = vector.broadcast %295 : vector<1x2x1x128xf32> to vector<4x2x1x128xf32>
    %298 = arith.mulf %296, %297 : vector<4x2x1x128xf32>
    %cst_138 = arith.constant -0.547722578 : f32
    %299 = vector.broadcast %cst_138 : f32 to vector<4x2x1x128xf32>
    %300 = arith.mulf %299, %298 : vector<4x2x1x128xf32>
    %301 = vector.shape_cast %27 : vector<4x1x128xf32> to vector<4x1x1x128xf32>
    %302 = vector.shape_cast %93 : vector<2x1x128xf32> to vector<1x2x1x128xf32>
    %303 = vector.broadcast %301 : vector<4x1x1x128xf32> to vector<4x2x1x128xf32>
    %304 = vector.broadcast %302 : vector<1x2x1x128xf32> to vector<4x2x1x128xf32>
    %305 = arith.mulf %303, %304 : vector<4x2x1x128xf32>
    %cst_139 = arith.constant -0.547722578 : f32
    %306 = vector.broadcast %cst_139 : f32 to vector<4x2x1x128xf32>
    %307 = arith.mulf %306, %305 : vector<4x2x1x128xf32>
    %308 = arith.addf %300, %307 : vector<4x2x1x128xf32>
    %309 = vector.shape_cast %39 : vector<4x1x128xf32> to vector<4x1x1x128xf32>
    %310 = vector.shape_cast %81 : vector<2x1x128xf32> to vector<1x2x1x128xf32>
    %311 = vector.broadcast %309 : vector<4x1x1x128xf32> to vector<4x2x1x128xf32>
    %312 = vector.broadcast %310 : vector<1x2x1x128xf32> to vector<4x2x1x128xf32>
    %313 = arith.mulf %311, %312 : vector<4x2x1x128xf32>
    %cst_140 = arith.constant 0.316227764 : f32
    %314 = vector.broadcast %cst_140 : f32 to vector<4x2x1x128xf32>
    %315 = arith.mulf %314, %313 : vector<4x2x1x128xf32>
    %316 = arith.addf %308, %315 : vector<4x2x1x128xf32>
    %317 = vector.shape_cast %39 : vector<4x1x128xf32> to vector<4x1x1x128xf32>
    %318 = vector.shape_cast %105 : vector<2x1x128xf32> to vector<1x2x1x128xf32>
    %319 = vector.broadcast %317 : vector<4x1x1x128xf32> to vector<4x2x1x128xf32>
    %320 = vector.broadcast %318 : vector<1x2x1x128xf32> to vector<4x2x1x128xf32>
    %321 = arith.mulf %319, %320 : vector<4x2x1x128xf32>
    %cst_141 = arith.constant -0.547722578 : f32
    %322 = vector.broadcast %cst_141 : f32 to vector<4x2x1x128xf32>
    %323 = arith.mulf %322, %321 : vector<4x2x1x128xf32>
    %324 = arith.addf %316, %323 : vector<4x2x1x128xf32>
    %325 = vector.shape_cast %270 : vector<4x2x1x128xf32> to vector<8x1x128xf32>
    %c0_142 = arith.constant 0 : index
    %c40 = arith.constant 40 : index
    %c0_143 = arith.constant 0 : index
    %c0_144 = arith.constant 0 : index
    %326 = vector.load %arg8[%c0_142, %c40, %c0_143, %c0_144] : memref<3x60x1x128xf32, #tpu.memory_space<vmem>>, vector<1x8x1x128xf32>
    %327 = vector.shape_cast %326 : vector<1x8x1x128xf32> to vector<8x1x128xf32>
    %328 = vector.shape_cast %325 : vector<8x1x128xf32> to vector<1x8x1x128xf32>
    tpu.vector_store %arg8[%c0_142, %c40, %c0_143, %c0_144], %328 {strides = array<i32>} : memref<3x60x1x128xf32, #tpu.memory_space<vmem>>, vector<1x8x1x128xf32>,
    %329 = vector.shape_cast %293 : vector<4x2x1x128xf32> to vector<8x1x128xf32>
    %c1_145 = arith.constant 1 : index
    %c40_146 = arith.constant 40 : index
    %c0_147 = arith.constant 0 : index
    %c0_148 = arith.constant 0 : index
    %330 = vector.load %arg8[%c1_145, %c40_146, %c0_147, %c0_148] : memref<3x60x1x128xf32, #tpu.memory_space<vmem>>, vector<1x8x1x128xf32>
    %331 = vector.shape_cast %330 : vector<1x8x1x128xf32> to vector<8x1x128xf32>
    %332 = vector.shape_cast %329 : vector<8x1x128xf32> to vector<1x8x1x128xf32>
    tpu.vector_store %arg8[%c1_145, %c40_146, %c0_147, %c0_148], %332 {strides = array<i32>} : memref<3x60x1x128xf32, #tpu.memory_space<vmem>>, vector<1x8x1x128xf32>,
    %333 = vector.shape_cast %324 : vector<4x2x1x128xf32> to vector<8x1x128xf32>
    %c2_149 = arith.constant 2 : index
    %c40_150 = arith.constant 40 : index
    %c0_151 = arith.constant 0 : index
    %c0_152 = arith.constant 0 : index
    %334 = vector.load %arg8[%c2_149, %c40_150, %c0_151, %c0_152] : memref<3x60x1x128xf32, #tpu.memory_space<vmem>>, vector<1x8x1x128xf32>
    %335 = vector.shape_cast %334 : vector<1x8x1x128xf32> to vector<8x1x128xf32>
    %336 = vector.shape_cast %333 : vector<8x1x128xf32> to vector<1x8x1x128xf32>
    tpu.vector_store %arg8[%c2_149, %c40_150, %c0_151, %c0_152], %336 {strides = array<i32>} : memref<3x60x1x128xf32, #tpu.memory_space<vmem>>, vector<1x8x1x128xf32>,
    %337 = vector.shape_cast %55 : vector<2x1x128xf32> to vector<2x1x1x128xf32>
    %338 = vector.shape_cast %42 : vector<4x1x128xf32> to vector<1x4x1x128xf32>
    %339 = vector.broadcast %337 : vector<2x1x1x128xf32> to vector<2x4x1x128xf32>
    %340 = vector.broadcast %338 : vector<1x4x1x128xf32> to vector<2x4x1x128xf32>
    %341 = arith.mulf %339, %340 : vector<2x4x1x128xf32>
    %cst_153 = arith.constant -0.547722578 : f32
    %342 = vector.broadcast %cst_153 : f32 to vector<2x4x1x128xf32>
    %343 = arith.mulf %342, %341 : vector<2x4x1x128xf32>
    %344 = vector.shape_cast %66 : vector<2x1x128xf32> to vector<2x1x1x128xf32>
    %345 = vector.shape_cast %30 : vector<4x1x128xf32> to vector<1x4x1x128xf32>
    %346 = vector.broadcast %344 : vector<2x1x1x128xf32> to vector<2x4x1x128xf32>
    %347 = vector.broadcast %345 : vector<1x4x1x128xf32> to vector<2x4x1x128xf32>
    %348 = arith.mulf %346, %347 : vector<2x4x1x128xf32>
    %cst_154 = arith.constant -0.547722578 : f32
    %349 = vector.broadcast %cst_154 : f32 to vector<2x4x1x128xf32>
    %350 = arith.mulf %349, %348 : vector<2x4x1x128xf32>
    %351 = arith.addf %343, %350 : vector<2x4x1x128xf32>
    %352 = vector.shape_cast %78 : vector<2x1x128xf32> to vector<2x1x1x128xf32>
    %353 = vector.shape_cast %19 : vector<4x1x128xf32> to vector<1x4x1x128xf32>
    %354 = vector.broadcast %352 : vector<2x1x1x128xf32> to vector<2x4x1x128xf32>
    %355 = vector.broadcast %353 : vector<1x4x1x128xf32> to vector<2x4x1x128xf32>
    %356 = arith.mulf %354, %355 : vector<2x4x1x128xf32>
    %cst_155 = arith.constant 0.316227764 : f32
    %357 = vector.broadcast %cst_155 : f32 to vector<2x4x1x128xf32>
    %358 = arith.mulf %357, %356 : vector<2x4x1x128xf32>
    %359 = arith.addf %351, %358 : vector<2x4x1x128xf32>
    %360 = vector.shape_cast %102 : vector<2x1x128xf32> to vector<2x1x1x128xf32>
    %361 = vector.shape_cast %19 : vector<4x1x128xf32> to vector<1x4x1x128xf32>
    %362 = vector.broadcast %360 : vector<2x1x1x128xf32> to vector<2x4x1x128xf32>
    %363 = vector.broadcast %361 : vector<1x4x1x128xf32> to vector<2x4x1x128xf32>
    %364 = arith.mulf %362, %363 : vector<2x4x1x128xf32>
    %cst_156 = arith.constant 0.547722578 : f32
    %365 = vector.broadcast %cst_156 : f32 to vector<2x4x1x128xf32>
    %366 = arith.mulf %365, %364 : vector<2x4x1x128xf32>
    %367 = arith.addf %359, %366 : vector<2x4x1x128xf32>
    %368 = vector.shape_cast %66 : vector<2x1x128xf32> to vector<2x1x1x128xf32>
    %369 = vector.shape_cast %19 : vector<4x1x128xf32> to vector<1x4x1x128xf32>
    %370 = vector.broadcast %368 : vector<2x1x1x128xf32> to vector<2x4x1x128xf32>
    %371 = vector.broadcast %369 : vector<1x4x1x128xf32> to vector<2x4x1x128xf32>
    %372 = arith.mulf %370, %371 : vector<2x4x1x128xf32>
    %cst_157 = arith.constant -0.547722578 : f32
    %373 = vector.broadcast %cst_157 : f32 to vector<2x4x1x128xf32>
    %374 = arith.mulf %373, %372 : vector<2x4x1x128xf32>
    %375 = vector.shape_cast %78 : vector<2x1x128xf32> to vector<2x1x1x128xf32>
    %376 = vector.shape_cast %30 : vector<4x1x128xf32> to vector<1x4x1x128xf32>
    %377 = vector.broadcast %375 : vector<2x1x1x128xf32> to vector<2x4x1x128xf32>
    %378 = vector.broadcast %376 : vector<1x4x1x128xf32> to vector<2x4x1x128xf32>
    %379 = arith.mulf %377, %378 : vector<2x4x1x128xf32>
    %cst_158 = arith.constant -0.632455527 : f32
    %380 = vector.broadcast %cst_158 : f32 to vector<2x4x1x128xf32>
    %381 = arith.mulf %380, %379 : vector<2x4x1x128xf32>
    %382 = arith.addf %374, %381 : vector<2x4x1x128xf32>
    %383 = vector.shape_cast %90 : vector<2x1x128xf32> to vector<2x1x1x128xf32>
    %384 = vector.shape_cast %42 : vector<4x1x128xf32> to vector<1x4x1x128xf32>
    %385 = vector.broadcast %383 : vector<2x1x1x128xf32> to vector<2x4x1x128xf32>
    %386 = vector.broadcast %384 : vector<1x4x1x128xf32> to vector<2x4x1x128xf32>
    %387 = arith.mulf %385, %386 : vector<2x4x1x128xf32>
    %cst_159 = arith.constant -0.547722578 : f32
    %388 = vector.broadcast %cst_159 : f32 to vector<2x4x1x128xf32>
    %389 = arith.mulf %388, %387 : vector<2x4x1x128xf32>
    %390 = arith.addf %382, %389 : vector<2x4x1x128xf32>
    %391 = vector.shape_cast %55 : vector<2x1x128xf32> to vector<2x1x1x128xf32>
    %392 = vector.shape_cast %19 : vector<4x1x128xf32> to vector<1x4x1x128xf32>
    %393 = vector.broadcast %391 : vector<2x1x1x128xf32> to vector<2x4x1x128xf32>
    %394 = vector.broadcast %392 : vector<1x4x1x128xf32> to vector<2x4x1x128xf32>
    %395 = arith.mulf %393, %394 : vector<2x4x1x128xf32>
    %cst_160 = arith.constant -0.547722578 : f32
    %396 = vector.broadcast %cst_160 : f32 to vector<2x4x1x128xf32>
    %397 = arith.mulf %396, %395 : vector<2x4x1x128xf32>
    %398 = vector.shape_cast %78 : vector<2x1x128xf32> to vector<2x1x1x128xf32>
    %399 = vector.shape_cast %42 : vector<4x1x128xf32> to vector<1x4x1x128xf32>
    %400 = vector.broadcast %398 : vector<2x1x1x128xf32> to vector<2x4x1x128xf32>
    %401 = vector.broadcast %399 : vector<1x4x1x128xf32> to vector<2x4x1x128xf32>
    %402 = arith.mulf %400, %401 : vector<2x4x1x128xf32>
    %cst_161 = arith.constant 0.316227764 : f32
    %403 = vector.broadcast %cst_161 : f32 to vector<2x4x1x128xf32>
    %404 = arith.mulf %403, %402 : vector<2x4x1x128xf32>
    %405 = arith.addf %397, %404 : vector<2x4x1x128xf32>
    %406 = vector.shape_cast %90 : vector<2x1x128xf32> to vector<2x1x1x128xf32>
    %407 = vector.shape_cast %30 : vector<4x1x128xf32> to vector<1x4x1x128xf32>
    %408 = vector.broadcast %406 : vector<2x1x1x128xf32> to vector<2x4x1x128xf32>
    %409 = vector.broadcast %407 : vector<1x4x1x128xf32> to vector<2x4x1x128xf32>
    %410 = arith.mulf %408, %409 : vector<2x4x1x128xf32>
    %cst_162 = arith.constant -0.547722578 : f32
    %411 = vector.broadcast %cst_162 : f32 to vector<2x4x1x128xf32>
    %412 = arith.mulf %411, %410 : vector<2x4x1x128xf32>
    %413 = arith.addf %405, %412 : vector<2x4x1x128xf32>
    %414 = vector.shape_cast %102 : vector<2x1x128xf32> to vector<2x1x1x128xf32>
    %415 = vector.shape_cast %42 : vector<4x1x128xf32> to vector<1x4x1x128xf32>
    %416 = vector.broadcast %414 : vector<2x1x1x128xf32> to vector<2x4x1x128xf32>
    %417 = vector.broadcast %415 : vector<1x4x1x128xf32> to vector<2x4x1x128xf32>
    %418 = arith.mulf %416, %417 : vector<2x4x1x128xf32>
    %cst_163 = arith.constant -0.547722578 : f32
    %419 = vector.broadcast %cst_163 : f32 to vector<2x4x1x128xf32>
    %420 = arith.mulf %419, %418 : vector<2x4x1x128xf32>
    %421 = arith.addf %413, %420 : vector<2x4x1x128xf32>
    %422 = vector.shape_cast %367 : vector<2x4x1x128xf32> to vector<8x1x128xf32>
    %c0_164 = arith.constant 0 : index
    %c48 = arith.constant 48 : index
    %c0_165 = arith.constant 0 : index
    %c0_166 = arith.constant 0 : index
    %423 = vector.load %arg8[%c0_164, %c48, %c0_165, %c0_166] : memref<3x60x1x128xf32, #tpu.memory_space<vmem>>, vector<1x8x1x128xf32>
    %424 = vector.shape_cast %423 : vector<1x8x1x128xf32> to vector<8x1x128xf32>
    %425 = vector.shape_cast %422 : vector<8x1x128xf32> to vector<1x8x1x128xf32>
    tpu.vector_store %arg8[%c0_164, %c48, %c0_165, %c0_166], %425 {strides = array<i32>} : memref<3x60x1x128xf32, #tpu.memory_space<vmem>>, vector<1x8x1x128xf32>,
    %426 = vector.shape_cast %390 : vector<2x4x1x128xf32> to vector<8x1x128xf32>
    %c1_167 = arith.constant 1 : index
    %c48_168 = arith.constant 48 : index
    %c0_169 = arith.constant 0 : index
    %c0_170 = arith.constant 0 : index
    %427 = vector.load %arg8[%c1_167, %c48_168, %c0_169, %c0_170] : memref<3x60x1x128xf32, #tpu.memory_space<vmem>>, vector<1x8x1x128xf32>
    %428 = vector.shape_cast %427 : vector<1x8x1x128xf32> to vector<8x1x128xf32>
    %429 = vector.shape_cast %426 : vector<8x1x128xf32> to vector<1x8x1x128xf32>
    tpu.vector_store %arg8[%c1_167, %c48_168, %c0_169, %c0_170], %429 {strides = array<i32>} : memref<3x60x1x128xf32, #tpu.memory_space<vmem>>, vector<1x8x1x128xf32>,
    %430 = vector.shape_cast %421 : vector<2x4x1x128xf32> to vector<8x1x128xf32>
    %c2_171 = arith.constant 2 : index
    %c48_172 = arith.constant 48 : index
    %c0_173 = arith.constant 0 : index
    %c0_174 = arith.constant 0 : index
    %431 = vector.load %arg8[%c2_171, %c48_172, %c0_173, %c0_174] : memref<3x60x1x128xf32, #tpu.memory_space<vmem>>, vector<1x8x1x128xf32>
    %432 = vector.shape_cast %431 : vector<1x8x1x128xf32> to vector<8x1x128xf32>
    %433 = vector.shape_cast %430 : vector<8x1x128xf32> to vector<1x8x1x128xf32>
    tpu.vector_store %arg8[%c2_171, %c48_172, %c0_173, %c0_174], %433 {strides = array<i32>} : memref<3x60x1x128xf32, #tpu.memory_space<vmem>>, vector<1x8x1x128xf32>,
    %434 = vector.shape_cast %55 : vector<2x1x128xf32> to vector<2x1x1x128xf32>
    %435 = vector.shape_cast %69 : vector<2x1x128xf32> to vector<1x2x1x128xf32>
    %436 = vector.broadcast %434 : vector<2x1x1x128xf32> to vector<2x2x1x128xf32>
    %437 = vector.broadcast %435 : vector<1x2x1x128xf32> to vector<2x2x1x128xf32>
    %438 = arith.mulf %436, %437 : vector<2x2x1x128xf32>
    %cst_175 = arith.constant -0.316227764 : f32
    %439 = vector.broadcast %cst_175 : f32 to vector<2x2x1x128xf32>
    %440 = arith.mulf %439, %438 : vector<2x2x1x128xf32>
    %441 = vector.shape_cast %66 : vector<2x1x128xf32> to vector<2x1x1x128xf32>
    %442 = vector.shape_cast %58 : vector<2x1x128xf32> to vector<1x2x1x128xf32>
    %443 = vector.broadcast %441 : vector<2x1x1x128xf32> to vector<2x2x1x128xf32>
    %444 = vector.broadcast %442 : vector<1x2x1x128xf32> to vector<2x2x1x128xf32>
    %445 = arith.mulf %443, %444 : vector<2x2x1x128xf32>
    %cst_176 = arith.constant 0.316227764 : f32
    %446 = vector.broadcast %cst_176 : f32 to vector<2x2x1x128xf32>
    %447 = arith.mulf %446, %445 : vector<2x2x1x128xf32>
    %448 = arith.addf %440, %447 : vector<2x2x1x128xf32>
    %449 = vector.shape_cast %78 : vector<2x1x128xf32> to vector<2x1x1x128xf32>
    %450 = vector.shape_cast %93 : vector<2x1x128xf32> to vector<1x2x1x128xf32>
    %451 = vector.broadcast %449 : vector<2x1x1x128xf32> to vector<2x2x1x128xf32>
    %452 = vector.broadcast %450 : vector<1x2x1x128xf32> to vector<2x2x1x128xf32>
    %453 = arith.mulf %451, %452 : vector<2x2x1x128xf32>
    %cst_177 = arith.constant 0.547722578 : f32
    %454 = vector.broadcast %cst_177 : f32 to vector<2x2x1x128xf32>
    %455 = arith.mulf %454, %453 : vector<2x2x1x128xf32>
    %456 = arith.addf %448, %455 : vector<2x2x1x128xf32>
    %457 = vector.shape_cast %90 : vector<2x1x128xf32> to vector<2x1x1x128xf32>
    %458 = vector.shape_cast %81 : vector<2x1x128xf32> to vector<1x2x1x128xf32>
    %459 = vector.broadcast %457 : vector<2x1x1x128xf32> to vector<2x2x1x128xf32>
    %460 = vector.broadcast %458 : vector<1x2x1x128xf32> to vector<2x2x1x128xf32>
    %461 = arith.mulf %459, %460 : vector<2x2x1x128xf32>
    %cst_178 = arith.constant -0.547722578 : f32
    %462 = vector.broadcast %cst_178 : f32 to vector<2x2x1x128xf32>
    %463 = arith.mulf %462, %461 : vector<2x2x1x128xf32>
    %464 = arith.addf %456, %463 : vector<2x2x1x128xf32>
    %465 = vector.shape_cast %90 : vector<2x1x128xf32> to vector<2x1x1x128xf32>
    %466 = vector.shape_cast %105 : vector<2x1x128xf32> to vector<1x2x1x128xf32>
    %467 = vector.broadcast %465 : vector<2x1x1x128xf32> to vector<2x2x1x128xf32>
    %468 = vector.broadcast %466 : vector<1x2x1x128xf32> to vector<2x2x1x128xf32>
    %469 = arith.mulf %467, %468 : vector<2x2x1x128xf32>
    %cst_179 = arith.constant 0.316227764 : f32
    %470 = vector.broadcast %cst_179 : f32 to vector<2x2x1x128xf32>
    %471 = arith.mulf %470, %469 : vector<2x2x1x128xf32>
    %472 = arith.addf %464, %471 : vector<2x2x1x128xf32>
    %473 = vector.shape_cast %102 : vector<2x1x128xf32> to vector<2x1x1x128xf32>
    %474 = vector.shape_cast %93 : vector<2x1x128xf32> to vector<1x2x1x128xf32>
    %475 = vector.broadcast %473 : vector<2x1x1x128xf32> to vector<2x2x1x128xf32>
    %476 = vector.broadcast %474 : vector<1x2x1x128xf32> to vector<2x2x1x128xf32>
    %477 = arith.mulf %475, %476 : vector<2x2x1x128xf32>
    %cst_180 = arith.constant -0.316227764 : f32
    %478 = vector.broadcast %cst_180 : f32 to vector<2x2x1x128xf32>
    %479 = arith.mulf %478, %477 : vector<2x2x1x128xf32>
    %480 = arith.addf %472, %479 : vector<2x2x1x128xf32>
    %481 = vector.shape_cast %55 : vector<2x1x128xf32> to vector<2x1x1x128xf32>
    %482 = vector.shape_cast %105 : vector<2x1x128xf32> to vector<1x2x1x128xf32>
    %483 = vector.broadcast %481 : vector<2x1x1x128xf32> to vector<2x2x1x128xf32>
    %484 = vector.broadcast %482 : vector<1x2x1x128xf32> to vector<2x2x1x128xf32>
    %485 = arith.mulf %483, %484 : vector<2x2x1x128xf32>
    %cst_181 = arith.constant -0.632455527 : f32
    %486 = vector.broadcast %cst_181 : f32 to vector<2x2x1x128xf32>
    %487 = arith.mulf %486, %485 : vector<2x2x1x128xf32>
    %488 = vector.shape_cast %66 : vector<2x1x128xf32> to vector<2x1x1x128xf32>
    %489 = vector.shape_cast %93 : vector<2x1x128xf32> to vector<1x2x1x128xf32>
    %490 = vector.broadcast %488 : vector<2x1x1x128xf32> to vector<2x2x1x128xf32>
    %491 = vector.broadcast %489 : vector<1x2x1x128xf32> to vector<2x2x1x128xf32>
    %492 = arith.mulf %490, %491 : vector<2x2x1x128xf32>
    %cst_182 = arith.constant -0.316227764 : f32
    %493 = vector.broadcast %cst_182 : f32 to vector<2x2x1x128xf32>
    %494 = arith.mulf %493, %492 : vector<2x2x1x128xf32>
    %495 = arith.addf %487, %494 : vector<2x2x1x128xf32>
    %496 = vector.shape_cast %90 : vector<2x1x128xf32> to vector<2x1x1x128xf32>
    %497 = vector.shape_cast %69 : vector<2x1x128xf32> to vector<1x2x1x128xf32>
    %498 = vector.broadcast %496 : vector<2x1x1x128xf32> to vector<2x2x1x128xf32>
    %499 = vector.broadcast %497 : vector<1x2x1x128xf32> to vector<2x2x1x128xf32>
    %500 = arith.mulf %498, %499 : vector<2x2x1x128xf32>
    %cst_183 = arith.constant 0.316227764 : f32
    %501 = vector.broadcast %cst_183 : f32 to vector<2x2x1x128xf32>
    %502 = arith.mulf %501, %500 : vector<2x2x1x128xf32>
    %503 = arith.addf %495, %502 : vector<2x2x1x128xf32>
    %504 = vector.shape_cast %102 : vector<2x1x128xf32> to vector<2x1x1x128xf32>
    %505 = vector.shape_cast %58 : vector<2x1x128xf32> to vector<1x2x1x128xf32>
    %506 = vector.broadcast %504 : vector<2x1x1x128xf32> to vector<2x2x1x128xf32>
    %507 = vector.broadcast %505 : vector<1x2x1x128xf32> to vector<2x2x1x128xf32>
    %508 = arith.mulf %506, %507 : vector<2x2x1x128xf32>
    %cst_184 = arith.constant 0.632455527 : f32
    %509 = vector.broadcast %cst_184 : f32 to vector<2x2x1x128xf32>
    %510 = arith.mulf %509, %508 : vector<2x2x1x128xf32>
    %511 = arith.addf %503, %510 : vector<2x2x1x128xf32>
    %512 = vector.shape_cast %55 : vector<2x1x128xf32> to vector<2x1x1x128xf32>
    %513 = vector.shape_cast %93 : vector<2x1x128xf32> to vector<1x2x1x128xf32>
    %514 = vector.broadcast %512 : vector<2x1x1x128xf32> to vector<2x2x1x128xf32>
    %515 = vector.broadcast %513 : vector<1x2x1x128xf32> to vector<2x2x1x128xf32>
    %516 = arith.mulf %514, %515 : vector<2x2x1x128xf32>
    %cst_185 = arith.constant 0.316227764 : f32
    %517 = vector.broadcast %cst_185 : f32 to vector<2x2x1x128xf32>
    %518 = arith.mulf %517, %516 : vector<2x2x1x128xf32>
    %519 = vector.shape_cast %66 : vector<2x1x128xf32> to vector<2x1x1x128xf32>
    %520 = vector.shape_cast %81 : vector<2x1x128xf32> to vector<1x2x1x128xf32>
    %521 = vector.broadcast %519 : vector<2x1x1x128xf32> to vector<2x2x1x128xf32>
    %522 = vector.broadcast %520 : vector<1x2x1x128xf32> to vector<2x2x1x128xf32>
    %523 = arith.mulf %521, %522 : vector<2x2x1x128xf32>
    %cst_186 = arith.constant 0.547722578 : f32
    %524 = vector.broadcast %cst_186 : f32 to vector<2x2x1x128xf32>
    %525 = arith.mulf %524, %523 : vector<2x2x1x128xf32>
    %526 = arith.addf %518, %525 : vector<2x2x1x128xf32>
    %527 = vector.shape_cast %66 : vector<2x1x128xf32> to vector<2x1x1x128xf32>
    %528 = vector.shape_cast %105 : vector<2x1x128xf32> to vector<1x2x1x128xf32>
    %529 = vector.broadcast %527 : vector<2x1x1x128xf32> to vector<2x2x1x128xf32>
    %530 = vector.broadcast %528 : vector<1x2x1x128xf32> to vector<2x2x1x128xf32>
    %531 = arith.mulf %529, %530 : vector<2x2x1x128xf32>
    %cst_187 = arith.constant 0.316227764 : f32
    %532 = vector.broadcast %cst_187 : f32 to vector<2x2x1x128xf32>
    %533 = arith.mulf %532, %531 : vector<2x2x1x128xf32>
    %534 = arith.addf %526, %533 : vector<2x2x1x128xf32>
    %535 = vector.shape_cast %78 : vector<2x1x128xf32> to vector<2x1x1x128xf32>
    %536 = vector.shape_cast %69 : vector<2x1x128xf32> to vector<1x2x1x128xf32>
    %537 = vector.broadcast %535 : vector<2x1x1x128xf32> to vector<2x2x1x128xf32>
    %538 = vector.broadcast %536 : vector<1x2x1x128xf32> to vector<2x2x1x128xf32>
    %539 = arith.mulf %537, %538 : vector<2x2x1x128xf32>
    %cst_188 = arith.constant -0.547722578 : f32
    %540 = vector.broadcast %cst_188 : f32 to vector<2x2x1x128xf32>
    %541 = arith.mulf %540, %539 : vector<2x2x1x128xf32>
    %542 = arith.addf %534, %541 : vector<2x2x1x128xf32>
    %543 = vector.shape_cast %90 : vector<2x1x128xf32> to vector<2x1x1x128xf32>
    %544 = vector.shape_cast %58 : vector<2x1x128xf32> to vector<1x2x1x128xf32>
    %545 = vector.broadcast %543 : vector<2x1x1x128xf32> to vector<2x2x1x128xf32>
    %546 = vector.broadcast %544 : vector<1x2x1x128xf32> to vector<2x2x1x128xf32>
    %547 = arith.mulf %545, %546 : vector<2x2x1x128xf32>
    %cst_189 = arith.constant -0.316227764 : f32
    %548 = vector.broadcast %cst_189 : f32 to vector<2x2x1x128xf32>
    %549 = arith.mulf %548, %547 : vector<2x2x1x128xf32>
    %550 = arith.addf %542, %549 : vector<2x2x1x128xf32>
    %551 = vector.shape_cast %102 : vector<2x1x128xf32> to vector<2x1x1x128xf32>
    %552 = vector.shape_cast %69 : vector<2x1x128xf32> to vector<1x2x1x128xf32>
    %553 = vector.broadcast %551 : vector<2x1x1x128xf32> to vector<2x2x1x128xf32>
    %554 = vector.broadcast %552 : vector<1x2x1x128xf32> to vector<2x2x1x128xf32>
    %555 = arith.mulf %553, %554 : vector<2x2x1x128xf32>
    %cst_190 = arith.constant -0.316227764 : f32
    %556 = vector.broadcast %cst_190 : f32 to vector<2x2x1x128xf32>
    %557 = arith.mulf %556, %555 : vector<2x2x1x128xf32>
    %558 = arith.addf %550, %557 : vector<2x2x1x128xf32>
    %559 = vector.shape_cast %480 : vector<2x2x1x128xf32> to vector<4x1x128xf32>
    %c0_191 = arith.constant 0 : index
    %c56 = arith.constant 56 : index
    %c0_192 = arith.constant 0 : index
    %c0_193 = arith.constant 0 : index
    %560 = vector.load %arg8[%c0_191, %c56, %c0_192, %c0_193] : memref<3x60x1x128xf32, #tpu.memory_space<vmem>>, vector<1x4x1x128xf32>
    %561 = vector.shape_cast %560 : vector<1x4x1x128xf32> to vector<4x1x128xf32>
    %562 = vector.shape_cast %559 : vector<4x1x128xf32> to vector<1x4x1x128xf32>
    tpu.vector_store %arg8[%c0_191, %c56, %c0_192, %c0_193], %562 {strides = array<i32>} : memref<3x60x1x128xf32, #tpu.memory_space<vmem>>, vector<1x4x1x128xf32>,
    %563 = vector.shape_cast %511 : vector<2x2x1x128xf32> to vector<4x1x128xf32>
    %c1_194 = arith.constant 1 : index
    %c56_195 = arith.constant 56 : index
    %c0_196 = arith.constant 0 : index
    %c0_197 = arith.constant 0 : index
    %564 = vector.load %arg8[%c1_194, %c56_195, %c0_196, %c0_197] : memref<3x60x1x128xf32, #tpu.memory_space<vmem>>, vector<1x4x1x128xf32>
    %565 = vector.shape_cast %564 : vector<1x4x1x128xf32> to vector<4x1x128xf32>
    %566 = vector.shape_cast %563 : vector<4x1x128xf32> to vector<1x4x1x128xf32>
    tpu.vector_store %arg8[%c1_194, %c56_195, %c0_196, %c0_197], %566 {strides = array<i32>} : memref<3x60x1x128xf32, #tpu.memory_space<vmem>>, vector<1x4x1x128xf32>,
    %567 = vector.shape_cast %558 : vector<2x2x1x128xf32> to vector<4x1x128xf32>
    %c2_198 = arith.constant 2 : index
    %c56_199 = arith.constant 56 : index
    %c0_200 = arith.constant 0 : index
    %c0_201 = arith.constant 0 : index
    %568 = vector.load %arg8[%c2_198, %c56_199, %c0_200, %c0_201] : memref<3x60x1x128xf32, #tpu.memory_space<vmem>>, vector<1x4x1x128xf32>
    %569 = vector.shape_cast %568 : vector<1x4x1x128xf32> to vector<4x1x128xf32>
    %570 = vector.shape_cast %567 : vector<4x1x128xf32> to vector<1x4x1x128xf32>
    tpu.vector_store %arg8[%c2_198, %c56_199, %c0_200, %c0_201], %570 {strides = array<i32>} : memref<3x60x1x128xf32, #tpu.memory_space<vmem>>, vector<1x4x1x128xf32>,
    %571 = vector.shape_cast %1 : vector<3x1x128xf32> to vector<3x1x1x128xf32>
    %572 = vector.shape_cast %58 : vector<2x1x128xf32> to vector<1x2x1x128xf32>
    %573 = vector.broadcast %571 : vector<3x1x1x128xf32> to vector<3x2x1x128xf32>
    %574 = vector.broadcast %572 : vector<1x2x1x128xf32> to vector<3x2x1x128xf32>
    %575 = arith.mulf %573, %574 : vector<3x2x1x128xf32>
    %cst_202 = arith.constant 1.000000e+00 : f32
    %576 = vector.broadcast %cst_202 : f32 to vector<3x2x1x128xf32>
    %577 = arith.mulf %576, %575 : vector<3x2x1x128xf32>
    %578 = vector.shape_cast %1 : vector<3x1x128xf32> to vector<3x1x1x128xf32>
    %579 = vector.shape_cast %69 : vector<2x1x128xf32> to vector<1x2x1x128xf32>
    %580 = vector.broadcast %578 : vector<3x1x1x128xf32> to vector<3x2x1x128xf32>
    %581 = vector.broadcast %579 : vector<1x2x1x128xf32> to vector<3x2x1x128xf32>
    %582 = arith.mulf %580, %581 : vector<3x2x1x128xf32>
    %cst_203 = arith.constant 1.000000e+00 : f32
    %583 = vector.broadcast %cst_203 : f32 to vector<3x2x1x128xf32>
    %584 = arith.mulf %583, %582 : vector<3x2x1x128xf32>
    %585 = vector.shape_cast %1 : vector<3x1x128xf32> to vector<3x1x1x128xf32>
    %586 = vector.shape_cast %81 : vector<2x1x128xf32> to vector<1x2x1x128xf32>
    %587 = vector.broadcast %585 : vector<3x1x1x128xf32> to vector<3x2x1x128xf32>
    %588 = vector.broadcast %586 : vector<1x2x1x128xf32> to vector<3x2x1x128xf32>
    %589 = arith.mulf %587, %588 : vector<3x2x1x128xf32>
    %cst_204 = arith.constant 1.000000e+00 : f32
    %590 = vector.broadcast %cst_204 : f32 to vector<3x2x1x128xf32>
    %591 = arith.mulf %590, %589 : vector<3x2x1x128xf32>
    %592 = vector.shape_cast %1 : vector<3x1x128xf32> to vector<3x1x1x128xf32>
    %593 = vector.shape_cast %93 : vector<2x1x128xf32> to vector<1x2x1x128xf32>
    %594 = vector.broadcast %592 : vector<3x1x1x128xf32> to vector<3x2x1x128xf32>
    %595 = vector.broadcast %593 : vector<1x2x1x128xf32> to vector<3x2x1x128xf32>
    %596 = arith.mulf %594, %595 : vector<3x2x1x128xf32>
    %cst_205 = arith.constant 1.000000e+00 : f32
    %597 = vector.broadcast %cst_205 : f32 to vector<3x2x1x128xf32>
    %598 = arith.mulf %597, %596 : vector<3x2x1x128xf32>
    %599 = vector.shape_cast %1 : vector<3x1x128xf32> to vector<3x1x1x128xf32>
    %600 = vector.shape_cast %105 : vector<2x1x128xf32> to vector<1x2x1x128xf32>
    %601 = vector.broadcast %599 : vector<3x1x1x128xf32> to vector<3x2x1x128xf32>
    %602 = vector.broadcast %600 : vector<1x2x1x128xf32> to vector<3x2x1x128xf32>
    %603 = arith.mulf %601, %602 : vector<3x2x1x128xf32>
    %cst_206 = arith.constant 1.000000e+00 : f32
    %604 = vector.broadcast %cst_206 : f32 to vector<3x2x1x128xf32>
    %605 = arith.mulf %604, %603 : vector<3x2x1x128xf32>
    %606 = vector.shape_cast %577 : vector<3x2x1x128xf32> to vector<6x1x128xf32>
    %c0_207 = arith.constant 0 : index
    %c0_208 = arith.constant 0 : index
    %c0_209 = arith.constant 0 : index
    %c0_210 = arith.constant 0 : index
    %607 = vector.load %arg9[%c0_207, %c0_208, %c0_209, %c0_210] : memref<5x48x1x128xf32, #tpu.memory_space<vmem>>, vector<1x6x1x128xf32>
    %608 = vector.shape_cast %607 : vector<1x6x1x128xf32> to vector<6x1x128xf32>
    %609 = vector.shape_cast %606 : vector<6x1x128xf32> to vector<1x6x1x128xf32>
    tpu.vector_store %arg9[%c0_207, %c0_208, %c0_209, %c0_210], %609 {strides = array<i32>} : memref<5x48x1x128xf32, #tpu.memory_space<vmem>>, vector<1x6x1x128xf32>,
    %610 = vector.shape_cast %584 : vector<3x2x1x128xf32> to vector<6x1x128xf32>
    %c1_211 = arith.constant 1 : index
    %c0_212 = arith.constant 0 : index
    %c0_213 = arith.constant 0 : index
    %c0_214 = arith.constant 0 : index
    %611 = vector.load %arg9[%c1_211, %c0_212, %c0_213, %c0_214] : memref<5x48x1x128xf32, #tpu.memory_space<vmem>>, vector<1x6x1x128xf32>
    %612 = vector.shape_cast %611 : vector<1x6x1x128xf32> to vector<6x1x128xf32>
    %613 = vector.shape_cast %610 : vector<6x1x128xf32> to vector<1x6x1x128xf32>
    tpu.vector_store %arg9[%c1_211, %c0_212, %c0_213, %c0_214], %613 {strides = array<i32>} : memref<5x48x1x128xf32, #tpu.memory_space<vmem>>, vector<1x6x1x128xf32>,
    %614 = vector.shape_cast %591 : vector<3x2x1x128xf32> to vector<6x1x128xf32>
    %c2_215 = arith.constant 2 : index
    %c0_216 = arith.constant 0 : index
    %c0_217 = arith.constant 0 : index
    %c0_218 = arith.constant 0 : index
    %615 = vector.load %arg9[%c2_215, %c0_216, %c0_217, %c0_218] : memref<5x48x1x128xf32, #tpu.memory_space<vmem>>, vector<1x6x1x128xf32>
    %616 = vector.shape_cast %615 : vector<1x6x1x128xf32> to vector<6x1x128xf32>
    %617 = vector.shape_cast %614 : vector<6x1x128xf32> to vector<1x6x1x128xf32>
    tpu.vector_store %arg9[%c2_215, %c0_216, %c0_217, %c0_218], %617 {strides = array<i32>} : memref<5x48x1x128xf32, #tpu.memory_space<vmem>>, vector<1x6x1x128xf32>,
    %618 = vector.shape_cast %598 : vector<3x2x1x128xf32> to vector<6x1x128xf32>
    %c3_219 = arith.constant 3 : index
    %c0_220 = arith.constant 0 : index
    %c0_221 = arith.constant 0 : index
    %c0_222 = arith.constant 0 : index
    %619 = vector.load %arg9[%c3_219, %c0_220, %c0_221, %c0_222] : memref<5x48x1x128xf32, #tpu.memory_space<vmem>>, vector<1x6x1x128xf32>
    %620 = vector.shape_cast %619 : vector<1x6x1x128xf32> to vector<6x1x128xf32>
    %621 = vector.shape_cast %618 : vector<6x1x128xf32> to vector<1x6x1x128xf32>
    tpu.vector_store %arg9[%c3_219, %c0_220, %c0_221, %c0_222], %621 {strides = array<i32>} : memref<5x48x1x128xf32, #tpu.memory_space<vmem>>, vector<1x6x1x128xf32>,
    %622 = vector.shape_cast %605 : vector<3x2x1x128xf32> to vector<6x1x128xf32>
    %c4_223 = arith.constant 4 : index
    %c0_224 = arith.constant 0 : index
    %c0_225 = arith.constant 0 : index
    %c0_226 = arith.constant 0 : index
    %623 = vector.load %arg9[%c4_223, %c0_224, %c0_225, %c0_226] : memref<5x48x1x128xf32, #tpu.memory_space<vmem>>, vector<1x6x1x128xf32>
    %624 = vector.shape_cast %623 : vector<1x6x1x128xf32> to vector<6x1x128xf32>
    %625 = vector.shape_cast %622 : vector<6x1x128xf32> to vector<1x6x1x128xf32>
    tpu.vector_store %arg9[%c4_223, %c0_224, %c0_225, %c0_226], %625 {strides = array<i32>} : memref<5x48x1x128xf32, #tpu.memory_space<vmem>>, vector<1x6x1x128xf32>,
    %626 = vector.shape_cast %16 : vector<4x1x128xf32> to vector<4x1x1x128xf32>
    %627 = vector.shape_cast %42 : vector<4x1x128xf32> to vector<1x4x1x128xf32>
    %628 = vector.broadcast %626 : vector<4x1x1x128xf32> to vector<4x4x1x128xf32>
    %629 = vector.broadcast %627 : vector<1x4x1x128xf32> to vector<4x4x1x128xf32>
    %630 = arith.mulf %628, %629 : vector<4x4x1x128xf32>
    %cst_227 = arith.constant 0.707106769 : f32
    %631 = vector.broadcast %cst_227 : f32 to vector<4x4x1x128xf32>
    %632 = arith.mulf %631, %630 : vector<4x4x1x128xf32>
    %633 = vector.shape_cast %39 : vector<4x1x128xf32> to vector<4x1x1x128xf32>
    %634 = vector.shape_cast %19 : vector<4x1x128xf32> to vector<1x4x1x128xf32>
    %635 = vector.broadcast %633 : vector<4x1x1x128xf32> to vector<4x4x1x128xf32>
    %636 = vector.broadcast %634 : vector<1x4x1x128xf32> to vector<4x4x1x128xf32>
    %637 = arith.mulf %635, %636 : vector<4x4x1x128xf32>
    %cst_228 = arith.constant 0.707106769 : f32
    %638 = vector.broadcast %cst_228 : f32 to vector<4x4x1x128xf32>
    %639 = arith.mulf %638, %637 : vector<4x4x1x128xf32>
    %640 = arith.addf %632, %639 : vector<4x4x1x128xf32>
    %641 = vector.shape_cast %16 : vector<4x1x128xf32> to vector<4x1x1x128xf32>
    %642 = vector.shape_cast %30 : vector<4x1x128xf32> to vector<1x4x1x128xf32>
    %643 = vector.broadcast %641 : vector<4x1x1x128xf32> to vector<4x4x1x128xf32>
    %644 = vector.broadcast %642 : vector<1x4x1x128xf32> to vector<4x4x1x128xf32>
    %645 = arith.mulf %643, %644 : vector<4x4x1x128xf32>
    %cst_229 = arith.constant 0.707106769 : f32
    %646 = vector.broadcast %cst_229 : f32 to vector<4x4x1x128xf32>
    %647 = arith.mulf %646, %645 : vector<4x4x1x128xf32>
    %648 = vector.shape_cast %27 : vector<4x1x128xf32> to vector<4x1x1x128xf32>
    %649 = vector.shape_cast %19 : vector<4x1x128xf32> to vector<1x4x1x128xf32>
    %650 = vector.broadcast %648 : vector<4x1x1x128xf32> to vector<4x4x1x128xf32>
    %651 = vector.broadcast %649 : vector<1x4x1x128xf32> to vector<4x4x1x128xf32>
    %652 = arith.mulf %650, %651 : vector<4x4x1x128xf32>
    %cst_230 = arith.constant 0.707106769 : f32
    %653 = vector.broadcast %cst_230 : f32 to vector<4x4x1x128xf32>
    %654 = arith.mulf %653, %652 : vector<4x4x1x128xf32>
    %655 = arith.addf %647, %654 : vector<4x4x1x128xf32>
    %656 = vector.shape_cast %16 : vector<4x1x128xf32> to vector<4x1x1x128xf32>
    %657 = vector.shape_cast %19 : vector<4x1x128xf32> to vector<1x4x1x128xf32>
    %658 = vector.broadcast %656 : vector<4x1x1x128xf32> to vector<4x4x1x128xf32>
    %659 = vector.broadcast %657 : vector<1x4x1x128xf32> to vector<4x4x1x128xf32>
    %660 = arith.mulf %658, %659 : vector<4x4x1x128xf32>
    %cst_231 = arith.constant -0.408248305 : f32
    %661 = vector.broadcast %cst_231 : f32 to vector<4x4x1x128xf32>
    %662 = arith.mulf %661, %660 : vector<4x4x1x128xf32>
    %cst_232 = arith.constant -0.707106769 : f32
    %663 = vector.broadcast %cst_232 : f32 to vector<4x4x1x128xf32>
    %664 = arith.mulf %663, %660 : vector<4x4x1x128xf32>
    %665 = vector.shape_cast %27 : vector<4x1x128xf32> to vector<4x1x1x128xf32>
    %666 = vector.shape_cast %30 : vector<4x1x128xf32> to vector<1x4x1x128xf32>
    %667 = vector.broadcast %665 : vector<4x1x1x128xf32> to vector<4x4x1x128xf32>
    %668 = vector.broadcast %666 : vector<1x4x1x128xf32> to vector<4x4x1x128xf32>
    %669 = arith.mulf %667, %668 : vector<4x4x1x128xf32>
    %cst_233 = arith.constant 0.816496611 : f32
    %670 = vector.broadcast %cst_233 : f32 to vector<4x4x1x128xf32>
    %671 = arith.mulf %670, %669 : vector<4x4x1x128xf32>
    %672 = arith.addf %662, %671 : vector<4x4x1x128xf32>
    %673 = vector.shape_cast %39 : vector<4x1x128xf32> to vector<4x1x1x128xf32>
    %674 = vector.shape_cast %42 : vector<4x1x128xf32> to vector<1x4x1x128xf32>
    %675 = vector.broadcast %673 : vector<4x1x1x128xf32> to vector<4x4x1x128xf32>
    %676 = vector.broadcast %674 : vector<1x4x1x128xf32> to vector<4x4x1x128xf32>
    %677 = arith.mulf %675, %676 : vector<4x4x1x128xf32>
    %cst_234 = arith.constant -0.408248305 : f32
    %678 = vector.broadcast %cst_234 : f32 to vector<4x4x1x128xf32>
    %679 = arith.mulf %678, %677 : vector<4x4x1x128xf32>
    %680 = arith.addf %672, %679 : vector<4x4x1x128xf32>
    %cst_235 = arith.constant 0.707106769 : f32
    %681 = vector.broadcast %cst_235 : f32 to vector<4x4x1x128xf32>
    %682 = arith.mulf %681, %677 : vector<4x4x1x128xf32>
    %683 = arith.addf %664, %682 : vector<4x4x1x128xf32>
    %684 = vector.shape_cast %27 : vector<4x1x128xf32> to vector<4x1x1x128xf32>
    %685 = vector.shape_cast %42 : vector<4x1x128xf32> to vector<1x4x1x128xf32>
    %686 = vector.broadcast %684 : vector<4x1x1x128xf32> to vector<4x4x1x128xf32>
    %687 = vector.broadcast %685 : vector<1x4x1x128xf32> to vector<4x4x1x128xf32>
    %688 = arith.mulf %686, %687 : vector<4x4x1x128xf32>
    %cst_236 = arith.constant 0.707106769 : f32
    %689 = vector.broadcast %cst_236 : f32 to vector<4x4x1x128xf32>
    %690 = arith.mulf %689, %688 : vector<4x4x1x128xf32>
    %691 = vector.shape_cast %39 : vector<4x1x128xf32> to vector<4x1x1x128xf32>
    %692 = vector.shape_cast %30 : vector<4x1x128xf32> to vector<1x4x1x128xf32>
    %693 = vector.broadcast %691 : vector<4x1x1x128xf32> to vector<4x4x1x128xf32>
    %694 = vector.broadcast %692 : vector<1x4x1x128xf32> to vector<4x4x1x128xf32>
    %695 = arith.mulf %693, %694 : vector<4x4x1x128xf32>
    %cst_237 = arith.constant 0.707106769 : f32
    %696 = vector.broadcast %cst_237 : f32 to vector<4x4x1x128xf32>
    %697 = arith.mulf %696, %695 : vector<4x4x1x128xf32>
    %698 = arith.addf %690, %697 : vector<4x4x1x128xf32>
    %699 = vector.shape_cast %640 : vector<4x4x1x128xf32> to vector<16x1x128xf32>
    %c0_238 = arith.constant 0 : index
    %c6 = arith.constant 6 : index
    %c0_239 = arith.constant 0 : index
    %c0_240 = arith.constant 0 : index
    %700 = vector.load %arg9[%c0_238, %c6, %c0_239, %c0_240] : memref<5x48x1x128xf32, #tpu.memory_space<vmem>>, vector<1x16x1x128xf32>
    %701 = vector.shape_cast %700 : vector<1x16x1x128xf32> to vector<16x1x128xf32>
    %702 = vector.shape_cast %699 : vector<16x1x128xf32> to vector<1x16x1x128xf32>
    tpu.vector_store %arg9[%c0_238, %c6, %c0_239, %c0_240], %702 {strides = array<i32>} : memref<5x48x1x128xf32, #tpu.memory_space<vmem>>, vector<1x16x1x128xf32>,
    %703 = vector.shape_cast %655 : vector<4x4x1x128xf32> to vector<16x1x128xf32>
    %c1_241 = arith.constant 1 : index
    %c6_242 = arith.constant 6 : index
    %c0_243 = arith.constant 0 : index
    %c0_244 = arith.constant 0 : index
    %704 = vector.load %arg9[%c1_241, %c6_242, %c0_243, %c0_244] : memref<5x48x1x128xf32, #tpu.memory_space<vmem>>, vector<1x16x1x128xf32>
    %705 = vector.shape_cast %704 : vector<1x16x1x128xf32> to vector<16x1x128xf32>
    %706 = vector.shape_cast %703 : vector<16x1x128xf32> to vector<1x16x1x128xf32>
    tpu.vector_store %arg9[%c1_241, %c6_242, %c0_243, %c0_244], %706 {strides = array<i32>} : memref<5x48x1x128xf32, #tpu.memory_space<vmem>>, vector<1x16x1x128xf32>,
    %707 = vector.shape_cast %680 : vector<4x4x1x128xf32> to vector<16x1x128xf32>
    %c2_245 = arith.constant 2 : index
    %c6_246 = arith.constant 6 : index
    %c0_247 = arith.constant 0 : index
    %c0_248 = arith.constant 0 : index
    %708 = vector.load %arg9[%c2_245, %c6_246, %c0_247, %c0_248] : memref<5x48x1x128xf32, #tpu.memory_space<vmem>>, vector<1x16x1x128xf32>
    %709 = vector.shape_cast %708 : vector<1x16x1x128xf32> to vector<16x1x128xf32>
    %710 = vector.shape_cast %707 : vector<16x1x128xf32> to vector<1x16x1x128xf32>
    tpu.vector_store %arg9[%c2_245, %c6_246, %c0_247, %c0_248], %710 {strides = array<i32>} : memref<5x48x1x128xf32, #tpu.memory_space<vmem>>, vector<1x16x1x128xf32>,
    %711 = vector.shape_cast %698 : vector<4x4x1x128xf32> to vector<16x1x128xf32>
    %c3_249 = arith.constant 3 : index
    %c6_250 = arith.constant 6 : index
    %c0_251 = arith.constant 0 : index
    %c0_252 = arith.constant 0 : index
    %712 = vector.load %arg9[%c3_249, %c6_250, %c0_251, %c0_252] : memref<5x48x1x128xf32, #tpu.memory_space<vmem>>, vector<1x16x1x128xf32>
    %713 = vector.shape_cast %712 : vector<1x16x1x128xf32> to vector<16x1x128xf32>
    %714 = vector.shape_cast %711 : vector<16x1x128xf32> to vector<1x16x1x128xf32>
    tpu.vector_store %arg9[%c3_249, %c6_250, %c0_251, %c0_252], %714 {strides = array<i32>} : memref<5x48x1x128xf32, #tpu.memory_space<vmem>>, vector<1x16x1x128xf32>,
    %715 = vector.shape_cast %683 : vector<4x4x1x128xf32> to vector<16x1x128xf32>
    %c4_253 = arith.constant 4 : index
    %c6_254 = arith.constant 6 : index
    %c0_255 = arith.constant 0 : index
    %c0_256 = arith.constant 0 : index
    %716 = vector.load %arg9[%c4_253, %c6_254, %c0_255, %c0_256] : memref<5x48x1x128xf32, #tpu.memory_space<vmem>>, vector<1x16x1x128xf32>
    %717 = vector.shape_cast %716 : vector<1x16x1x128xf32> to vector<16x1x128xf32>
    %718 = vector.shape_cast %715 : vector<16x1x128xf32> to vector<1x16x1x128xf32>
    tpu.vector_store %arg9[%c4_253, %c6_254, %c0_255, %c0_256], %718 {strides = array<i32>} : memref<5x48x1x128xf32, #tpu.memory_space<vmem>>, vector<1x16x1x128xf32>,
    %719 = vector.shape_cast %16 : vector<4x1x128xf32> to vector<4x1x1x128xf32>
    %720 = vector.shape_cast %69 : vector<2x1x128xf32> to vector<1x2x1x128xf32>
    %721 = vector.broadcast %719 : vector<4x1x1x128xf32> to vector<4x2x1x128xf32>
    %722 = vector.broadcast %720 : vector<1x2x1x128xf32> to vector<4x2x1x128xf32>
    %723 = arith.mulf %721, %722 : vector<4x2x1x128xf32>
    %cst_257 = arith.constant -0.408248305 : f32
    %724 = vector.broadcast %cst_257 : f32 to vector<4x2x1x128xf32>
    %725 = arith.mulf %724, %723 : vector<4x2x1x128xf32>
    %726 = vector.shape_cast %27 : vector<4x1x128xf32> to vector<4x1x1x128xf32>
    %727 = vector.shape_cast %105 : vector<2x1x128xf32> to vector<1x2x1x128xf32>
    %728 = vector.broadcast %726 : vector<4x1x1x128xf32> to vector<4x2x1x128xf32>
    %729 = vector.broadcast %727 : vector<1x2x1x128xf32> to vector<4x2x1x128xf32>
    %730 = arith.mulf %728, %729 : vector<4x2x1x128xf32>
    %cst_258 = arith.constant -0.816496611 : f32
    %731 = vector.broadcast %cst_258 : f32 to vector<4x2x1x128xf32>
    %732 = arith.mulf %731, %730 : vector<4x2x1x128xf32>
    %733 = arith.addf %725, %732 : vector<4x2x1x128xf32>
    %734 = vector.shape_cast %39 : vector<4x1x128xf32> to vector<4x1x1x128xf32>
    %735 = vector.shape_cast %93 : vector<2x1x128xf32> to vector<1x2x1x128xf32>
    %736 = vector.broadcast %734 : vector<4x1x1x128xf32> to vector<4x2x1x128xf32>
    %737 = vector.broadcast %735 : vector<1x2x1x128xf32> to vector<4x2x1x128xf32>
    %738 = arith.mulf %736, %737 : vector<4x2x1x128xf32>
    %cst_259 = arith.constant 0.408248305 : f32
    %739 = vector.broadcast %cst_259 : f32 to vector<4x2x1x128xf32>
    %740 = arith.mulf %739, %738 : vector<4x2x1x128xf32>
    %741 = arith.addf %733, %740 : vector<4x2x1x128xf32>
    %742 = vector.shape_cast %16 : vector<4x1x128xf32> to vector<4x1x1x128xf32>
    %743 = vector.shape_cast %58 : vector<2x1x128xf32> to vector<1x2x1x128xf32>
    %744 = vector.broadcast %742 : vector<4x1x1x128xf32> to vector<4x2x1x128xf32>
    %745 = vector.broadcast %743 : vector<1x2x1x128xf32> to vector<4x2x1x128xf32>
    %746 = arith.mulf %744, %745 : vector<4x2x1x128xf32>
    %cst_260 = arith.constant 0.408248305 : f32
    %747 = vector.broadcast %cst_260 : f32 to vector<4x2x1x128xf32>
    %748 = arith.mulf %747, %746 : vector<4x2x1x128xf32>
    %749 = vector.shape_cast %27 : vector<4x1x128xf32> to vector<4x1x1x128xf32>
    %750 = vector.shape_cast %93 : vector<2x1x128xf32> to vector<1x2x1x128xf32>
    %751 = vector.broadcast %749 : vector<4x1x1x128xf32> to vector<4x2x1x128xf32>
    %752 = vector.broadcast %750 : vector<1x2x1x128xf32> to vector<4x2x1x128xf32>
    %753 = arith.mulf %751, %752 : vector<4x2x1x128xf32>
    %cst_261 = arith.constant -0.408248305 : f32
    %754 = vector.broadcast %cst_261 : f32 to vector<4x2x1x128xf32>
    %755 = arith.mulf %754, %753 : vector<4x2x1x128xf32>
    %756 = arith.addf %748, %755 : vector<4x2x1x128xf32>
    %757 = vector.shape_cast %39 : vector<4x1x128xf32> to vector<4x1x1x128xf32>
    %758 = vector.shape_cast %81 : vector<2x1x128xf32> to vector<1x2x1x128xf32>
    %759 = vector.broadcast %757 : vector<4x1x1x128xf32> to vector<4x2x1x128xf32>
    %760 = vector.broadcast %758 : vector<1x2x1x128xf32> to vector<4x2x1x128xf32>
    %761 = arith.mulf %759, %760 : vector<4x2x1x128xf32>
    %cst_262 = arith.constant 0.707106769 : f32
    %762 = vector.broadcast %cst_262 : f32 to vector<4x2x1x128xf32>
    %763 = arith.mulf %762, %761 : vector<4x2x1x128xf32>
    %764 = arith.addf %756, %763 : vector<4x2x1x128xf32>
    %765 = vector.shape_cast %39 : vector<4x1x128xf32> to vector<4x1x1x128xf32>
    %766 = vector.shape_cast %105 : vector<2x1x128xf32> to vector<1x2x1x128xf32>
    %767 = vector.broadcast %765 : vector<4x1x1x128xf32> to vector<4x2x1x128xf32>
    %768 = vector.broadcast %766 : vector<1x2x1x128xf32> to vector<4x2x1x128xf32>
    %769 = arith.mulf %767, %768 : vector<4x2x1x128xf32>
    %cst_263 = arith.constant 0.408248305 : f32
    %770 = vector.broadcast %cst_263 : f32 to vector<4x2x1x128xf32>
    %771 = arith.mulf %770, %769 : vector<4x2x1x128xf32>
    %772 = arith.addf %764, %771 : vector<4x2x1x128xf32>
    %773 = vector.shape_cast %16 : vector<4x1x128xf32> to vector<4x1x1x128xf32>
    %774 = vector.shape_cast %93 : vector<2x1x128xf32> to vector<1x2x1x128xf32>
    %775 = vector.broadcast %773 : vector<4x1x1x128xf32> to vector<4x2x1x128xf32>
    %776 = vector.broadcast %774 : vector<1x2x1x128xf32> to vector<4x2x1x128xf32>
    %777 = arith.mulf %775, %776 : vector<4x2x1x128xf32>
    %cst_264 = arith.constant 0.707106769 : f32
    %778 = vector.broadcast %cst_264 : f32 to vector<4x2x1x128xf32>
    %779 = arith.mulf %778, %777 : vector<4x2x1x128xf32>
    %cst_265 = arith.constant -0.408248305 : f32
    %780 = vector.broadcast %cst_265 : f32 to vector<4x2x1x128xf32>
    %781 = arith.mulf %780, %777 : vector<4x2x1x128xf32>
    %782 = vector.shape_cast %39 : vector<4x1x128xf32> to vector<4x1x1x128xf32>
    %783 = vector.shape_cast %69 : vector<2x1x128xf32> to vector<1x2x1x128xf32>
    %784 = vector.broadcast %782 : vector<4x1x1x128xf32> to vector<4x2x1x128xf32>
    %785 = vector.broadcast %783 : vector<1x2x1x128xf32> to vector<4x2x1x128xf32>
    %786 = arith.mulf %784, %785 : vector<4x2x1x128xf32>
    %cst_266 = arith.constant -0.707106769 : f32
    %787 = vector.broadcast %cst_266 : f32 to vector<4x2x1x128xf32>
    %788 = arith.mulf %787, %786 : vector<4x2x1x128xf32>
    %789 = arith.addf %779, %788 : vector<4x2x1x128xf32>
    %cst_267 = arith.constant -0.408248305 : f32
    %790 = vector.broadcast %cst_267 : f32 to vector<4x2x1x128xf32>
    %791 = arith.mulf %790, %786 : vector<4x2x1x128xf32>
    %792 = arith.addf %781, %791 : vector<4x2x1x128xf32>
    %793 = vector.shape_cast %16 : vector<4x1x128xf32> to vector<4x1x1x128xf32>
    %794 = vector.shape_cast %81 : vector<2x1x128xf32> to vector<1x2x1x128xf32>
    %795 = vector.broadcast %793 : vector<4x1x1x128xf32> to vector<4x2x1x128xf32>
    %796 = vector.broadcast %794 : vector<1x2x1x128xf32> to vector<4x2x1x128xf32>
    %797 = arith.mulf %795, %796 : vector<4x2x1x128xf32>
    %cst_268 = arith.constant -0.707106769 : f32
    %798 = vector.broadcast %cst_268 : f32 to vector<4x2x1x128xf32>
    %799 = arith.mulf %798, %797 : vector<4x2x1x128xf32>
    %800 = vector.shape_cast %16 : vector<4x1x128xf32> to vector<4x1x1x128xf32>
    %801 = vector.shape_cast %105 : vector<2x1x128xf32> to vector<1x2x1x128xf32>
    %802 = vector.broadcast %800 : vector<4x1x1x128xf32> to vector<4x2x1x128xf32>
    %803 = vector.broadcast %801 : vector<1x2x1x128xf32> to vector<4x2x1x128xf32>
    %804 = arith.mulf %802, %803 : vector<4x2x1x128xf32>
    %cst_269 = arith.constant 0.408248305 : f32
    %805 = vector.broadcast %cst_269 : f32 to vector<4x2x1x128xf32>
    %806 = arith.mulf %805, %804 : vector<4x2x1x128xf32>
    %807 = arith.addf %799, %806 : vector<4x2x1x128xf32>
    %808 = vector.shape_cast %27 : vector<4x1x128xf32> to vector<4x1x1x128xf32>
    %809 = vector.shape_cast %69 : vector<2x1x128xf32> to vector<1x2x1x128xf32>
    %810 = vector.broadcast %808 : vector<4x1x1x128xf32> to vector<4x2x1x128xf32>
    %811 = vector.broadcast %809 : vector<1x2x1x128xf32> to vector<4x2x1x128xf32>
    %812 = arith.mulf %810, %811 : vector<4x2x1x128xf32>
    %cst_270 = arith.constant 0.408248305 : f32
    %813 = vector.broadcast %cst_270 : f32 to vector<4x2x1x128xf32>
    %814 = arith.mulf %813, %812 : vector<4x2x1x128xf32>
    %815 = arith.addf %807, %814 : vector<4x2x1x128xf32>
    %816 = vector.shape_cast %39 : vector<4x1x128xf32> to vector<4x1x1x128xf32>
    %817 = vector.shape_cast %58 : vector<2x1x128xf32> to vector<1x2x1x128xf32>
    %818 = vector.broadcast %816 : vector<4x1x1x128xf32> to vector<4x2x1x128xf32>
    %819 = vector.broadcast %817 : vector<1x2x1x128xf32> to vector<4x2x1x128xf32>
    %820 = arith.mulf %818, %819 : vector<4x2x1x128xf32>
    %cst_271 = arith.constant -0.408248305 : f32
    %821 = vector.broadcast %cst_271 : f32 to vector<4x2x1x128xf32>
    %822 = arith.mulf %821, %820 : vector<4x2x1x128xf32>
    %823 = arith.addf %815, %822 : vector<4x2x1x128xf32>
    %824 = vector.shape_cast %27 : vector<4x1x128xf32> to vector<4x1x1x128xf32>
    %825 = vector.shape_cast %58 : vector<2x1x128xf32> to vector<1x2x1x128xf32>
    %826 = vector.broadcast %824 : vector<4x1x1x128xf32> to vector<4x2x1x128xf32>
    %827 = vector.broadcast %825 : vector<1x2x1x128xf32> to vector<4x2x1x128xf32>
    %828 = arith.mulf %826, %827 : vector<4x2x1x128xf32>
    %cst_272 = arith.constant 0.816496611 : f32
    %829 = vector.broadcast %cst_272 : f32 to vector<4x2x1x128xf32>
    %830 = arith.mulf %829, %828 : vector<4x2x1x128xf32>
    %831 = arith.addf %792, %830 : vector<4x2x1x128xf32>
    %832 = vector.shape_cast %741 : vector<4x2x1x128xf32> to vector<8x1x128xf32>
    %c0_273 = arith.constant 0 : index
    %c22 = arith.constant 22 : index
    %c0_274 = arith.constant 0 : index
    %c0_275 = arith.constant 0 : index
    %833 = vector.load %arg9[%c0_273, %c22, %c0_274, %c0_275] : memref<5x48x1x128xf32, #tpu.memory_space<vmem>>, vector<1x8x1x128xf32>
    %834 = vector.shape_cast %833 : vector<1x8x1x128xf32> to vector<8x1x128xf32>
    %835 = vector.shape_cast %832 : vector<8x1x128xf32> to vector<1x8x1x128xf32>
    tpu.vector_store %arg9[%c0_273, %c22, %c0_274, %c0_275], %835 {strides = array<i32>} : memref<5x48x1x128xf32, #tpu.memory_space<vmem>>, vector<1x8x1x128xf32>,
    %836 = vector.shape_cast %772 : vector<4x2x1x128xf32> to vector<8x1x128xf32>
    %c1_276 = arith.constant 1 : index
    %c22_277 = arith.constant 22 : index
    %c0_278 = arith.constant 0 : index
    %c0_279 = arith.constant 0 : index
    %837 = vector.load %arg9[%c1_276, %c22_277, %c0_278, %c0_279] : memref<5x48x1x128xf32, #tpu.memory_space<vmem>>, vector<1x8x1x128xf32>
    %838 = vector.shape_cast %837 : vector<1x8x1x128xf32> to vector<8x1x128xf32>
    %839 = vector.shape_cast %836 : vector<8x1x128xf32> to vector<1x8x1x128xf32>
    tpu.vector_store %arg9[%c1_276, %c22_277, %c0_278, %c0_279], %839 {strides = array<i32>} : memref<5x48x1x128xf32, #tpu.memory_space<vmem>>, vector<1x8x1x128xf32>,
    %840 = vector.shape_cast %789 : vector<4x2x1x128xf32> to vector<8x1x128xf32>
    %c2_280 = arith.constant 2 : index
    %c22_281 = arith.constant 22 : index
    %c0_282 = arith.constant 0 : index
    %c0_283 = arith.constant 0 : index
    %841 = vector.load %arg9[%c2_280, %c22_281, %c0_282, %c0_283] : memref<5x48x1x128xf32, #tpu.memory_space<vmem>>, vector<1x8x1x128xf32>
    %842 = vector.shape_cast %841 : vector<1x8x1x128xf32> to vector<8x1x128xf32>
    %843 = vector.shape_cast %840 : vector<8x1x128xf32> to vector<1x8x1x128xf32>
    tpu.vector_store %arg9[%c2_280, %c22_281, %c0_282, %c0_283], %843 {strides = array<i32>} : memref<5x48x1x128xf32, #tpu.memory_space<vmem>>, vector<1x8x1x128xf32>,
    %844 = vector.shape_cast %823 : vector<4x2x1x128xf32> to vector<8x1x128xf32>
    %c3_284 = arith.constant 3 : index
    %c22_285 = arith.constant 22 : index
    %c0_286 = arith.constant 0 : index
    %c0_287 = arith.constant 0 : index
    %845 = vector.load %arg9[%c3_284, %c22_285, %c0_286, %c0_287] : memref<5x48x1x128xf32, #tpu.memory_space<vmem>>, vector<1x8x1x128xf32>
    %846 = vector.shape_cast %845 : vector<1x8x1x128xf32> to vector<8x1x128xf32>
    %847 = vector.shape_cast %844 : vector<8x1x128xf32> to vector<1x8x1x128xf32>
    tpu.vector_store %arg9[%c3_284, %c22_285, %c0_286, %c0_287], %847 {strides = array<i32>} : memref<5x48x1x128xf32, #tpu.memory_space<vmem>>, vector<1x8x1x128xf32>,
    %848 = vector.shape_cast %831 : vector<4x2x1x128xf32> to vector<8x1x128xf32>
    %c4_288 = arith.constant 4 : index
    %c22_289 = arith.constant 22 : index
    %c0_290 = arith.constant 0 : index
    %c0_291 = arith.constant 0 : index
    %849 = vector.load %arg9[%c4_288, %c22_289, %c0_290, %c0_291] : memref<5x48x1x128xf32, #tpu.memory_space<vmem>>, vector<1x8x1x128xf32>
    %850 = vector.shape_cast %849 : vector<1x8x1x128xf32> to vector<8x1x128xf32>
    %851 = vector.shape_cast %848 : vector<8x1x128xf32> to vector<1x8x1x128xf32>
    tpu.vector_store %arg9[%c4_288, %c22_289, %c0_290, %c0_291], %851 {strides = array<i32>} : memref<5x48x1x128xf32, #tpu.memory_space<vmem>>, vector<1x8x1x128xf32>,
    %852 = vector.shape_cast %55 : vector<2x1x128xf32> to vector<2x1x1x128xf32>
    %853 = vector.shape_cast %4 : vector<3x1x128xf32> to vector<1x3x1x128xf32>
    %854 = vector.broadcast %852 : vector<2x1x1x128xf32> to vector<2x3x1x128xf32>
    %855 = vector.broadcast %853 : vector<1x3x1x128xf32> to vector<2x3x1x128xf32>
    %856 = arith.mulf %854, %855 : vector<2x3x1x128xf32>
    %cst_292 = arith.constant 1.000000e+00 : f32
    %857 = vector.broadcast %cst_292 : f32 to vector<2x3x1x128xf32>
    %858 = arith.mulf %857, %856 : vector<2x3x1x128xf32>
    %859 = vector.shape_cast %66 : vector<2x1x128xf32> to vector<2x1x1x128xf32>
    %860 = vector.shape_cast %4 : vector<3x1x128xf32> to vector<1x3x1x128xf32>
    %861 = vector.broadcast %859 : vector<2x1x1x128xf32> to vector<2x3x1x128xf32>
    %862 = vector.broadcast %860 : vector<1x3x1x128xf32> to vector<2x3x1x128xf32>
    %863 = arith.mulf %861, %862 : vector<2x3x1x128xf32>
    %cst_293 = arith.constant 1.000000e+00 : f32
    %864 = vector.broadcast %cst_293 : f32 to vector<2x3x1x128xf32>
    %865 = arith.mulf %864, %863 : vector<2x3x1x128xf32>
    %866 = vector.shape_cast %78 : vector<2x1x128xf32> to vector<2x1x1x128xf32>
    %867 = vector.shape_cast %4 : vector<3x1x128xf32> to vector<1x3x1x128xf32>
    %868 = vector.broadcast %866 : vector<2x1x1x128xf32> to vector<2x3x1x128xf32>
    %869 = vector.broadcast %867 : vector<1x3x1x128xf32> to vector<2x3x1x128xf32>
    %870 = arith.mulf %868, %869 : vector<2x3x1x128xf32>
    %cst_294 = arith.constant 1.000000e+00 : f32
    %871 = vector.broadcast %cst_294 : f32 to vector<2x3x1x128xf32>
    %872 = arith.mulf %871, %870 : vector<2x3x1x128xf32>
    %873 = vector.shape_cast %90 : vector<2x1x128xf32> to vector<2x1x1x128xf32>
    %874 = vector.shape_cast %4 : vector<3x1x128xf32> to vector<1x3x1x128xf32>
    %875 = vector.broadcast %873 : vector<2x1x1x128xf32> to vector<2x3x1x128xf32>
    %876 = vector.broadcast %874 : vector<1x3x1x128xf32> to vector<2x3x1x128xf32>
    %877 = arith.mulf %875, %876 : vector<2x3x1x128xf32>
    %cst_295 = arith.constant 1.000000e+00 : f32
    %878 = vector.broadcast %cst_295 : f32 to vector<2x3x1x128xf32>
    %879 = arith.mulf %878, %877 : vector<2x3x1x128xf32>
    %880 = vector.shape_cast %102 : vector<2x1x128xf32> to vector<2x1x1x128xf32>
    %881 = vector.shape_cast %4 : vector<3x1x128xf32> to vector<1x3x1x128xf32>
    %882 = vector.broadcast %880 : vector<2x1x1x128xf32> to vector<2x3x1x128xf32>
    %883 = vector.broadcast %881 : vector<1x3x1x128xf32> to vector<2x3x1x128xf32>
    %884 = arith.mulf %882, %883 : vector<2x3x1x128xf32>
    %cst_296 = arith.constant 1.000000e+00 : f32
    %885 = vector.broadcast %cst_296 : f32 to vector<2x3x1x128xf32>
    %886 = arith.mulf %885, %884 : vector<2x3x1x128xf32>
    %887 = vector.shape_cast %858 : vector<2x3x1x128xf32> to vector<6x1x128xf32>
    %c0_297 = arith.constant 0 : index
    %c30 = arith.constant 30 : index
    %c0_298 = arith.constant 0 : index
    %c0_299 = arith.constant 0 : index
    %888 = vector.load %arg9[%c0_297, %c30, %c0_298, %c0_299] : memref<5x48x1x128xf32, #tpu.memory_space<vmem>>, vector<1x6x1x128xf32>
    %889 = vector.shape_cast %888 : vector<1x6x1x128xf32> to vector<6x1x128xf32>
    %890 = vector.shape_cast %887 : vector<6x1x128xf32> to vector<1x6x1x128xf32>
    tpu.vector_store %arg9[%c0_297, %c30, %c0_298, %c0_299], %890 {strides = array<i32>} : memref<5x48x1x128xf32, #tpu.memory_space<vmem>>, vector<1x6x1x128xf32>,
    %891 = vector.shape_cast %865 : vector<2x3x1x128xf32> to vector<6x1x128xf32>
    %c1_300 = arith.constant 1 : index
    %c30_301 = arith.constant 30 : index
    %c0_302 = arith.constant 0 : index
    %c0_303 = arith.constant 0 : index
    %892 = vector.load %arg9[%c1_300, %c30_301, %c0_302, %c0_303] : memref<5x48x1x128xf32, #tpu.memory_space<vmem>>, vector<1x6x1x128xf32>
    %893 = vector.shape_cast %892 : vector<1x6x1x128xf32> to vector<6x1x128xf32>
    %894 = vector.shape_cast %891 : vector<6x1x128xf32> to vector<1x6x1x128xf32>
    tpu.vector_store %arg9[%c1_300, %c30_301, %c0_302, %c0_303], %894 {strides = array<i32>} : memref<5x48x1x128xf32, #tpu.memory_space<vmem>>, vector<1x6x1x128xf32>,
    %895 = vector.shape_cast %872 : vector<2x3x1x128xf32> to vector<6x1x128xf32>
    %c2_304 = arith.constant 2 : index
    %c30_305 = arith.constant 30 : index
    %c0_306 = arith.constant 0 : index
    %c0_307 = arith.constant 0 : index
    %896 = vector.load %arg9[%c2_304, %c30_305, %c0_306, %c0_307] : memref<5x48x1x128xf32, #tpu.memory_space<vmem>>, vector<1x6x1x128xf32>
    %897 = vector.shape_cast %896 : vector<1x6x1x128xf32> to vector<6x1x128xf32>
    %898 = vector.shape_cast %895 : vector<6x1x128xf32> to vector<1x6x1x128xf32>
    tpu.vector_store %arg9[%c2_304, %c30_305, %c0_306, %c0_307], %898 {strides = array<i32>} : memref<5x48x1x128xf32, #tpu.memory_space<vmem>>, vector<1x6x1x128xf32>,
    %899 = vector.shape_cast %879 : vector<2x3x1x128xf32> to vector<6x1x128xf32>
    %c3_308 = arith.constant 3 : index
    %c30_309 = arith.constant 30 : index
    %c0_310 = arith.constant 0 : index
    %c0_311 = arith.constant 0 : index
    %900 = vector.load %arg9[%c3_308, %c30_309, %c0_310, %c0_311] : memref<5x48x1x128xf32, #tpu.memory_space<vmem>>, vector<1x6x1x128xf32>
    %901 = vector.shape_cast %900 : vector<1x6x1x128xf32> to vector<6x1x128xf32>
    %902 = vector.shape_cast %899 : vector<6x1x128xf32> to vector<1x6x1x128xf32>
    tpu.vector_store %arg9[%c3_308, %c30_309, %c0_310, %c0_311], %902 {strides = array<i32>} : memref<5x48x1x128xf32, #tpu.memory_space<vmem>>, vector<1x6x1x128xf32>,
    %903 = vector.shape_cast %886 : vector<2x3x1x128xf32> to vector<6x1x128xf32>
    %c4_312 = arith.constant 4 : index
    %c30_313 = arith.constant 30 : index
    %c0_314 = arith.constant 0 : index
    %c0_315 = arith.constant 0 : index
    %904 = vector.load %arg9[%c4_312, %c30_313, %c0_314, %c0_315] : memref<5x48x1x128xf32, #tpu.memory_space<vmem>>, vector<1x6x1x128xf32>
    %905 = vector.shape_cast %904 : vector<1x6x1x128xf32> to vector<6x1x128xf32>
    %906 = vector.shape_cast %903 : vector<6x1x128xf32> to vector<1x6x1x128xf32>
    tpu.vector_store %arg9[%c4_312, %c30_313, %c0_314, %c0_315], %906 {strides = array<i32>} : memref<5x48x1x128xf32, #tpu.memory_space<vmem>>, vector<1x6x1x128xf32>,
    %907 = vector.shape_cast %66 : vector<2x1x128xf32> to vector<2x1x1x128xf32>
    %908 = vector.shape_cast %19 : vector<4x1x128xf32> to vector<1x4x1x128xf32>
    %909 = vector.broadcast %907 : vector<2x1x1x128xf32> to vector<2x4x1x128xf32>
    %910 = vector.broadcast %908 : vector<1x4x1x128xf32> to vector<2x4x1x128xf32>
    %911 = arith.mulf %909, %910 : vector<2x4x1x128xf32>
    %cst_316 = arith.constant 0.408248305 : f32
    %912 = vector.broadcast %cst_316 : f32 to vector<2x4x1x128xf32>
    %913 = arith.mulf %912, %911 : vector<2x4x1x128xf32>
    %914 = vector.shape_cast %90 : vector<2x1x128xf32> to vector<2x1x1x128xf32>
    %915 = vector.shape_cast %42 : vector<4x1x128xf32> to vector<1x4x1x128xf32>
    %916 = vector.broadcast %914 : vector<2x1x1x128xf32> to vector<2x4x1x128xf32>
    %917 = vector.broadcast %915 : vector<1x4x1x128xf32> to vector<2x4x1x128xf32>
    %918 = arith.mulf %916, %917 : vector<2x4x1x128xf32>
    %cst_317 = arith.constant -0.408248305 : f32
    %919 = vector.broadcast %cst_317 : f32 to vector<2x4x1x128xf32>
    %920 = arith.mulf %919, %918 : vector<2x4x1x128xf32>
    %921 = arith.addf %913, %920 : vector<2x4x1x128xf32>
    %922 = vector.shape_cast %102 : vector<2x1x128xf32> to vector<2x1x1x128xf32>
    %923 = vector.shape_cast %30 : vector<4x1x128xf32> to vector<1x4x1x128xf32>
    %924 = vector.broadcast %922 : vector<2x1x1x128xf32> to vector<2x4x1x128xf32>
    %925 = vector.broadcast %923 : vector<1x4x1x128xf32> to vector<2x4x1x128xf32>
    %926 = arith.mulf %924, %925 : vector<2x4x1x128xf32>
    %cst_318 = arith.constant 0.816496611 : f32
    %927 = vector.broadcast %cst_318 : f32 to vector<2x4x1x128xf32>
    %928 = arith.mulf %927, %926 : vector<2x4x1x128xf32>
    %929 = arith.addf %921, %928 : vector<2x4x1x128xf32>
    %930 = vector.shape_cast %55 : vector<2x1x128xf32> to vector<2x1x1x128xf32>
    %931 = vector.shape_cast %19 : vector<4x1x128xf32> to vector<1x4x1x128xf32>
    %932 = vector.broadcast %930 : vector<2x1x1x128xf32> to vector<2x4x1x128xf32>
    %933 = vector.broadcast %931 : vector<1x4x1x128xf32> to vector<2x4x1x128xf32>
    %934 = arith.mulf %932, %933 : vector<2x4x1x128xf32>
    %cst_319 = arith.constant -0.408248305 : f32
    %935 = vector.broadcast %cst_319 : f32 to vector<2x4x1x128xf32>
    %936 = arith.mulf %935, %934 : vector<2x4x1x128xf32>
    %937 = vector.shape_cast %78 : vector<2x1x128xf32> to vector<2x1x1x128xf32>
    %938 = vector.shape_cast %42 : vector<4x1x128xf32> to vector<1x4x1x128xf32>
    %939 = vector.broadcast %937 : vector<2x1x1x128xf32> to vector<2x4x1x128xf32>
    %940 = vector.broadcast %938 : vector<1x4x1x128xf32> to vector<2x4x1x128xf32>
    %941 = arith.mulf %939, %940 : vector<2x4x1x128xf32>
    %cst_320 = arith.constant -0.707106769 : f32
    %942 = vector.broadcast %cst_320 : f32 to vector<2x4x1x128xf32>
    %943 = arith.mulf %942, %941 : vector<2x4x1x128xf32>
    %944 = arith.addf %936, %943 : vector<2x4x1x128xf32>
    %945 = vector.shape_cast %90 : vector<2x1x128xf32> to vector<2x1x1x128xf32>
    %946 = vector.shape_cast %30 : vector<4x1x128xf32> to vector<1x4x1x128xf32>
    %947 = vector.broadcast %945 : vector<2x1x1x128xf32> to vector<2x4x1x128xf32>
    %948 = vector.broadcast %946 : vector<1x4x1x128xf32> to vector<2x4x1x128xf32>
    %949 = arith.mulf %947, %948 : vector<2x4x1x128xf32>
    %cst_321 = arith.constant 0.408248305 : f32
    %950 = vector.broadcast %cst_321 : f32 to vector<2x4x1x128xf32>
    %951 = arith.mulf %950, %949 : vector<2x4x1x128xf32>
    %952 = arith.addf %944, %951 : vector<2x4x1x128xf32>
    %953 = vector.shape_cast %102 : vector<2x1x128xf32> to vector<2x1x1x128xf32>
    %954 = vector.shape_cast %42 : vector<4x1x128xf32> to vector<1x4x1x128xf32>
    %955 = vector.broadcast %953 : vector<2x1x1x128xf32> to vector<2x4x1x128xf32>
    %956 = vector.broadcast %954 : vector<1x4x1x128xf32> to vector<2x4x1x128xf32>
    %957 = arith.mulf %955, %956 : vector<2x4x1x128xf32>
    %cst_322 = arith.constant -0.408248305 : f32
    %958 = vector.broadcast %cst_322 : f32 to vector<2x4x1x128xf32>
    %959 = arith.mulf %958, %957 : vector<2x4x1x128xf32>
    %960 = arith.addf %952, %959 : vector<2x4x1x128xf32>
    %961 = vector.shape_cast %66 : vector<2x1x128xf32> to vector<2x1x1x128xf32>
    %962 = vector.shape_cast %42 : vector<4x1x128xf32> to vector<1x4x1x128xf32>
    %963 = vector.broadcast %961 : vector<2x1x1x128xf32> to vector<2x4x1x128xf32>
    %964 = vector.broadcast %962 : vector<1x4x1x128xf32> to vector<2x4x1x128xf32>
    %965 = arith.mulf %963, %964 : vector<2x4x1x128xf32>
    %cst_323 = arith.constant 0.707106769 : f32
    %966 = vector.broadcast %cst_323 : f32 to vector<2x4x1x128xf32>
    %967 = arith.mulf %966, %965 : vector<2x4x1x128xf32>
    %cst_324 = arith.constant 0.408248305 : f32
    %968 = vector.broadcast %cst_324 : f32 to vector<2x4x1x128xf32>
    %969 = arith.mulf %968, %965 : vector<2x4x1x128xf32>
    %970 = vector.shape_cast %90 : vector<2x1x128xf32> to vector<2x1x1x128xf32>
    %971 = vector.shape_cast %19 : vector<4x1x128xf32> to vector<1x4x1x128xf32>
    %972 = vector.broadcast %970 : vector<2x1x1x128xf32> to vector<2x4x1x128xf32>
    %973 = vector.broadcast %971 : vector<1x4x1x128xf32> to vector<2x4x1x128xf32>
    %974 = arith.mulf %972, %973 : vector<2x4x1x128xf32>
    %cst_325 = arith.constant -0.707106769 : f32
    %975 = vector.broadcast %cst_325 : f32 to vector<2x4x1x128xf32>
    %976 = arith.mulf %975, %974 : vector<2x4x1x128xf32>
    %977 = arith.addf %967, %976 : vector<2x4x1x128xf32>
    %cst_326 = arith.constant 0.408248305 : f32
    %978 = vector.broadcast %cst_326 : f32 to vector<2x4x1x128xf32>
    %979 = arith.mulf %978, %974 : vector<2x4x1x128xf32>
    %980 = arith.addf %969, %979 : vector<2x4x1x128xf32>
    %981 = vector.shape_cast %55 : vector<2x1x128xf32> to vector<2x1x1x128xf32>
    %982 = vector.shape_cast %42 : vector<4x1x128xf32> to vector<1x4x1x128xf32>
    %983 = vector.broadcast %981 : vector<2x1x1x128xf32> to vector<2x4x1x128xf32>
    %984 = vector.broadcast %982 : vector<1x4x1x128xf32> to vector<2x4x1x128xf32>
    %985 = arith.mulf %983, %984 : vector<2x4x1x128xf32>
    %cst_327 = arith.constant 0.408248305 : f32
    %986 = vector.broadcast %cst_327 : f32 to vector<2x4x1x128xf32>
    %987 = arith.mulf %986, %985 : vector<2x4x1x128xf32>
    %988 = vector.shape_cast %66 : vector<2x1x128xf32> to vector<2x1x1x128xf32>
    %989 = vector.shape_cast %30 : vector<4x1x128xf32> to vector<1x4x1x128xf32>
    %990 = vector.broadcast %988 : vector<2x1x1x128xf32> to vector<2x4x1x128xf32>
    %991 = vector.broadcast %989 : vector<1x4x1x128xf32> to vector<2x4x1x128xf32>
    %992 = arith.mulf %990, %991 : vector<2x4x1x128xf32>
    %cst_328 = arith.constant -0.408248305 : f32
    %993 = vector.broadcast %cst_328 : f32 to vector<2x4x1x128xf32>
    %994 = arith.mulf %993, %992 : vector<2x4x1x128xf32>
    %995 = arith.addf %987, %994 : vector<2x4x1x128xf32>
    %996 = vector.shape_cast %78 : vector<2x1x128xf32> to vector<2x1x1x128xf32>
    %997 = vector.shape_cast %19 : vector<4x1x128xf32> to vector<1x4x1x128xf32>
    %998 = vector.broadcast %996 : vector<2x1x1x128xf32> to vector<2x4x1x128xf32>
    %999 = vector.broadcast %997 : vector<1x4x1x128xf32> to vector<2x4x1x128xf32>
    %1000 = arith.mulf %998, %999 : vector<2x4x1x128xf32>
    %cst_329 = arith.constant 0.707106769 : f32
    %1001 = vector.broadcast %cst_329 : f32 to vector<2x4x1x128xf32>
    %1002 = arith.mulf %1001, %1000 : vector<2x4x1x128xf32>
    %1003 = arith.addf %995, %1002 : vector<2x4x1x128xf32>
    %1004 = vector.shape_cast %102 : vector<2x1x128xf32> to vector<2x1x1x128xf32>
    %1005 = vector.shape_cast %19 : vector<4x1x128xf32> to vector<1x4x1x128xf32>
    %1006 = vector.broadcast %1004 : vector<2x1x1x128xf32> to vector<2x4x1x128xf32>
    %1007 = vector.broadcast %1005 : vector<1x4x1x128xf32> to vector<2x4x1x128xf32>
    %1008 = arith.mulf %1006, %1007 : vector<2x4x1x128xf32>
    %cst_330 = arith.constant -0.408248305 : f32
    %1009 = vector.broadcast %cst_330 : f32 to vector<2x4x1x128xf32>
    %1010 = arith.mulf %1009, %1008 : vector<2x4x1x128xf32>
    %1011 = arith.addf %1003, %1010 : vector<2x4x1x128xf32>
    %1012 = vector.shape_cast %55 : vector<2x1x128xf32> to vector<2x1x1x128xf32>
    %1013 = vector.shape_cast %30 : vector<4x1x128xf32> to vector<1x4x1x128xf32>
    %1014 = vector.broadcast %1012 : vector<2x1x1x128xf32> to vector<2x4x1x128xf32>
    %1015 = vector.broadcast %1013 : vector<1x4x1x128xf32> to vector<2x4x1x128xf32>
    %1016 = arith.mulf %1014, %1015 : vector<2x4x1x128xf32>
    %cst_331 = arith.constant -0.816496611 : f32
    %1017 = vector.broadcast %cst_331 : f32 to vector<2x4x1x128xf32>
    %1018 = arith.mulf %1017, %1016 : vector<2x4x1x128xf32>
    %1019 = arith.addf %980, %1018 : vector<2x4x1x128xf32>
    %1020 = vector.shape_cast %929 : vector<2x4x1x128xf32> to vector<8x1x128xf32>
    %c0_332 = arith.constant 0 : index
    %c36 = arith.constant 36 : index
    %c0_333 = arith.constant 0 : index
    %c0_334 = arith.constant 0 : index
    %1021 = vector.load %arg9[%c0_332, %c36, %c0_333, %c0_334] : memref<5x48x1x128xf32, #tpu.memory_space<vmem>>, vector<1x8x1x128xf32>
    %1022 = vector.shape_cast %1021 : vector<1x8x1x128xf32> to vector<8x1x128xf32>
    %1023 = vector.shape_cast %1020 : vector<8x1x128xf32> to vector<1x8x1x128xf32>
    tpu.vector_store %arg9[%c0_332, %c36, %c0_333, %c0_334], %1023 {strides = array<i32>} : memref<5x48x1x128xf32, #tpu.memory_space<vmem>>, vector<1x8x1x128xf32>,
    %1024 = vector.shape_cast %960 : vector<2x4x1x128xf32> to vector<8x1x128xf32>
    %c1_335 = arith.constant 1 : index
    %c36_336 = arith.constant 36 : index
    %c0_337 = arith.constant 0 : index
    %c0_338 = arith.constant 0 : index
    %1025 = vector.load %arg9[%c1_335, %c36_336, %c0_337, %c0_338] : memref<5x48x1x128xf32, #tpu.memory_space<vmem>>, vector<1x8x1x128xf32>
    %1026 = vector.shape_cast %1025 : vector<1x8x1x128xf32> to vector<8x1x128xf32>
    %1027 = vector.shape_cast %1024 : vector<8x1x128xf32> to vector<1x8x1x128xf32>
    tpu.vector_store %arg9[%c1_335, %c36_336, %c0_337, %c0_338], %1027 {strides = array<i32>} : memref<5x48x1x128xf32, #tpu.memory_space<vmem>>, vector<1x8x1x128xf32>,
    %1028 = vector.shape_cast %977 : vector<2x4x1x128xf32> to vector<8x1x128xf32>
    %c2_339 = arith.constant 2 : index
    %c36_340 = arith.constant 36 : index
    %c0_341 = arith.constant 0 : index
    %c0_342 = arith.constant 0 : index
    %1029 = vector.load %arg9[%c2_339, %c36_340, %c0_341, %c0_342] : memref<5x48x1x128xf32, #tpu.memory_space<vmem>>, vector<1x8x1x128xf32>
    %1030 = vector.shape_cast %1029 : vector<1x8x1x128xf32> to vector<8x1x128xf32>
    %1031 = vector.shape_cast %1028 : vector<8x1x128xf32> to vector<1x8x1x128xf32>
    tpu.vector_store %arg9[%c2_339, %c36_340, %c0_341, %c0_342], %1031 {strides = array<i32>} : memref<5x48x1x128xf32, #tpu.memory_space<vmem>>, vector<1x8x1x128xf32>,
    %1032 = vector.shape_cast %1011 : vector<2x4x1x128xf32> to vector<8x1x128xf32>
    %c3_343 = arith.constant 3 : index
    %c36_344 = arith.constant 36 : index
    %c0_345 = arith.constant 0 : index
    %c0_346 = arith.constant 0 : index
    %1033 = vector.load %arg9[%c3_343, %c36_344, %c0_345, %c0_346] : memref<5x48x1x128xf32, #tpu.memory_space<vmem>>, vector<1x8x1x128xf32>
    %1034 = vector.shape_cast %1033 : vector<1x8x1x128xf32> to vector<8x1x128xf32>
    %1035 = vector.shape_cast %1032 : vector<8x1x128xf32> to vector<1x8x1x128xf32>
    tpu.vector_store %arg9[%c3_343, %c36_344, %c0_345, %c0_346], %1035 {strides = array<i32>} : memref<5x48x1x128xf32, #tpu.memory_space<vmem>>, vector<1x8x1x128xf32>,
    %1036 = vector.shape_cast %1019 : vector<2x4x1x128xf32> to vector<8x1x128xf32>
    %c4_347 = arith.constant 4 : index
    %c36_348 = arith.constant 36 : index
    %c0_349 = arith.constant 0 : index
    %c0_350 = arith.constant 0 : index
    %1037 = vector.load %arg9[%c4_347, %c36_348, %c0_349, %c0_350] : memref<5x48x1x128xf32, #tpu.memory_space<vmem>>, vector<1x8x1x128xf32>
    %1038 = vector.shape_cast %1037 : vector<1x8x1x128xf32> to vector<8x1x128xf32>
    %1039 = vector.shape_cast %1036 : vector<8x1x128xf32> to vector<1x8x1x128xf32>
    tpu.vector_store %arg9[%c4_347, %c36_348, %c0_349, %c0_350], %1039 {strides = array<i32>} : memref<5x48x1x128xf32, #tpu.memory_space<vmem>>, vector<1x8x1x128xf32>,
    %1040 = vector.shape_cast %55 : vector<2x1x128xf32> to vector<2x1x1x128xf32>
    %1041 = vector.shape_cast %81 : vector<2x1x128xf32> to vector<1x2x1x128xf32>
    %1042 = vector.broadcast %1040 : vector<2x1x1x128xf32> to vector<2x2x1x128xf32>
    %1043 = vector.broadcast %1041 : vector<1x2x1x128xf32> to vector<2x2x1x128xf32>
    %1044 = arith.mulf %1042, %1043 : vector<2x2x1x128xf32>
    %cst_351 = arith.constant 0.534522474 : f32
    %1045 = vector.broadcast %cst_351 : f32 to vector<2x2x1x128xf32>
    %1046 = arith.mulf %1045, %1044 : vector<2x2x1x128xf32>
    %1047 = vector.shape_cast %66 : vector<2x1x128xf32> to vector<2x1x1x128xf32>
    %1048 = vector.shape_cast %93 : vector<2x1x128xf32> to vector<1x2x1x128xf32>
    %1049 = vector.broadcast %1047 : vector<2x1x1x128xf32> to vector<2x2x1x128xf32>
    %1050 = vector.broadcast %1048 : vector<1x2x1x128xf32> to vector<2x2x1x128xf32>
    %1051 = arith.mulf %1049, %1050 : vector<2x2x1x128xf32>
    %cst_352 = arith.constant -0.462910056 : f32
    %1052 = vector.broadcast %cst_352 : f32 to vector<2x2x1x128xf32>
    %1053 = arith.mulf %1052, %1051 : vector<2x2x1x128xf32>
    %1054 = arith.addf %1046, %1053 : vector<2x2x1x128xf32>
    %1055 = vector.shape_cast %78 : vector<2x1x128xf32> to vector<2x1x1x128xf32>
    %1056 = vector.shape_cast %58 : vector<2x1x128xf32> to vector<1x2x1x128xf32>
    %1057 = vector.broadcast %1055 : vector<2x1x1x128xf32> to vector<2x2x1x128xf32>
    %1058 = vector.broadcast %1056 : vector<1x2x1x128xf32> to vector<2x2x1x128xf32>
    %1059 = arith.mulf %1057, %1058 : vector<2x2x1x128xf32>
    %cst_353 = arith.constant 0.534522474 : f32
    %1060 = vector.broadcast %cst_353 : f32 to vector<2x2x1x128xf32>
    %1061 = arith.mulf %1060, %1059 : vector<2x2x1x128xf32>
    %1062 = arith.addf %1054, %1061 : vector<2x2x1x128xf32>
    %1063 = vector.shape_cast %90 : vector<2x1x128xf32> to vector<2x1x1x128xf32>
    %1064 = vector.shape_cast %69 : vector<2x1x128xf32> to vector<1x2x1x128xf32>
    %1065 = vector.broadcast %1063 : vector<2x1x1x128xf32> to vector<2x2x1x128xf32>
    %1066 = vector.broadcast %1064 : vector<1x2x1x128xf32> to vector<2x2x1x128xf32>
    %1067 = arith.mulf %1065, %1066 : vector<2x2x1x128xf32>
    %cst_354 = arith.constant -0.462910056 : f32
    %1068 = vector.broadcast %cst_354 : f32 to vector<2x2x1x128xf32>
    %1069 = arith.mulf %1068, %1067 : vector<2x2x1x128xf32>
    %1070 = arith.addf %1062, %1069 : vector<2x2x1x128xf32>
    %1071 = vector.shape_cast %55 : vector<2x1x128xf32> to vector<2x1x1x128xf32>
    %1072 = vector.shape_cast %93 : vector<2x1x128xf32> to vector<1x2x1x128xf32>
    %1073 = vector.broadcast %1071 : vector<2x1x1x128xf32> to vector<2x2x1x128xf32>
    %1074 = vector.broadcast %1072 : vector<1x2x1x128xf32> to vector<2x2x1x128xf32>
    %1075 = arith.mulf %1073, %1074 : vector<2x2x1x128xf32>
    %cst_355 = arith.constant -0.462910056 : f32
    %1076 = vector.broadcast %cst_355 : f32 to vector<2x2x1x128xf32>
    %1077 = arith.mulf %1076, %1075 : vector<2x2x1x128xf32>
    %1078 = vector.shape_cast %66 : vector<2x1x128xf32> to vector<2x1x1x128xf32>
    %1079 = vector.shape_cast %81 : vector<2x1x128xf32> to vector<1x2x1x128xf32>
    %1080 = vector.broadcast %1078 : vector<2x1x1x128xf32> to vector<2x2x1x128xf32>
    %1081 = vector.broadcast %1079 : vector<1x2x1x128xf32> to vector<2x2x1x128xf32>
    %1082 = arith.mulf %1080, %1081 : vector<2x2x1x128xf32>
    %cst_356 = arith.constant -0.267261237 : f32
    %1083 = vector.broadcast %cst_356 : f32 to vector<2x2x1x128xf32>
    %1084 = arith.mulf %1083, %1082 : vector<2x2x1x128xf32>
    %1085 = arith.addf %1077, %1084 : vector<2x2x1x128xf32>
    %1086 = vector.shape_cast %66 : vector<2x1x128xf32> to vector<2x1x1x128xf32>
    %1087 = vector.shape_cast %105 : vector<2x1x128xf32> to vector<1x2x1x128xf32>
    %1088 = vector.broadcast %1086 : vector<2x1x1x128xf32> to vector<2x2x1x128xf32>
    %1089 = vector.broadcast %1087 : vector<1x2x1x128xf32> to vector<2x2x1x128xf32>
    %1090 = arith.mulf %1088, %1089 : vector<2x2x1x128xf32>
    %cst_357 = arith.constant 0.462910056 : f32
    %1091 = vector.broadcast %cst_357 : f32 to vector<2x2x1x128xf32>
    %1092 = arith.mulf %1091, %1090 : vector<2x2x1x128xf32>
    %1093 = arith.addf %1085, %1092 : vector<2x2x1x128xf32>
    %1094 = vector.shape_cast %78 : vector<2x1x128xf32> to vector<2x1x1x128xf32>
    %1095 = vector.shape_cast %69 : vector<2x1x128xf32> to vector<1x2x1x128xf32>
    %1096 = vector.broadcast %1094 : vector<2x1x1x128xf32> to vector<2x2x1x128xf32>
    %1097 = vector.broadcast %1095 : vector<1x2x1x128xf32> to vector<2x2x1x128xf32>
    %1098 = arith.mulf %1096, %1097 : vector<2x2x1x128xf32>
    %cst_358 = arith.constant -0.267261237 : f32
    %1099 = vector.broadcast %cst_358 : f32 to vector<2x2x1x128xf32>
    %1100 = arith.mulf %1099, %1098 : vector<2x2x1x128xf32>
    %1101 = arith.addf %1093, %1100 : vector<2x2x1x128xf32>
    %1102 = vector.shape_cast %90 : vector<2x1x128xf32> to vector<2x1x1x128xf32>
    %1103 = vector.shape_cast %58 : vector<2x1x128xf32> to vector<1x2x1x128xf32>
    %1104 = vector.broadcast %1102 : vector<2x1x1x128xf32> to vector<2x2x1x128xf32>
    %1105 = vector.broadcast %1103 : vector<1x2x1x128xf32> to vector<2x2x1x128xf32>
    %1106 = arith.mulf %1104, %1105 : vector<2x2x1x128xf32>
    %cst_359 = arith.constant -0.462910056 : f32
    %1107 = vector.broadcast %cst_359 : f32 to vector<2x2x1x128xf32>
    %1108 = arith.mulf %1107, %1106 : vector<2x2x1x128xf32>
    %1109 = arith.addf %1101, %1108 : vector<2x2x1x128xf32>
    %1110 = vector.shape_cast %102 : vector<2x1x128xf32> to vector<2x1x1x128xf32>
    %1111 = vector.shape_cast %69 : vector<2x1x128xf32> to vector<1x2x1x128xf32>
    %1112 = vector.broadcast %1110 : vector<2x1x1x128xf32> to vector<2x2x1x128xf32>
    %1113 = vector.broadcast %1111 : vector<1x2x1x128xf32> to vector<2x2x1x128xf32>
    %1114 = arith.mulf %1112, %1113 : vector<2x2x1x128xf32>
    %cst_360 = arith.constant 0.462910056 : f32
    %1115 = vector.broadcast %cst_360 : f32 to vector<2x2x1x128xf32>
    %1116 = arith.mulf %1115, %1114 : vector<2x2x1x128xf32>
    %1117 = arith.addf %1109, %1116 : vector<2x2x1x128xf32>
    %1118 = vector.shape_cast %55 : vector<2x1x128xf32> to vector<2x1x1x128xf32>
    %1119 = vector.shape_cast %58 : vector<2x1x128xf32> to vector<1x2x1x128xf32>
    %1120 = vector.broadcast %1118 : vector<2x1x1x128xf32> to vector<2x2x1x128xf32>
    %1121 = vector.broadcast %1119 : vector<1x2x1x128xf32> to vector<2x2x1x128xf32>
    %1122 = arith.mulf %1120, %1121 : vector<2x2x1x128xf32>
    %cst_361 = arith.constant 0.534522474 : f32
    %1123 = vector.broadcast %cst_361 : f32 to vector<2x2x1x128xf32>
    %1124 = arith.mulf %1123, %1122 : vector<2x2x1x128xf32>
    %1125 = vector.shape_cast %66 : vector<2x1x128xf32> to vector<2x1x1x128xf32>
    %1126 = vector.shape_cast %69 : vector<2x1x128xf32> to vector<1x2x1x128xf32>
    %1127 = vector.broadcast %1125 : vector<2x1x1x128xf32> to vector<2x2x1x128xf32>
    %1128 = vector.broadcast %1126 : vector<1x2x1x128xf32> to vector<2x2x1x128xf32>
    %1129 = arith.mulf %1127, %1128 : vector<2x2x1x128xf32>
    %cst_362 = arith.constant -0.267261237 : f32
    %1130 = vector.broadcast %cst_362 : f32 to vector<2x2x1x128xf32>
    %1131 = arith.mulf %1130, %1129 : vector<2x2x1x128xf32>
    %1132 = arith.addf %1124, %1131 : vector<2x2x1x128xf32>
    %cst_363 = arith.constant 0.462910056 : f32
    %1133 = vector.broadcast %cst_363 : f32 to vector<2x2x1x128xf32>
    %1134 = arith.mulf %1133, %1129 : vector<2x2x1x128xf32>
    %1135 = vector.shape_cast %78 : vector<2x1x128xf32> to vector<2x1x1x128xf32>
    %1136 = vector.shape_cast %81 : vector<2x1x128xf32> to vector<1x2x1x128xf32>
    %1137 = vector.broadcast %1135 : vector<2x1x1x128xf32> to vector<2x2x1x128xf32>
    %1138 = vector.broadcast %1136 : vector<1x2x1x128xf32> to vector<2x2x1x128xf32>
    %1139 = arith.mulf %1137, %1138 : vector<2x2x1x128xf32>
    %cst_364 = arith.constant -0.534522474 : f32
    %1140 = vector.broadcast %cst_364 : f32 to vector<2x2x1x128xf32>
    %1141 = arith.mulf %1140, %1139 : vector<2x2x1x128xf32>
    %1142 = arith.addf %1132, %1141 : vector<2x2x1x128xf32>
    %1143 = vector.shape_cast %90 : vector<2x1x128xf32> to vector<2x1x1x128xf32>
    %1144 = vector.shape_cast %93 : vector<2x1x128xf32> to vector<1x2x1x128xf32>
    %1145 = vector.broadcast %1143 : vector<2x1x1x128xf32> to vector<2x2x1x128xf32>
    %1146 = vector.broadcast %1144 : vector<1x2x1x128xf32> to vector<2x2x1x128xf32>
    %1147 = arith.mulf %1145, %1146 : vector<2x2x1x128xf32>
    %cst_365 = arith.constant -0.267261237 : f32
    %1148 = vector.broadcast %cst_365 : f32 to vector<2x2x1x128xf32>
    %1149 = arith.mulf %1148, %1147 : vector<2x2x1x128xf32>
    %1150 = arith.addf %1142, %1149 : vector<2x2x1x128xf32>
    %cst_366 = arith.constant -0.462910056 : f32
    %1151 = vector.broadcast %cst_366 : f32 to vector<2x2x1x128xf32>
    %1152 = arith.mulf %1151, %1147 : vector<2x2x1x128xf32>
    %1153 = arith.addf %1134, %1152 : vector<2x2x1x128xf32>
    %1154 = vector.shape_cast %102 : vector<2x1x128xf32> to vector<2x1x1x128xf32>
    %1155 = vector.shape_cast %105 : vector<2x1x128xf32> to vector<1x2x1x128xf32>
    %1156 = vector.broadcast %1154 : vector<2x1x1x128xf32> to vector<2x2x1x128xf32>
    %1157 = vector.broadcast %1155 : vector<1x2x1x128xf32> to vector<2x2x1x128xf32>
    %1158 = arith.mulf %1156, %1157 : vector<2x2x1x128xf32>
    %cst_367 = arith.constant 0.534522474 : f32
    %1159 = vector.broadcast %cst_367 : f32 to vector<2x2x1x128xf32>
    %1160 = arith.mulf %1159, %1158 : vector<2x2x1x128xf32>
    %1161 = arith.addf %1150, %1160 : vector<2x2x1x128xf32>
    %1162 = vector.shape_cast %55 : vector<2x1x128xf32> to vector<2x1x1x128xf32>
    %1163 = vector.shape_cast %69 : vector<2x1x128xf32> to vector<1x2x1x128xf32>
    %1164 = vector.broadcast %1162 : vector<2x1x1x128xf32> to vector<2x2x1x128xf32>
    %1165 = vector.broadcast %1163 : vector<1x2x1x128xf32> to vector<2x2x1x128xf32>
    %1166 = arith.mulf %1164, %1165 : vector<2x2x1x128xf32>
    %cst_368 = arith.constant -0.462910056 : f32
    %1167 = vector.broadcast %cst_368 : f32 to vector<2x2x1x128xf32>
    %1168 = arith.mulf %1167, %1166 : vector<2x2x1x128xf32>
    %1169 = vector.shape_cast %66 : vector<2x1x128xf32> to vector<2x1x1x128xf32>
    %1170 = vector.shape_cast %58 : vector<2x1x128xf32> to vector<1x2x1x128xf32>
    %1171 = vector.broadcast %1169 : vector<2x1x1x128xf32> to vector<2x2x1x128xf32>
    %1172 = vector.broadcast %1170 : vector<1x2x1x128xf32> to vector<2x2x1x128xf32>
    %1173 = arith.mulf %1171, %1172 : vector<2x2x1x128xf32>
    %cst_369 = arith.constant -0.462910056 : f32
    %1174 = vector.broadcast %cst_369 : f32 to vector<2x2x1x128xf32>
    %1175 = arith.mulf %1174, %1173 : vector<2x2x1x128xf32>
    %1176 = arith.addf %1168, %1175 : vector<2x2x1x128xf32>
    %1177 = vector.shape_cast %78 : vector<2x1x128xf32> to vector<2x1x1x128xf32>
    %1178 = vector.shape_cast %93 : vector<2x1x128xf32> to vector<1x2x1x128xf32>
    %1179 = vector.broadcast %1177 : vector<2x1x1x128xf32> to vector<2x2x1x128xf32>
    %1180 = vector.broadcast %1178 : vector<1x2x1x128xf32> to vector<2x2x1x128xf32>
    %1181 = arith.mulf %1179, %1180 : vector<2x2x1x128xf32>
    %cst_370 = arith.constant -0.267261237 : f32
    %1182 = vector.broadcast %cst_370 : f32 to vector<2x2x1x128xf32>
    %1183 = arith.mulf %1182, %1181 : vector<2x2x1x128xf32>
    %1184 = arith.addf %1176, %1183 : vector<2x2x1x128xf32>
    %1185 = vector.shape_cast %90 : vector<2x1x128xf32> to vector<2x1x1x128xf32>
    %1186 = vector.shape_cast %81 : vector<2x1x128xf32> to vector<1x2x1x128xf32>
    %1187 = vector.broadcast %1185 : vector<2x1x1x128xf32> to vector<2x2x1x128xf32>
    %1188 = vector.broadcast %1186 : vector<1x2x1x128xf32> to vector<2x2x1x128xf32>
    %1189 = arith.mulf %1187, %1188 : vector<2x2x1x128xf32>
    %cst_371 = arith.constant -0.267261237 : f32
    %1190 = vector.broadcast %cst_371 : f32 to vector<2x2x1x128xf32>
    %1191 = arith.mulf %1190, %1189 : vector<2x2x1x128xf32>
    %1192 = arith.addf %1184, %1191 : vector<2x2x1x128xf32>
    %1193 = vector.shape_cast %90 : vector<2x1x128xf32> to vector<2x1x1x128xf32>
    %1194 = vector.shape_cast %105 : vector<2x1x128xf32> to vector<1x2x1x128xf32>
    %1195 = vector.broadcast %1193 : vector<2x1x1x128xf32> to vector<2x2x1x128xf32>
    %1196 = vector.broadcast %1194 : vector<1x2x1x128xf32> to vector<2x2x1x128xf32>
    %1197 = arith.mulf %1195, %1196 : vector<2x2x1x128xf32>
    %cst_372 = arith.constant -0.462910056 : f32
    %1198 = vector.broadcast %cst_372 : f32 to vector<2x2x1x128xf32>
    %1199 = arith.mulf %1198, %1197 : vector<2x2x1x128xf32>
    %1200 = arith.addf %1192, %1199 : vector<2x2x1x128xf32>
    %1201 = vector.shape_cast %102 : vector<2x1x128xf32> to vector<2x1x1x128xf32>
    %1202 = vector.shape_cast %93 : vector<2x1x128xf32> to vector<1x2x1x128xf32>
    %1203 = vector.broadcast %1201 : vector<2x1x1x128xf32> to vector<2x2x1x128xf32>
    %1204 = vector.broadcast %1202 : vector<1x2x1x128xf32> to vector<2x2x1x128xf32>
    %1205 = arith.mulf %1203, %1204 : vector<2x2x1x128xf32>
    %cst_373 = arith.constant -0.462910056 : f32
    %1206 = vector.broadcast %cst_373 : f32 to vector<2x2x1x128xf32>
    %1207 = arith.mulf %1206, %1205 : vector<2x2x1x128xf32>
    %1208 = arith.addf %1200, %1207 : vector<2x2x1x128xf32>
    %1209 = vector.shape_cast %78 : vector<2x1x128xf32> to vector<2x1x1x128xf32>
    %1210 = vector.shape_cast %105 : vector<2x1x128xf32> to vector<1x2x1x128xf32>
    %1211 = vector.broadcast %1209 : vector<2x1x1x128xf32> to vector<2x2x1x128xf32>
    %1212 = vector.broadcast %1210 : vector<1x2x1x128xf32> to vector<2x2x1x128xf32>
    %1213 = arith.mulf %1211, %1212 : vector<2x2x1x128xf32>
    %cst_374 = arith.constant 0.534522474 : f32
    %1214 = vector.broadcast %cst_374 : f32 to vector<2x2x1x128xf32>
    %1215 = arith.mulf %1214, %1213 : vector<2x2x1x128xf32>
    %1216 = arith.addf %1153, %1215 : vector<2x2x1x128xf32>
    %1217 = vector.shape_cast %102 : vector<2x1x128xf32> to vector<2x1x1x128xf32>
    %1218 = vector.shape_cast %81 : vector<2x1x128xf32> to vector<1x2x1x128xf32>
    %1219 = vector.broadcast %1217 : vector<2x1x1x128xf32> to vector<2x2x1x128xf32>
    %1220 = vector.broadcast %1218 : vector<1x2x1x128xf32> to vector<2x2x1x128xf32>
    %1221 = arith.mulf %1219, %1220 : vector<2x2x1x128xf32>
    %cst_375 = arith.constant 0.534522474 : f32
    %1222 = vector.broadcast %cst_375 : f32 to vector<2x2x1x128xf32>
    %1223 = arith.mulf %1222, %1221 : vector<2x2x1x128xf32>
    %1224 = arith.addf %1216, %1223 : vector<2x2x1x128xf32>
    %1225 = vector.shape_cast %1070 : vector<2x2x1x128xf32> to vector<4x1x128xf32>
    %c0_376 = arith.constant 0 : index
    %c44 = arith.constant 44 : index
    %c0_377 = arith.constant 0 : index
    %c0_378 = arith.constant 0 : index
    %1226 = vector.load %arg9[%c0_376, %c44, %c0_377, %c0_378] : memref<5x48x1x128xf32, #tpu.memory_space<vmem>>, vector<1x4x1x128xf32>
    %1227 = vector.shape_cast %1226 : vector<1x4x1x128xf32> to vector<4x1x128xf32>
    %1228 = vector.shape_cast %1225 : vector<4x1x128xf32> to vector<1x4x1x128xf32>
    tpu.vector_store %arg9[%c0_376, %c44, %c0_377, %c0_378], %1228 {strides = array<i32>} : memref<5x48x1x128xf32, #tpu.memory_space<vmem>>, vector<1x4x1x128xf32>,
    %1229 = vector.shape_cast %1117 : vector<2x2x1x128xf32> to vector<4x1x128xf32>
    %c1_379 = arith.constant 1 : index
    %c44_380 = arith.constant 44 : index
    %c0_381 = arith.constant 0 : index
    %c0_382 = arith.constant 0 : index
    %1230 = vector.load %arg9[%c1_379, %c44_380, %c0_381, %c0_382] : memref<5x48x1x128xf32, #tpu.memory_space<vmem>>, vector<1x4x1x128xf32>
    %1231 = vector.shape_cast %1230 : vector<1x4x1x128xf32> to vector<4x1x128xf32>
    %1232 = vector.shape_cast %1229 : vector<4x1x128xf32> to vector<1x4x1x128xf32>
    tpu.vector_store %arg9[%c1_379, %c44_380, %c0_381, %c0_382], %1232 {strides = array<i32>} : memref<5x48x1x128xf32, #tpu.memory_space<vmem>>, vector<1x4x1x128xf32>,
    %1233 = vector.shape_cast %1161 : vector<2x2x1x128xf32> to vector<4x1x128xf32>
    %c2_383 = arith.constant 2 : index
    %c44_384 = arith.constant 44 : index
    %c0_385 = arith.constant 0 : index
    %c0_386 = arith.constant 0 : index
    %1234 = vector.load %arg9[%c2_383, %c44_384, %c0_385, %c0_386] : memref<5x48x1x128xf32, #tpu.memory_space<vmem>>, vector<1x4x1x128xf32>
    %1235 = vector.shape_cast %1234 : vector<1x4x1x128xf32> to vector<4x1x128xf32>
    %1236 = vector.shape_cast %1233 : vector<4x1x128xf32> to vector<1x4x1x128xf32>
    tpu.vector_store %arg9[%c2_383, %c44_384, %c0_385, %c0_386], %1236 {strides = array<i32>} : memref<5x48x1x128xf32, #tpu.memory_space<vmem>>, vector<1x4x1x128xf32>,
    %1237 = vector.shape_cast %1208 : vector<2x2x1x128xf32> to vector<4x1x128xf32>
    %c3_387 = arith.constant 3 : index
    %c44_388 = arith.constant 44 : index
    %c0_389 = arith.constant 0 : index
    %c0_390 = arith.constant 0 : index
    %1238 = vector.load %arg9[%c3_387, %c44_388, %c0_389, %c0_390] : memref<5x48x1x128xf32, #tpu.memory_space<vmem>>, vector<1x4x1x128xf32>
    %1239 = vector.shape_cast %1238 : vector<1x4x1x128xf32> to vector<4x1x128xf32>
    %1240 = vector.shape_cast %1237 : vector<4x1x128xf32> to vector<1x4x1x128xf32>
    tpu.vector_store %arg9[%c3_387, %c44_388, %c0_389, %c0_390], %1240 {strides = array<i32>} : memref<5x48x1x128xf32, #tpu.memory_space<vmem>>, vector<1x4x1x128xf32>,
    %1241 = vector.shape_cast %1224 : vector<2x2x1x128xf32> to vector<4x1x128xf32>
    %c4_391 = arith.constant 4 : index
    %c44_392 = arith.constant 44 : index
    %c0_393 = arith.constant 0 : index
    %c0_394 = arith.constant 0 : index
    %1242 = vector.load %arg9[%c4_391, %c44_392, %c0_393, %c0_394] : memref<5x48x1x128xf32, #tpu.memory_space<vmem>>, vector<1x4x1x128xf32>
    %1243 = vector.shape_cast %1242 : vector<1x4x1x128xf32> to vector<4x1x128xf32>
    %1244 = vector.shape_cast %1241 : vector<4x1x128xf32> to vector<1x4x1x128xf32>
    tpu.vector_store %arg9[%c4_391, %c44_392, %c0_393, %c0_394], %1244 {strides = array<i32>} : memref<5x48x1x128xf32, #tpu.memory_space<vmem>>, vector<1x4x1x128xf32>,
    return
  }
  func.func @transform_0(%arg0: i32) -> (i32, i32, i32, i32) {
    %c0_i32 = arith.constant 0 : i32
    %c0_i32_0 = arith.constant 0 : i32
    %c0_i32_1 = arith.constant 0 : i32
    %c0_i32_2 = arith.constant 0 : i32
    return %c0_i32, %c0_i32_0, %arg0, %c0_i32_1 : i32, i32, i32, i32
  }
  func.func @transform_1(%arg0: i32) -> (i32, i32, i32, i32) {
    %c0_i32 = arith.constant 0 : i32
    %c0_i32_0 = arith.constant 0 : i32
    %c0_i32_1 = arith.constant 0 : i32
    %c0_i32_2 = arith.constant 0 : i32
    return %c0_i32, %c0_i32_0, %arg0, %c0_i32_1 : i32, i32, i32, i32
  }
  func.func @transform_2(%arg0: i32) -> (i32, i32, i32, i32) {
    %c0_i32 = arith.constant 0 : i32
    %c0_i32_0 = arith.constant 0 : i32
    %c0_i32_1 = arith.constant 0 : i32
    %c0_i32_2 = arith.constant 0 : i32
    return %c0_i32, %c0_i32_0, %arg0, %c0_i32_1 : i32, i32, i32, i32
  }
  func.func @transform_3(%arg0: i32) -> (i32, i32, i32, i32) {
    %c0_i32 = arith.constant 0 : i32
    %c0_i32_0 = arith.constant 0 : i32
    %c0_i32_1 = arith.constant 0 : i32
    %c0_i32_2 = arith.constant 0 : i32
    return %c0_i32, %c0_i32_0, %arg0, %c0_i32_1 : i32, i32, i32, i32
  }
  func.func @transform_4(%arg0: i32) -> (i32, i32, i32, i32) {
    %c0_i32 = arith.constant 0 : i32
    %c0_i32_0 = arith.constant 0 : i32
    %c0_i32_1 = arith.constant 0 : i32
    %c0_i32_2 = arith.constant 0 : i32
    return %c0_i32, %c0_i32_0, %arg0, %c0_i32_1 : i32, i32, i32, i32
  }
  func.func @transform_5(%arg0: i32) -> (i32, i32, i32, i32) {
    %c0_i32 = arith.constant 0 : i32
    %c0_i32_0 = arith.constant 0 : i32
    %c0_i32_1 = arith.constant 0 : i32
    %c0_i32_2 = arith.constant 0 : i32
    return %c0_i32, %c0_i32_0, %arg0, %c0_i32_1 : i32, i32, i32, i32
  }
  func.func @transform_6(%arg0: i32) -> (i32, i32, i32, i32) {
    %c0_i32 = arith.constant 0 : i32
    %c0_i32_0 = arith.constant 0 : i32
    %c0_i32_1 = arith.constant 0 : i32
    %c0_i32_2 = arith.constant 0 : i32
    return %c0_i32, %c0_i32_0, %arg0, %c0_i32_1 : i32, i32, i32, i32
  }
  func.func @transform_7(%arg0: i32) -> (i32, i32, i32, i32) {
    %c0_i32 = arith.constant 0 : i32
    %c0_i32_0 = arith.constant 0 : i32
    %c0_i32_1 = arith.constant 0 : i32
    %c0_i32_2 = arith.constant 0 : i32
    return %c0_i32, %c0_i32_0, %arg0, %c0_i32_1 : i32, i32, i32, i32
  }
  func.func @transform_8(%arg0: i32) -> (i32, i32, i32, i32) {
    %c0_i32 = arith.constant 0 : i32
    %c0_i32_0 = arith.constant 0 : i32
    %c0_i32_1 = arith.constant 0 : i32
    %c0_i32_2 = arith.constant 0 : i32
    return %c0_i32, %c0_i32_0, %arg0, %c0_i32_1 : i32, i32, i32, i32
  }
}

</mosaic_0001>

<llo_original>
// kernel: tpu_custom_call.1
$region0: #{tpu_custom_call.1}
  #allocation0 [shape = 'u32[]', space=smem, size = 0x4, offset = 0x4, fixed_abs, tag = 'smem constant byte address 0x4 - core index']
  #allocation1 [shape = 'u32[144,128]{1,0:T(1,128)}', space=vmem, size = 0x12000, scoped, tag = 'internal scratch']
  %s0 = inlined_call_operand.hbm [shape: f32[1,3,1,128], index: 0, kind: input, shape index: {}]
  %s1 = inlined_call_operand.vmem [shape: f32[1,3,1,128], index: 1, kind: input, shape index: {}]
  %s2 = inlined_call_operand.hbm [shape: f32[3,4,1,128], index: 2, kind: input, shape index: {}]
  %s3 = inlined_call_operand.hbm [shape: f32[5,2,1,128], index: 3, kind: input, shape index: {}]
  %s4 = inlined_call_operand.vmem [shape: f32[3,4,1,128], index: 4, kind: input, shape index: {}]
  %s5 = inlined_call_operand.hbm [shape: f32[5,2,1,128], index: 5, kind: input, shape index: {}]
  %s6 = inlined_call_operand.hbm [shape: f32[1,29,1,128], index: 6, kind: output, shape index: {0}]
  %s7 = inlined_call_operand.hbm [shape: f32[3,60,1,128], index: 7, kind: output, shape index: {1}]
  %s8 = inlined_call_operand.hbm [shape: f32[5,48,1,128], index: 8, kind: output, shape index: {2}]
  %9 = xla_tuple %s6, %s7, %s8
  %s10 = sld [smem:[#allocation0]]
  $region66: #{tpu_custom_call.1} parent=0
    _
  %s12 = ssub.s32 1, %s10
  %s13 = scalar_select 0, %s12, %s10
  $region1: #{tpu_custom_call.1} parent=0
    #allocation2 [shape = 'u8[1536]{0}', space=vmem, size = 0x800, scoped, tag = 'input window, operand 0, single buffered']
    #allocation3 [shape = 's32[1]{0}', space=sflag, size = 0x4, scoped, tag = 'scoped memory for tpu_custom_call.1']
    #allocation4 [shape = 's32[1]{0}', space=sflag, size = 0x4, scoped, tag = 'scoped memory for tpu_custom_call.1']
    #allocation5 [shape = 'u8[6144]{0}', space=vmem, size = 0x1800, scoped, tag = 'input window, operand 2, single buffered']
    #allocation6 [shape = 's32[1]{0}', space=sflag, size = 0x4, scoped, tag = 'scoped memory for tpu_custom_call.1']
    #allocation7 [shape = 'u8[5120]{0}', space=vmem, size = 0x1400, scoped, tag = 'input window, operand 3, single buffered']
    #allocation8 [shape = 'u8[5120]{0}', space=vmem, size = 0x1400, scoped, tag = 'input window, operand 5, single buffered']
    #allocation9 [shape = 's32[1]{0}', space=sflag, size = 0x4, scoped, tag = 'scoped memory for tpu_custom_call.1']
    #allocation10 [shape = 'u8[14848]{0}', space=vmem, size = 0x3c00, scoped, tag = 'output window, operand 0, single buffered']
    #allocation11 [shape = 'u8[92160]{0}', space=vmem, size = 0x16800, scoped, tag = 'output window, operand 1, single buffered']
    #allocation12 [shape = 's32[1]{0}', space=sflag, size = 0x4, scoped, tag = 'scoped memory for tpu_custom_call.1']
    #allocation13 [shape = 'u8[122880]{0}', space=vmem, size = 0x1e000, scoped, tag = 'output window, operand 2, single buffered']
    %14 = vsyncpa [#allocation3], 0
    %15 = vsyncpa [#allocation6], 0
    %16 = vsyncpa [#allocation9], 0
    %17 = vsyncpa [#allocation4], 0
    %18 = vsyncpa [#allocation12], 0
    // Predicated region
    $region2: #{tpu_custom_call.1} parent=1 // pred_check
      _
    $region3: #{tpu_custom_call.1} parent=1 // pred_check_branch
      %20 = sbr.rel (0) target = $region5
    $region4: #{tpu_custom_call.1} parent=1 // pred_region
      %s22 = ssub.s32 48, 48
      %23 = vsyncadd [#allocation3], %s22
      %s24 = sshll.u32 [#allocation2], 4
      %s25 = int_to_ptr.vmem [resolvable:$true] %s24
      %30 = dma.hbm_to_vmem [thread:$0]  %s0, 48, %s25, [#allocation3], 16, 16, 1
    $region5: #{tpu_custom_call.1} parent=1 // pred_fallthru
      _
    // Predicated region
    $region6: #{tpu_custom_call.1} parent=1 // pred_check
      _
    $region7: #{tpu_custom_call.1} parent=1 // pred_check_branch
      %32 = sbr.rel (0) target = $region9
    $region8: #{tpu_custom_call.1} parent=1 // pred_region
      _
    $region9: #{tpu_custom_call.1} parent=1 // pred_fallthru
      _
    // Predicated region
    $region10: #{tpu_custom_call.1} parent=1 // pred_check
      _
    $region11: #{tpu_custom_call.1} parent=1 // pred_check_branch
      %34 = sbr.rel (0) target = $region13
    $region12: #{tpu_custom_call.1} parent=1 // pred_region
      %s36 = ssub.s32 192, 192
      %37 = vsyncadd [#allocation6], %s36
      %s38 = sshll.u32 [#allocation5], 4
      %s39 = int_to_ptr.vmem [resolvable:$true] %s38
      %44 = dma.hbm_to_vmem [thread:$0]  %s2, 192, %s39, [#allocation6], 16, 16, 1
    $region13: #{tpu_custom_call.1} parent=1 // pred_fallthru
      _
    // Predicated region
    $region14: #{tpu_custom_call.1} parent=1 // pred_check
      _
    $region15: #{tpu_custom_call.1} parent=1 // pred_check_branch
      %46 = sbr.rel (0) target = $region17
    $region16: #{tpu_custom_call.1} parent=1 // pred_region
      %s48 = ssub.s32 160, 160
      %49 = vsyncadd [#allocation6], %s48
      %s50 = sshll.u32 [#allocation7], 4
      %s51 = int_to_ptr.vmem [resolvable:$true] %s50
      %56 = dma.hbm_to_vmem [thread:$0]  %s3, 160, %s51, [#allocation6], 16, 16, 1
    $region17: #{tpu_custom_call.1} parent=1 // pred_fallthru
      _
    // Predicated region
    $region18: #{tpu_custom_call.1} parent=1 // pred_check
      _
    $region19: #{tpu_custom_call.1} parent=1 // pred_check_branch
      %58 = sbr.rel (0) target = $region21
    $region20: #{tpu_custom_call.1} parent=1 // pred_region
      _
    $region21: #{tpu_custom_call.1} parent=1 // pred_fallthru
      _
    // Predicated region
    $region22: #{tpu_custom_call.1} parent=1 // pred_check
      _
    $region23: #{tpu_custom_call.1} parent=1 // pred_check_branch
      %60 = sbr.rel (0) target = $region25
    $region24: #{tpu_custom_call.1} parent=1 // pred_region
      %s62 = ssub.s32 160, 160
      %63 = vsyncadd [#allocation9], %s62
      %s64 = sshll.u32 [#allocation8], 4
      %s65 = int_to_ptr.vmem [resolvable:$true] %s64
      %70 = dma.hbm_to_vmem [thread:$0]  %s5, 160, %s65, [#allocation9], 16, 16, 1
    $region25: #{tpu_custom_call.1} parent=1 // pred_fallthru
      _
    // Predicated region
    $region26: #{tpu_custom_call.1} parent=1 // pred_check
      _
    $region27: #{tpu_custom_call.1} parent=1 // pred_check_branch
      %72 = sbr.rel (0) target = $region29
    $region28: #{tpu_custom_call.1} parent=1 // pred_region
      %73 = dma.done [#allocation3], 48
    $region29: #{tpu_custom_call.1} parent=1 // pred_fallthru
      _
    // Predicated region
    $region30: #{tpu_custom_call.1} parent=1 // pred_check
      _
    $region31: #{tpu_custom_call.1} parent=1 // pred_check_branch
      %75 = sbr.rel (0) target = $region33
    $region32: #{tpu_custom_call.1} parent=1 // pred_region
      %76 = dma.done [#allocation6], 192
    $region33: #{tpu_custom_call.1} parent=1 // pred_fallthru
      _
    // Predicated region
    $region34: #{tpu_custom_call.1} parent=1 // pred_check
      _
    $region35: #{tpu_custom_call.1} parent=1 // pred_check_branch
      %78 = sbr.rel (0) target = $region37
    $region36: #{tpu_custom_call.1} parent=1 // pred_region
      %79 = dma.done [#allocation6], 160
    $region37: #{tpu_custom_call.1} parent=1 // pred_fallthru
      _
    // Predicated region
    $region38: #{tpu_custom_call.1} parent=1 // pred_check
      _
    $region39: #{tpu_custom_call.1} parent=1 // pred_check_branch
      %81 = sbr.rel (0) target = $region41
    $region40: #{tpu_custom_call.1} parent=1 // pred_region
      %82 = dma.done [#allocation9], 160
    $region41: #{tpu_custom_call.1} parent=1 // pred_fallthru
      _
    %v83 = vld [vmem:[#allocation2] sm:$0x1]
    %v84 = vld [vmem:[#allocation2 + $0x1] sm:$0x1]
    %v85 = vld [vmem:[#allocation2 + $0x2] sm:$0x1]
    %v86 = vld [vmem:[%s1] sm:$0x1]
    %v87 = vld [vmem:[%s1 + $0x1] sm:$0x1]
    %v88 = vld [vmem:[%s1 + $0x2] sm:$0x1]
    %v89 = vmul.f32 %v83, %v86
    %v90 = vmul.f32 %v83, %v87
    %v91 = vmul.f32 %v83, %v88
    %v92 = vmul.f32 %v84, %v86
    %v93 = vmul.f32 %v84, %v87
    %v94 = vmul.f32 %v84, %v88
    %v95 = vmul.f32 %v85, %v86
    %v96 = vmul.f32 %v85, %v87
    %v97 = vmul.f32 %v85, %v88
    %98 = vst [vmem:[#allocation10] sm:$0x1] %v89
    %99 = vst [vmem:[#allocation10 + $0x1] sm:$0x1] %v90
    %100 = vst [vmem:[#allocation10 + $0x2] sm:$0x1] %v91
    %101 = vst [vmem:[#allocation10 + $0x3] sm:$0x1] %v92
    %102 = vst [vmem:[#allocation10 + $0x4] sm:$0x1] %v93
    %103 = vst [vmem:[#allocation10 + $0x5] sm:$0x1] %v94
    %104 = vst [vmem:[#allocation10 + $0x6] sm:$0x1] %v95
    %105 = vst [vmem:[#allocation10 + $0x7] sm:$0x1] %v96
    %106 = vst [vmem:[#allocation10 + $0x8] sm:$0x1] %v97
    %v107 = vld [vmem:[%s4] sm:$0x1]
    %v108 = vld [vmem:[%s4 + $0x1] sm:$0x1]
    %v109 = vld [vmem:[%s4 + $0x2] sm:$0x1]
    %v110 = vld [vmem:[%s4 + $0x3] sm:$0x1]
    %v111 = vld [vmem:[#allocation5] sm:$0x1]
    %v112 = vld [vmem:[#allocation5 + $0x1] sm:$0x1]
    %v113 = vld [vmem:[#allocation5 + $0x2] sm:$0x1]
    %v114 = vld [vmem:[#allocation5 + $0x3] sm:$0x1]
    %v115 = vmul.f32 %v107, %v111
    %v116 = vmul.f32 %v107, %v112
    %v117 = vmul.f32 %v107, %v113
    %v118 = vmul.f32 %v107, %v114
    %v119 = vmul.f32 %v108, %v111
    %v120 = vmul.f32 %v108, %v112
    %v121 = vmul.f32 %v108, %v113
    %v122 = vmul.f32 %v108, %v114
    %v123 = vmul.f32 %v109, %v111
    %v124 = vmul.f32 %v109, %v112
    %v125 = vmul.f32 %v109, %v113
    %v126 = vmul.f32 %v109, %v114
    %v127 = vmul.f32 %v110, %v111
    %v128 = vmul.f32 %v110, %v112
    %v129 = vmul.f32 %v110, %v113
    %v130 = vmul.f32 %v110, %v114
    %v131 = vmul.f32 %v115, -0.57735026
    %v132 = vmul.f32 %v116, -0.57735026
    %v133 = vmul.f32 %v117, -0.57735026
    %v134 = vmul.f32 %v118, -0.57735026
    %v135 = vmul.f32 %v119, -0.57735026
    %v136 = vmul.f32 %v120, -0.57735026
    %v137 = vmul.f32 %v121, -0.57735026
    %v138 = vmul.f32 %v122, -0.57735026
    %v139 = vmul.f32 %v123, -0.57735026
    %v140 = vmul.f32 %v124, -0.57735026
    %v141 = vmul.f32 %v125, -0.57735026
    %v142 = vmul.f32 %v126, -0.57735026
    %v143 = vmul.f32 %v127, -0.57735026
    %v144 = vmul.f32 %v128, -0.57735026
    %v145 = vmul.f32 %v129, -0.57735026
    %v146 = vmul.f32 %v130, -0.57735026
    %s147 = scalar_lea.vmem %s4, 4
    %v148 = vld [vmem:[%s147] sm:$0x1]
    %v149 = vld [vmem:[%s147 + $0x1] sm:$0x1]
    %v150 = vld [vmem:[%s147 + $0x2] sm:$0x1]
    %v151 = vld [vmem:[%s147 + $0x3] sm:$0x1]
    %s152 = scalar_lea.vmem [#allocation5], 4
    %v153 = vld [vmem:[%s152] sm:$0x1]
    %v154 = vld [vmem:[%s152 + $0x1] sm:$0x1]
    %v155 = vld [vmem:[%s152 + $0x2] sm:$0x1]
    %v156 = vld [vmem:[%s152 + $0x3] sm:$0x1]
    %v157 = vmul.f32 %v148, %v153
    %v158 = vmul.f32 %v148, %v154
    %v159 = vmul.f32 %v148, %v155
    %v160 = vmul.f32 %v148, %v156
    %v161 = vmul.f32 %v149, %v153
    %v162 = vmul.f32 %v149, %v154
    %v163 = vmul.f32 %v149, %v155
    %v164 = vmul.f32 %v149, %v156
    %v165 = vmul.f32 %v150, %v153
    %v166 = vmul.f32 %v150, %v154
    %v167 = vmul.f32 %v150, %v155
    %v168 = vmul.f32 %v150, %v156
    %v169 = vmul.f32 %v151, %v153
    %v170 = vmul.f32 %v151, %v154
    %v171 = vmul.f32 %v151, %v155
    %v172 = vmul.f32 %v151, %v156
    %v173 = vmul.f32 %v157, -0.57735026
    %v174 = vmul.f32 %v158, -0.57735026
    %v175 = vmul.f32 %v159, -0.57735026
    %v176 = vmul.f32 %v160, -0.57735026
    %v177 = vmul.f32 %v161, -0.57735026
    %v178 = vmul.f32 %v162, -0.57735026
    %v179 = vmul.f32 %v163, -0.57735026
    %v180 = vmul.f32 %v164, -0.57735026
    %v181 = vmul.f32 %v165, -0.57735026
    %v182 = vmul.f32 %v166, -0.57735026
    %v183 = vmul.f32 %v167, -0.57735026
    %v184 = vmul.f32 %v168, -0.57735026
    %v185 = vmul.f32 %v169, -0.57735026
    %v186 = vmul.f32 %v170, -0.57735026
    %v187 = vmul.f32 %v171, -0.57735026
    %v188 = vmul.f32 %v172, -0.57735026
    %v189 = vadd.f32 %v131, %v173
    %v190 = vadd.f32 %v132, %v174
    %v191 = vadd.f32 %v133, %v175
    %v192 = vadd.f32 %v134, %v176
    %v193 = vadd.f32 %v135, %v177
    %v194 = vadd.f32 %v136, %v178
    %v195 = vadd.f32 %v137, %v179
    %v196 = vadd.f32 %v138, %v180
    %v197 = vadd.f32 %v139, %v181
    %v198 = vadd.f32 %v140, %v182
    %v199 = vadd.f32 %v141, %v183
    %v200 = vadd.f32 %v142, %v184
    %v201 = vadd.f32 %v143, %v185
    %v202 = vadd.f32 %v144, %v186
    %v203 = vadd.f32 %v145, %v187
    %v204 = vadd.f32 %v146, %v188
    %s205 = scalar_lea.vmem %s4, 8
    %v206 = vld [vmem:[%s205] sm:$0x1]
    %v207 = vld [vmem:[%s205 + $0x1] sm:$0x1]
    %v208 = vld [vmem:[%s205 + $0x2] sm:$0x1]
    %v209 = vld [vmem:[%s205 + $0x3] sm:$0x1]
    %s210 = scalar_lea.vmem [#allocation5], 8
    %v211 = vld [vmem:[%s210] sm:$0x1]
    %v212 = vld [vmem:[%s210 + $0x1] sm:$0x1]
    %v213 = vld [vmem:[%s210 + $0x2] sm:$0x1]
    %v214 = vld [vmem:[%s210 + $0x3] sm:$0x1]
    %v215 = vmul.f32 %v206, %v211
    %v216 = vmul.f32 %v206, %v212
    %v217 = vmul.f32 %v206, %v213
    %v218 = vmul.f32 %v206, %v214
    %v219 = vmul.f32 %v207, %v211
    %v220 = vmul.f32 %v207, %v212
    %v221 = vmul.f32 %v207, %v213
    %v222 = vmul.f32 %v207, %v214
    %v223 = vmul.f32 %v208, %v211
    %v224 = vmul.f32 %v208, %v212
    %v225 = vmul.f32 %v208, %v213
    %v226 = vmul.f32 %v208, %v214
    %v227 = vmul.f32 %v209, %v211
    %v228 = vmul.f32 %v209, %v212
    %v229 = vmul.f32 %v209, %v213
    %v230 = vmul.f32 %v209, %v214
    %v231 = vmul.f32 %v215, -0.57735026
    %v232 = vmul.f32 %v216, -0.57735026
    %v233 = vmul.f32 %v217, -0.57735026
    %v234 = vmul.f32 %v218, -0.57735026
    %v235 = vmul.f32 %v219, -0.57735026
    %v236 = vmul.f32 %v220, -0.57735026
    %v237 = vmul.f32 %v221, -0.57735026
    %v238 = vmul.f32 %v222, -0.57735026
    %v239 = vmul.f32 %v223, -0.57735026
    %v240 = vmul.f32 %v224, -0.57735026
    %v241 = vmul.f32 %v225, -0.57735026
    %v242 = vmul.f32 %v226, -0.57735026
    %v243 = vmul.f32 %v227, -0.57735026
    %v244 = vmul.f32 %v228, -0.57735026
    %v245 = vmul.f32 %v229, -0.57735026
    %v246 = vmul.f32 %v230, -0.57735026
    %v247 = vadd.f32 %v189, %v231
    %v248 = vadd.f32 %v190, %v232
    %v249 = vadd.f32 %v191, %v233
    %v250 = vadd.f32 %v192, %v234
    %v251 = vadd.f32 %v193, %v235
    %v252 = vadd.f32 %v194, %v236
    %v253 = vadd.f32 %v195, %v237
    %v254 = vadd.f32 %v196, %v238
    %v255 = vadd.f32 %v197, %v239
    %v256 = vadd.f32 %v198, %v240
    %v257 = vadd.f32 %v199, %v241
    %v258 = vadd.f32 %v200, %v242
    %v259 = vadd.f32 %v201, %v243
    %v260 = vadd.f32 %v202, %v244
    %v261 = vadd.f32 %v203, %v245
    %v262 = vadd.f32 %v204, %v246
    %s263 = scalar_lea.vmem [#allocation10], 9
    %264 = vst [vmem:[%s263] sm:$0x1] %v247
    %265 = vst [vmem:[%s263 + $0x1] sm:$0x1] %v248
    %266 = vst [vmem:[%s263 + $0x2] sm:$0x1] %v249
    %267 = vst [vmem:[%s263 + $0x3] sm:$0x1] %v250
    %268 = vst [vmem:[%s263 + $0x4] sm:$0x1] %v251
    %269 = vst [vmem:[%s263 + $0x5] sm:$0x1] %v252
    %270 = vst [vmem:[%s263 + $0x6] sm:$0x1] %v253
    %271 = vst [vmem:[%s263 + $0x7] sm:$0x1] %v254
    %272 = vst [vmem:[%s263 + $0x8] sm:$0x1] %v255
    %273 = vst [vmem:[%s263 + $0x9] sm:$0x1] %v256
    %274 = vst [vmem:[%s263 + $0xa] sm:$0x1] %v257
    %275 = vst [vmem:[%s263 + $0xb] sm:$0x1] %v258
    %276 = vst [vmem:[%s263 + $0xc] sm:$0x1] %v259
    %277 = vst [vmem:[%s263 + $0xd] sm:$0x1] %v260
    %278 = vst [vmem:[%s263 + $0xe] sm:$0x1] %v261
    %279 = vst [vmem:[%s263 + $0xf] sm:$0x1] %v262
    %v280 = vld [vmem:[#allocation8] sm:$0x1]
    %v281 = vld [vmem:[#allocation8 + $0x1] sm:$0x1]
    %v282 = vld [vmem:[#allocation7] sm:$0x1]
    %v283 = vld [vmem:[#allocation7 + $0x1] sm:$0x1]
    %v284 = vmul.f32 %v280, %v282
    %v285 = vmul.f32 %v280, %v283
    %v286 = vmul.f32 %v281, %v282
    %v287 = vmul.f32 %v281, %v283
    %v288 = vmul.f32 %v284, 0.4472136
    %v289 = vmul.f32 %v285, 0.4472136
    %v290 = vmul.f32 %v286, 0.4472136
    %v291 = vmul.f32 %v287, 0.4472136
    %s292 = scalar_lea.vmem [#allocation8], 2
    %v293 = vld [vmem:[%s292] sm:$0x1]
    %v294 = vld [vmem:[%s292 + $0x1] sm:$0x1]
    %s295 = scalar_lea.vmem [#allocation7], 2
    %v296 = vld [vmem:[%s295] sm:$0x1]
    %v297 = vld [vmem:[%s295 + $0x1] sm:$0x1]
    %v298 = vmul.f32 %v293, %v296
    %v299 = vmul.f32 %v293, %v297
    %v300 = vmul.f32 %v294, %v296
    %v301 = vmul.f32 %v294, %v297
    %v302 = vmul.f32 %v298, 0.4472136
    %v303 = vmul.f32 %v299, 0.4472136
    %v304 = vmul.f32 %v300, 0.4472136
    %v305 = vmul.f32 %v301, 0.4472136
    %v306 = vadd.f32 %v288, %v302
    %v307 = vadd.f32 %v289, %v303
    %v308 = vadd.f32 %v290, %v304
    %v309 = vadd.f32 %v291, %v305
    %s310 = scalar_lea.vmem [#allocation8], 4
    %v311 = vld [vmem:[%s310] sm:$0x1]
    %v312 = vld [vmem:[%s310 + $0x1] sm:$0x1]
    %s313 = scalar_lea.vmem [#allocation7], 4
    %v314 = vld [vmem:[%s313] sm:$0x1]
    %v315 = vld [vmem:[%s313 + $0x1] sm:$0x1]
    %v316 = vmul.f32 %v311, %v314
    %v317 = vmul.f32 %v311, %v315
    %v318 = vmul.f32 %v312, %v314
    %v319 = vmul.f32 %v312, %v315
    %v320 = vmul.f32 %v316, 0.4472136
    %v321 = vmul.f32 %v317, 0.4472136
    %v322 = vmul.f32 %v318, 0.4472136
    %v323 = vmul.f32 %v319, 0.4472136
    %v324 = vadd.f32 %v306, %v320
    %v325 = vadd.f32 %v307, %v321
    %v326 = vadd.f32 %v308, %v322
    %v327 = vadd.f32 %v309, %v323
    %s328 = scalar_lea.vmem [#allocation8], 6
    %v329 = vld [vmem:[%s328] sm:$0x1]
    %v330 = vld [vmem:[%s328 + $0x1] sm:$0x1]
    %s331 = scalar_lea.vmem [#allocation7], 6
    %v332 = vld [vmem:[%s331] sm:$0x1]
    %v333 = vld [vmem:[%s331 + $0x1] sm:$0x1]
    %v334 = vmul.f32 %v329, %v332
    %v335 = vmul.f32 %v329, %v333
    %v336 = vmul.f32 %v330, %v332
    %v337 = vmul.f32 %v330, %v333
    %v338 = vmul.f32 %v334, 0.4472136
    %v339 = vmul.f32 %v335, 0.4472136
    %v340 = vmul.f32 %v336, 0.4472136
    %v341 = vmul.f32 %v337, 0.4472136
    %v342 = vadd.f32 %v324, %v338
    %v343 = vadd.f32 %v325, %v339
    %v344 = vadd.f32 %v326, %v340
    %v345 = vadd.f32 %v327, %v341
    %s346 = scalar_lea.vmem [#allocation8], 8
    %v347 = vld [vmem:[%s346] sm:$0x1]
    %v348 = vld [vmem:[%s346 + $0x1] sm:$0x1]
    %s349 = scalar_lea.vmem [#allocation7], 8
    %v350 = vld [vmem:[%s349] sm:$0x1]
    %v351 = vld [vmem:[%s349 + $0x1] sm:$0x1]
    %v352 = vmul.f32 %v347, %v350
    %v353 = vmul.f32 %v347, %v351
    %v354 = vmul.f32 %v348, %v350
    %v355 = vmul.f32 %v348, %v351
    %v356 = vmul.f32 %v352, 0.4472136
    %v357 = vmul.f32 %v353, 0.4472136
    %v358 = vmul.f32 %v354, 0.4472136
    %v359 = vmul.f32 %v355, 0.4472136
    %v360 = vadd.f32 %v342, %v356
    %v361 = vadd.f32 %v343, %v357
    %v362 = vadd.f32 %v344, %v358
    %v363 = vadd.f32 %v345, %v359
    %s364 = scalar_lea.vmem [#allocation10], 25
    %365 = vst [vmem:[%s364] sm:$0x1] %v360
    %366 = vst [vmem:[%s364 + $0x1] sm:$0x1] %v361
    %367 = vst [vmem:[%s364 + $0x2] sm:$0x1] %v362
    %368 = vst [vmem:[%s364 + $0x3] sm:$0x1] %v363
    %v369 = vmul.f32 %v83, %v111
    %v370 = vmul.f32 %v83, %v112
    %v371 = vmul.f32 %v83, %v113
    %v372 = vmul.f32 %v83, %v114
    %v373 = vmul.f32 %v84, %v111
    %v374 = vmul.f32 %v84, %v112
    %v375 = vmul.f32 %v84, %v113
    %v376 = vmul.f32 %v84, %v114
    %v377 = vmul.f32 %v85, %v111
    %v378 = vmul.f32 %v85, %v112
    %v379 = vmul.f32 %v85, %v113
    %v380 = vmul.f32 %v85, %v114
    %v381 = vmul.f32 %v83, %v153
    %v382 = vmul.f32 %v83, %v154
    %v383 = vmul.f32 %v83, %v155
    %v384 = vmul.f32 %v83, %v156
    %v385 = vmul.f32 %v84, %v153
    %v386 = vmul.f32 %v84, %v154
    %v387 = vmul.f32 %v84, %v155
    %v388 = vmul.f32 %v84, %v156
    %v389 = vmul.f32 %v85, %v153
    %v390 = vmul.f32 %v85, %v154
    %v391 = vmul.f32 %v85, %v155
    %v392 = vmul.f32 %v85, %v156
    %v393 = vmul.f32 %v83, %v211
    %v394 = vmul.f32 %v83, %v212
    %v395 = vmul.f32 %v83, %v213
    %v396 = vmul.f32 %v83, %v214
    %v397 = vmul.f32 %v84, %v211
    %v398 = vmul.f32 %v84, %v212
    %v399 = vmul.f32 %v84, %v213
    %v400 = vmul.f32 %v84, %v214
    %v401 = vmul.f32 %v85, %v211
    %v402 = vmul.f32 %v85, %v212
    %v403 = vmul.f32 %v85, %v213
    %v404 = vmul.f32 %v85, %v214
    %405 = vst [vmem:[#allocation11] sm:$0x1] %v369
    %406 = vst [vmem:[#allocation11 + $0x1] sm:$0x1] %v370
    %407 = vst [vmem:[#allocation11 + $0x2] sm:$0x1] %v371
    %408 = vst [vmem:[#allocation11 + $0x3] sm:$0x1] %v372
    %409 = vst [vmem:[#allocation11 + $0x4] sm:$0x1] %v373
    %410 = vst [vmem:[#allocation11 + $0x5] sm:$0x1] %v374
    %411 = vst [vmem:[#allocation11 + $0x6] sm:$0x1] %v375
    %412 = vst [vmem:[#allocation11 + $0x7] sm:$0x1] %v376
    %413 = vst [vmem:[#allocation11 + $0x8] sm:$0x1] %v377
    %414 = vst [vmem:[#allocation11 + $0x9] sm:$0x1] %v378
    %415 = vst [vmem:[#allocation11 + $0xa] sm:$0x1] %v379
    %416 = vst [vmem:[#allocation11 + $0xb] sm:$0x1] %v380
    %s417 = scalar_lea.vmem [#allocation11], 60
    %418 = vst [vmem:[%s417] sm:$0x1] %v381
    %419 = vst [vmem:[%s417 + $0x1] sm:$0x1] %v382
    %420 = vst [vmem:[%s417 + $0x2] sm:$0x1] %v383
    %421 = vst [vmem:[%s417 + $0x3] sm:$0x1] %v384
    %422 = vst [vmem:[%s417 + $0x4] sm:$0x1] %v385
    %423 = vst [vmem:[%s417 + $0x5] sm:$0x1] %v386
    %424 = vst [vmem:[%s417 + $0x6] sm:$0x1] %v387
    %425 = vst [vmem:[%s417 + $0x7] sm:$0x1] %v388
    %426 = vst [vmem:[%s417 + $0x8] sm:$0x1] %v389
    %427 = vst [vmem:[%s417 + $0x9] sm:$0x1] %v390
    %428 = vst [vmem:[%s417 + $0xa] sm:$0x1] %v391
    %429 = vst [vmem:[%s417 + $0xb] sm:$0x1] %v392
    %s430 = scalar_lea.vmem [#allocation11], 120
    %431 = vst [vmem:[%s430] sm:$0x1] %v393
    %432 = vst [vmem:[%s430 + $0x1] sm:$0x1] %v394
    %433 = vst [vmem:[%s430 + $0x2] sm:$0x1] %v395
    %434 = vst [vmem:[%s430 + $0x3] sm:$0x1] %v396
    %435 = vst [vmem:[%s430 + $0x4] sm:$0x1] %v397
    %436 = vst [vmem:[%s430 + $0x5] sm:$0x1] %v398
    %437 = vst [vmem:[%s430 + $0x6] sm:$0x1] %v399
    %438 = vst [vmem:[%s430 + $0x7] sm:$0x1] %v400
    %439 = vst [vmem:[%s430 + $0x8] sm:$0x1] %v401
    %440 = vst [vmem:[%s430 + $0x9] sm:$0x1] %v402
    %441 = vst [vmem:[%s430 + $0xa] sm:$0x1] %v403
    %442 = vst [vmem:[%s430 + $0xb] sm:$0x1] %v404
    %v443 = vmul.f32 %v107, %v86
    %v444 = vmul.f32 %v107, %v87
    %v445 = vmul.f32 %v107, %v88
    %v446 = vmul.f32 %v108, %v86
    %v447 = vmul.f32 %v108, %v87
    %v448 = vmul.f32 %v108, %v88
    %v449 = vmul.f32 %v109, %v86
    %v450 = vmul.f32 %v109, %v87
    %v451 = vmul.f32 %v109, %v88
    %v452 = vmul.f32 %v110, %v86
    %v453 = vmul.f32 %v110, %v87
    %v454 = vmul.f32 %v110, %v88
    %v455 = vmul.f32 %v148, %v86
    %v456 = vmul.f32 %v148, %v87
    %v457 = vmul.f32 %v148, %v88
    %v458 = vmul.f32 %v149, %v86
    %v459 = vmul.f32 %v149, %v87
    %v460 = vmul.f32 %v149, %v88
    %v461 = vmul.f32 %v150, %v86
    %v462 = vmul.f32 %v150, %v87
    %v463 = vmul.f32 %v150, %v88
    %v464 = vmul.f32 %v151, %v86
    %v465 = vmul.f32 %v151, %v87
    %v466 = vmul.f32 %v151, %v88
    %v467 = vmul.f32 %v206, %v86
    %v468 = vmul.f32 %v206, %v87
    %v469 = vmul.f32 %v206, %v88
    %v470 = vmul.f32 %v207, %v86
    %v471 = vmul.f32 %v207, %v87
    %v472 = vmul.f32 %v207, %v88
    %v473 = vmul.f32 %v208, %v86
    %v474 = vmul.f32 %v208, %v87
    %v475 = vmul.f32 %v208, %v88
    %v476 = vmul.f32 %v209, %v86
    %v477 = vmul.f32 %v209, %v87
    %v478 = vmul.f32 %v209, %v88
    %s479 = scalar_lea.vmem [#allocation11], 12
    %480 = vst [vmem:[%s479] sm:$0x1] %v443
    %481 = vst [vmem:[%s479 + $0x1] sm:$0x1] %v444
    %482 = vst [vmem:[%s479 + $0x2] sm:$0x1] %v445
    %483 = vst [vmem:[%s479 + $0x3] sm:$0x1] %v446
    %484 = vst [vmem:[%s479 + $0x4] sm:$0x1] %v447
    %485 = vst [vmem:[%s479 + $0x5] sm:$0x1] %v448
    %486 = vst [vmem:[%s479 + $0x6] sm:$0x1] %v449
    %487 = vst [vmem:[%s479 + $0x7] sm:$0x1] %v450
    %488 = vst [vmem:[%s479 + $0x8] sm:$0x1] %v451
    %489 = vst [vmem:[%s479 + $0x9] sm:$0x1] %v452
    %490 = vst [vmem:[%s479 + $0xa] sm:$0x1] %v453
    %491 = vst [vmem:[%s479 + $0xb] sm:$0x1] %v454
    %s492 = scalar_lea.vmem [#allocation11], 72
    %493 = vst [vmem:[%s492] sm:$0x1] %v455
    %494 = vst [vmem:[%s492 + $0x1] sm:$0x1] %v456
    %495 = vst [vmem:[%s492 + $0x2] sm:$0x1] %v457
    %496 = vst [vmem:[%s492 + $0x3] sm:$0x1] %v458
    %497 = vst [vmem:[%s492 + $0x4] sm:$0x1] %v459
    %498 = vst [vmem:[%s492 + $0x5] sm:$0x1] %v460
    %499 = vst [vmem:[%s492 + $0x6] sm:$0x1] %v461
    %500 = vst [vmem:[%s492 + $0x7] sm:$0x1] %v462
    %501 = vst [vmem:[%s492 + $0x8] sm:$0x1] %v463
    %502 = vst [vmem:[%s492 + $0x9] sm:$0x1] %v464
    %503 = vst [vmem:[%s492 + $0xa] sm:$0x1] %v465
    %504 = vst [vmem:[%s492 + $0xb] sm:$0x1] %v466
    %s505 = scalar_lea.vmem [#allocation11], 132
    %506 = vst [vmem:[%s505] sm:$0x1] %v467
    %507 = vst [vmem:[%s505 + $0x1] sm:$0x1] %v468
    %508 = vst [vmem:[%s505 + $0x2] sm:$0x1] %v469
    %509 = vst [vmem:[%s505 + $0x3] sm:$0x1] %v470
    %510 = vst [vmem:[%s505 + $0x4] sm:$0x1] %v471
    %511 = vst [vmem:[%s505 + $0x5] sm:$0x1] %v472
    %512 = vst [vmem:[%s505 + $0x6] sm:$0x1] %v473
    %513 = vst [vmem:[%s505 + $0x7] sm:$0x1] %v474
    %514 = vst [vmem:[%s505 + $0x8] sm:$0x1] %v475
    %515 = vst [vmem:[%s505 + $0x9] sm:$0x1] %v476
    %516 = vst [vmem:[%s505 + $0xa] sm:$0x1] %v477
    %517 = vst [vmem:[%s505 + $0xb] sm:$0x1] %v478
    %v518 = vmul.f32 %v148, %v211
    %v519 = vmul.f32 %v148, %v212
    %v520 = vmul.f32 %v148, %v213
    %v521 = vmul.f32 %v148, %v214
    %v522 = vmul.f32 %v149, %v211
    %v523 = vmul.f32 %v149, %v212
    %v524 = vmul.f32 %v149, %v213
    %v525 = vmul.f32 %v149, %v214
    %v526 = vmul.f32 %v150, %v211
    %v527 = vmul.f32 %v150, %v212
    %v528 = vmul.f32 %v150, %v213
    %v529 = vmul.f32 %v150, %v214
    %v530 = vmul.f32 %v151, %v211
    %v531 = vmul.f32 %v151, %v212
    %v532 = vmul.f32 %v151, %v213
    %v533 = vmul.f32 %v151, %v214
    %v534 = vmul.f32 %v518, -0.70710677
    %v535 = vmul.f32 %v519, -0.70710677
    %v536 = vmul.f32 %v520, -0.70710677
    %v537 = vmul.f32 %v521, -0.70710677
    %v538 = vmul.f32 %v522, -0.70710677
    %v539 = vmul.f32 %v523, -0.70710677
    %v540 = vmul.f32 %v524, -0.70710677
    %v541 = vmul.f32 %v525, -0.70710677
    %v542 = vmul.f32 %v526, -0.70710677
    %v543 = vmul.f32 %v527, -0.70710677
    %v544 = vmul.f32 %v528, -0.70710677
    %v545 = vmul.f32 %v529, -0.70710677
    %v546 = vmul.f32 %v530, -0.70710677
    %v547 = vmul.f32 %v531, -0.70710677
    %v548 = vmul.f32 %v532, -0.70710677
    %v549 = vmul.f32 %v533, -0.70710677
    %v550 = vmul.f32 %v206, %v153
    %v551 = vmul.f32 %v206, %v154
    %v552 = vmul.f32 %v206, %v155
    %v553 = vmul.f32 %v206, %v156
    %v554 = vmul.f32 %v207, %v153
    %v555 = vmul.f32 %v207, %v154
    %v556 = vmul.f32 %v207, %v155
    %v557 = vmul.f32 %v207, %v156
    %v558 = vmul.f32 %v208, %v153
    %v559 = vmul.f32 %v208, %v154
    %v560 = vmul.f32 %v208, %v155
    %v561 = vmul.f32 %v208, %v156
    %v562 = vmul.f32 %v209, %v153
    %v563 = vmul.f32 %v209, %v154
    %v564 = vmul.f32 %v209, %v155
    %v565 = vmul.f32 %v209, %v156
    %v566 = vmul.f32 %v550, 0.70710677
    %v567 = vmul.f32 %v551, 0.70710677
    %v568 = vmul.f32 %v552, 0.70710677
    %v569 = vmul.f32 %v553, 0.70710677
    %v570 = vmul.f32 %v554, 0.70710677
    %v571 = vmul.f32 %v555, 0.70710677
    %v572 = vmul.f32 %v556, 0.70710677
    %v573 = vmul.f32 %v557, 0.70710677
    %v574 = vmul.f32 %v558, 0.70710677
    %v575 = vmul.f32 %v559, 0.70710677
    %v576 = vmul.f32 %v560, 0.70710677
    %v577 = vmul.f32 %v561, 0.70710677
    %v578 = vmul.f32 %v562, 0.70710677
    %v579 = vmul.f32 %v563, 0.70710677
    %v580 = vmul.f32 %v564, 0.70710677
    %v581 = vmul.f32 %v565, 0.70710677
    %v582 = vadd.f32 %v534, %v566
    %v583 = vadd.f32 %v535, %v567
    %v584 = vadd.f32 %v536, %v568
    %v585 = vadd.f32 %v537, %v569
    %v586 = vadd.f32 %v538, %v570
    %v587 = vadd.f32 %v539, %v571
    %v588 = vadd.f32 %v540, %v572
    %v589 = vadd.f32 %v541, %v573
    %v590 = vadd.f32 %v542, %v574
    %v591 = vadd.f32 %v543, %v575
    %v592 = vadd.f32 %v544, %v576
    %v593 = vadd.f32 %v545, %v577
    %v594 = vadd.f32 %v546, %v578
    %v595 = vadd.f32 %v547, %v579
    %v596 = vadd.f32 %v548, %v580
    %v597 = vadd.f32 %v549, %v581
    %v598 = vmul.f32 %v107, %v211
    %v599 = vmul.f32 %v107, %v212
    %v600 = vmul.f32 %v107, %v213
    %v601 = vmul.f32 %v107, %v214
    %v602 = vmul.f32 %v108, %v211
    %v603 = vmul.f32 %v108, %v212
    %v604 = vmul.f32 %v108, %v213
    %v605 = vmul.f32 %v108, %v214
    %v606 = vmul.f32 %v109, %v211
    %v607 = vmul.f32 %v109, %v212
    %v608 = vmul.f32 %v109, %v213
    %v609 = vmul.f32 %v109, %v214
    %v610 = vmul.f32 %v110, %v211
    %v611 = vmul.f32 %v110, %v212
    %v612 = vmul.f32 %v110, %v213
    %v613 = vmul.f32 %v110, %v214
    %v614 = vmul.f32 %v598, 0.70710677
    %v615 = vmul.f32 %v599, 0.70710677
    %v616 = vmul.f32 %v600, 0.70710677
    %v617 = vmul.f32 %v601, 0.70710677
    %v618 = vmul.f32 %v602, 0.70710677
    %v619 = vmul.f32 %v603, 0.70710677
    %v620 = vmul.f32 %v604, 0.70710677
    %v621 = vmul.f32 %v605, 0.70710677
    %v622 = vmul.f32 %v606, 0.70710677
    %v623 = vmul.f32 %v607, 0.70710677
    %v624 = vmul.f32 %v608, 0.70710677
    %v625 = vmul.f32 %v609, 0.70710677
    %v626 = vmul.f32 %v610, 0.70710677
    %v627 = vmul.f32 %v611, 0.70710677
    %v628 = vmul.f32 %v612, 0.70710677
    %v629 = vmul.f32 %v613, 0.70710677
    %v630 = vmul.f32 %v206, %v111
    %v631 = vmul.f32 %v206, %v112
    %v632 = vmul.f32 %v206, %v113
    %v633 = vmul.f32 %v206, %v114
    %v634 = vmul.f32 %v207, %v111
    %v635 = vmul.f32 %v207, %v112
    %v636 = vmul.f32 %v207, %v113
    %v637 = vmul.f32 %v207, %v114
    %v638 = vmul.f32 %v208, %v111
    %v639 = vmul.f32 %v208, %v112
    %v640 = vmul.f32 %v208, %v113
    %v641 = vmul.f32 %v208, %v114
    %v642 = vmul.f32 %v209, %v111
    %v643 = vmul.f32 %v209, %v112
    %v644 = vmul.f32 %v209, %v113
    %v645 = vmul.f32 %v209, %v114
    %v646 = vmul.f32 %v630, -0.70710677
    %v647 = vmul.f32 %v631, -0.70710677
    %v648 = vmul.f32 %v632, -0.70710677
    %v649 = vmul.f32 %v633, -0.70710677
    %v650 = vmul.f32 %v634, -0.70710677
    %v651 = vmul.f32 %v635, -0.70710677
    %v652 = vmul.f32 %v636, -0.70710677
    %v653 = vmul.f32 %v637, -0.70710677
    %v654 = vmul.f32 %v638, -0.70710677
    %v655 = vmul.f32 %v639, -0.70710677
    %v656 = vmul.f32 %v640, -0.70710677
    %v657 = vmul.f32 %v641, -0.70710677
    %v658 = vmul.f32 %v642, -0.70710677
    %v659 = vmul.f32 %v643, -0.70710677
    %v660 = vmul.f32 %v644, -0.70710677
    %v661 = vmul.f32 %v645, -0.70710677
    %v662 = vadd.f32 %v614, %v646
    %v663 = vadd.f32 %v615, %v647
    %v664 = vadd.f32 %v616, %v648
    %v665 = vadd.f32 %v617, %v649
    %v666 = vadd.f32 %v618, %v650
    %v667 = vadd.f32 %v619, %v651
    %v668 = vadd.f32 %v620, %v652
    %v669 = vadd.f32 %v621, %v653
    %v670 = vadd.f32 %v622, %v654
    %v671 = vadd.f32 %v623, %v655
    %v672 = vadd.f32 %v624, %v656
    %v673 = vadd.f32 %v625, %v657
    %v674 = vadd.f32 %v626, %v658
    %v675 = vadd.f32 %v627, %v659
    %v676 = vadd.f32 %v628, %v660
    %v677 = vadd.f32 %v629, %v661
    %v678 = vmul.f32 %v107, %v153
    %v679 = vmul.f32 %v107, %v154
    %v680 = vmul.f32 %v107, %v155
    %v681 = vmul.f32 %v107, %v156
    %v682 = vmul.f32 %v108, %v153
    %v683 = vmul.f32 %v108, %v154
    %v684 = vmul.f32 %v108, %v155
    %v685 = vmul.f32 %v108, %v156
    %v686 = vmul.f32 %v109, %v153
    %v687 = vmul.f32 %v109, %v154
    %v688 = vmul.f32 %v109, %v155
    %v689 = vmul.f32 %v109, %v156
    %v690 = vmul.f32 %v110, %v153
    %v691 = vmul.f32 %v110, %v154
    %v692 = vmul.f32 %v110, %v155
    %v693 = vmul.f32 %v110, %v156
    %v694 = vmul.f32 %v678, -0.70710677
    %v695 = vmul.f32 %v679, -0.70710677
    %v696 = vmul.f32 %v680, -0.70710677
    %v697 = vmul.f32 %v681, -0.70710677
    %v698 = vmul.f32 %v682, -0.70710677
    %v699 = vmul.f32 %v683, -0.70710677
    %v700 = vmul.f32 %v684, -0.70710677
    %v701 = vmul.f32 %v685, -0.70710677
    %v702 = vmul.f32 %v686, -0.70710677
    %v703 = vmul.f32 %v687, -0.70710677
    %v704 = vmul.f32 %v688, -0.70710677
    %v705 = vmul.f32 %v689, -0.70710677
    %v706 = vmul.f32 %v690, -0.70710677
    %v707 = vmul.f32 %v691, -0.70710677
    %v708 = vmul.f32 %v692, -0.70710677
    %v709 = vmul.f32 %v693, -0.70710677
    %v710 = vmul.f32 %v148, %v111
    %v711 = vmul.f32 %v148, %v112
    %v712 = vmul.f32 %v148, %v113
    %v713 = vmul.f32 %v148, %v114
    %v714 = vmul.f32 %v149, %v111
    %v715 = vmul.f32 %v149, %v112
    %v716 = vmul.f32 %v149, %v113
    %v717 = vmul.f32 %v149, %v114
    %v718 = vmul.f32 %v150, %v111
    %v719 = vmul.f32 %v150, %v112
    %v720 = vmul.f32 %v150, %v113
    %v721 = vmul.f32 %v150, %v114
    %v722 = vmul.f32 %v151, %v111
    %v723 = vmul.f32 %v151, %v112
    %v724 = vmul.f32 %v151, %v113
    %v725 = vmul.f32 %v151, %v114
    %v726 = vmul.f32 %v710, 0.70710677
    %v727 = vmul.f32 %v711, 0.70710677
    %v728 = vmul.f32 %v712, 0.70710677
    %v729 = vmul.f32 %v713, 0.70710677
    %v730 = vmul.f32 %v714, 0.70710677
    %v731 = vmul.f32 %v715, 0.70710677
    %v732 = vmul.f32 %v716, 0.70710677
    %v733 = vmul.f32 %v717, 0.70710677
    %v734 = vmul.f32 %v718, 0.70710677
    %v735 = vmul.f32 %v719, 0.70710677
    %v736 = vmul.f32 %v720, 0.70710677
    %v737 = vmul.f32 %v721, 0.70710677
    %v738 = vmul.f32 %v722, 0.70710677
    %v739 = vmul.f32 %v723, 0.70710677
    %v740 = vmul.f32 %v724, 0.70710677
    %v741 = vmul.f32 %v725, 0.70710677
    %v742 = vadd.f32 %v694, %v726
    %v743 = vadd.f32 %v695, %v727
    %v744 = vadd.f32 %v696, %v728
    %v745 = vadd.f32 %v697, %v729
    %v746 = vadd.f32 %v698, %v730
    %v747 = vadd.f32 %v699, %v731
    %v748 = vadd.f32 %v700, %v732
    %v749 = vadd.f32 %v701, %v733
    %v750 = vadd.f32 %v702, %v734
    %v751 = vadd.f32 %v703, %v735
    %v752 = vadd.f32 %v704, %v736
    %v753 = vadd.f32 %v705, %v737
    %v754 = vadd.f32 %v706, %v738
    %v755 = vadd.f32 %v707, %v739
    %v756 = vadd.f32 %v708, %v740
    %v757 = vadd.f32 %v709, %v741
    %s758 = scalar_lea.vmem [#allocation11], 24
    %759 = vst [vmem:[%s758] sm:$0x1] %v582
    %760 = vst [vmem:[%s758 + $0x1] sm:$0x1] %v583
    %761 = vst [vmem:[%s758 + $0x2] sm:$0x1] %v584
    %762 = vst [vmem:[%s758 + $0x3] sm:$0x1] %v585
    %763 = vst [vmem:[%s758 + $0x4] sm:$0x1] %v586
    %764 = vst [vmem:[%s758 + $0x5] sm:$0x1] %v587
    %765 = vst [vmem:[%s758 + $0x6] sm:$0x1] %v588
    %766 = vst [vmem:[%s758 + $0x7] sm:$0x1] %v589
    %767 = vst [vmem:[%s758 + $0x8] sm:$0x1] %v590
    %768 = vst [vmem:[%s758 + $0x9] sm:$0x1] %v591
    %769 = vst [vmem:[%s758 + $0xa] sm:$0x1] %v592
    %770 = vst [vmem:[%s758 + $0xb] sm:$0x1] %v593
    %771 = vst [vmem:[%s758 + $0xc] sm:$0x1] %v594
    %772 = vst [vmem:[%s758 + $0xd] sm:$0x1] %v595
    %773 = vst [vmem:[%s758 + $0xe] sm:$0x1] %v596
    %774 = vst [vmem:[%s758 + $0xf] sm:$0x1] %v597
    %s775 = scalar_lea.vmem [#allocation11], 84
    %776 = vst [vmem:[%s775] sm:$0x1] %v662
    %777 = vst [vmem:[%s775 + $0x1] sm:$0x1] %v663
    %778 = vst [vmem:[%s775 + $0x2] sm:$0x1] %v664
    %779 = vst [vmem:[%s775 + $0x3] sm:$0x1] %v665
    %780 = vst [vmem:[%s775 + $0x4] sm:$0x1] %v666
    %781 = vst [vmem:[%s775 + $0x5] sm:$0x1] %v667
    %782 = vst [vmem:[%s775 + $0x6] sm:$0x1] %v668
    %783 = vst [vmem:[%s775 + $0x7] sm:$0x1] %v669
    %784 = vst [vmem:[%s775 + $0x8] sm:$0x1] %v670
    %785 = vst [vmem:[%s775 + $0x9] sm:$0x1] %v671
    %786 = vst [vmem:[%s775 + $0xa] sm:$0x1] %v672
    %787 = vst [vmem:[%s775 + $0xb] sm:$0x1] %v673
    %788 = vst [vmem:[%s775 + $0xc] sm:$0x1] %v674
    %789 = vst [vmem:[%s775 + $0xd] sm:$0x1] %v675
    %790 = vst [vmem:[%s775 + $0xe] sm:$0x1] %v676
    %791 = vst [vmem:[%s775 + $0xf] sm:$0x1] %v677
    %s792 = scalar_lea.vmem [#allocation11], 144
    %793 = vst [vmem:[%s792] sm:$0x1] %v742
    %794 = vst [vmem:[%s792 + $0x1] sm:$0x1] %v743
    %795 = vst [vmem:[%s792 + $0x2] sm:$0x1] %v744
    %796 = vst [vmem:[%s792 + $0x3] sm:$0x1] %v745
    %797 = vst [vmem:[%s792 + $0x4] sm:$0x1] %v746
    %798 = vst [vmem:[%s792 + $0x5] sm:$0x1] %v747
    %799 = vst [vmem:[%s792 + $0x6] sm:$0x1] %v748
    %800 = vst [vmem:[%s792 + $0x7] sm:$0x1] %v749
    %801 = vst [vmem:[%s792 + $0x8] sm:$0x1] %v750
    %802 = vst [vmem:[%s792 + $0x9] sm:$0x1] %v751
    %803 = vst [vmem:[%s792 + $0xa] sm:$0x1] %v752
    %804 = vst [vmem:[%s792 + $0xb] sm:$0x1] %v753
    %805 = vst [vmem:[%s792 + $0xc] sm:$0x1] %v754
    %806 = vst [vmem:[%s792 + $0xd] sm:$0x1] %v755
    %807 = vst [vmem:[%s792 + $0xe] sm:$0x1] %v756
    %808 = vst [vmem:[%s792 + $0xf] sm:$0x1] %v757
    %v809 = vmul.f32 %v107, %v314
    %v810 = vmul.f32 %v107, %v315
    %v811 = vmul.f32 %v108, %v314
    %v812 = vmul.f32 %v108, %v315
    %v813 = vmul.f32 %v109, %v314
    %v814 = vmul.f32 %v109, %v315
    %v815 = vmul.f32 %v110, %v314
    %v816 = vmul.f32 %v110, %v315
    %v817 = vmul.f32 %v809, 0.31622776
    %v818 = vmul.f32 %v810, 0.31622776
    %v819 = vmul.f32 %v811, 0.31622776
    %v820 = vmul.f32 %v812, 0.31622776
    %v821 = vmul.f32 %v813, 0.31622776
    %v822 = vmul.f32 %v814, 0.31622776
    %v823 = vmul.f32 %v815, 0.31622776
    %v824 = vmul.f32 %v816, 0.31622776
    %v825 = vmul.f32 %v107, %v350
    %v826 = vmul.f32 %v107, %v351
    %v827 = vmul.f32 %v108, %v350
    %v828 = vmul.f32 %v108, %v351
    %v829 = vmul.f32 %v109, %v350
    %v830 = vmul.f32 %v109, %v351
    %v831 = vmul.f32 %v110, %v350
    %v832 = vmul.f32 %v110, %v351
    %v833 = vmul.f32 %v825, 0.5477226
    %v834 = vmul.f32 %v826, 0.5477226
    %v835 = vmul.f32 %v827, 0.5477226
    %v836 = vmul.f32 %v828, 0.5477226
    %v837 = vmul.f32 %v829, 0.5477226
    %v838 = vmul.f32 %v830, 0.5477226
    %v839 = vmul.f32 %v831, 0.5477226
    %v840 = vmul.f32 %v832, 0.5477226
    %v841 = vadd.f32 %v817, %v833
    %v842 = vadd.f32 %v818, %v834
    %v843 = vadd.f32 %v819, %v835
    %v844 = vadd.f32 %v820, %v836
    %v845 = vadd.f32 %v821, %v837
    %v846 = vadd.f32 %v822, %v838
    %v847 = vadd.f32 %v823, %v839
    %v848 = vadd.f32 %v824, %v840
    %v849 = vmul.f32 %v148, %v296
    %v850 = vmul.f32 %v148, %v297
    %v851 = vmul.f32 %v149, %v296
    %v852 = vmul.f32 %v149, %v297
    %v853 = vmul.f32 %v150, %v296
    %v854 = vmul.f32 %v150, %v297
    %v855 = vmul.f32 %v151, %v296
    %v856 = vmul.f32 %v151, %v297
    %v857 = vmul.f32 %v849, -0.5477226
    %v858 = vmul.f32 %v850, -0.5477226
    %v859 = vmul.f32 %v851, -0.5477226
    %v860 = vmul.f32 %v852, -0.5477226
    %v861 = vmul.f32 %v853, -0.5477226
    %v862 = vmul.f32 %v854, -0.5477226
    %v863 = vmul.f32 %v855, -0.5477226
    %v864 = vmul.f32 %v856, -0.5477226
    %v865 = vadd.f32 %v841, %v857
    %v866 = vadd.f32 %v842, %v858
    %v867 = vadd.f32 %v843, %v859
    %v868 = vadd.f32 %v844, %v860
    %v869 = vadd.f32 %v845, %v861
    %v870 = vadd.f32 %v846, %v862
    %v871 = vadd.f32 %v847, %v863
    %v872 = vadd.f32 %v848, %v864
    %v873 = vmul.f32 %v206, %v282
    %v874 = vmul.f32 %v206, %v283
    %v875 = vmul.f32 %v207, %v282
    %v876 = vmul.f32 %v207, %v283
    %v877 = vmul.f32 %v208, %v282
    %v878 = vmul.f32 %v208, %v283
    %v879 = vmul.f32 %v209, %v282
    %v880 = vmul.f32 %v209, %v283
    %v881 = vmul.f32 %v873, -0.5477226
    %v882 = vmul.f32 %v874, -0.5477226
    %v883 = vmul.f32 %v875, -0.5477226
    %v884 = vmul.f32 %v876, -0.5477226
    %v885 = vmul.f32 %v877, -0.5477226
    %v886 = vmul.f32 %v878, -0.5477226
    %v887 = vmul.f32 %v879, -0.5477226
    %v888 = vmul.f32 %v880, -0.5477226
    %v889 = vadd.f32 %v865, %v881
    %v890 = vadd.f32 %v866, %v882
    %v891 = vadd.f32 %v867, %v883
    %v892 = vadd.f32 %v868, %v884
    %v893 = vadd.f32 %v869, %v885
    %v894 = vadd.f32 %v870, %v886
    %v895 = vadd.f32 %v871, %v887
    %v896 = vadd.f32 %v872, %v888
    %v897 = vmul.f32 %v107, %v296
    %v898 = vmul.f32 %v107, %v297
    %v899 = vmul.f32 %v108, %v296
    %v900 = vmul.f32 %v108, %v297
    %v901 = vmul.f32 %v109, %v296
    %v902 = vmul.f32 %v109, %v297
    %v903 = vmul.f32 %v110, %v296
    %v904 = vmul.f32 %v110, %v297
    %v905 = vmul.f32 %v897, -0.5477226
    %v906 = vmul.f32 %v898, -0.5477226
    %v907 = vmul.f32 %v899, -0.5477226
    %v908 = vmul.f32 %v900, -0.5477226
    %v909 = vmul.f32 %v901, -0.5477226
    %v910 = vmul.f32 %v902, -0.5477226
    %v911 = vmul.f32 %v903, -0.5477226
    %v912 = vmul.f32 %v904, -0.5477226
    %v913 = vmul.f32 %v148, %v314
    %v914 = vmul.f32 %v148, %v315
    %v915 = vmul.f32 %v149, %v314
    %v916 = vmul.f32 %v149, %v315
    %v917 = vmul.f32 %v150, %v314
    %v918 = vmul.f32 %v150, %v315
    %v919 = vmul.f32 %v151, %v314
    %v920 = vmul.f32 %v151, %v315
    %v921 = vmul.f32 %v913, -0.6324555
    %v922 = vmul.f32 %v914, -0.6324555
    %v923 = vmul.f32 %v915, -0.6324555
    %v924 = vmul.f32 %v916, -0.6324555
    %v925 = vmul.f32 %v917, -0.6324555
    %v926 = vmul.f32 %v918, -0.6324555
    %v927 = vmul.f32 %v919, -0.6324555
    %v928 = vmul.f32 %v920, -0.6324555
    %v929 = vadd.f32 %v905, %v921
    %v930 = vadd.f32 %v906, %v922
    %v931 = vadd.f32 %v907, %v923
    %v932 = vadd.f32 %v908, %v924
    %v933 = vadd.f32 %v909, %v925
    %v934 = vadd.f32 %v910, %v926
    %v935 = vadd.f32 %v911, %v927
    %v936 = vadd.f32 %v912, %v928
    %v937 = vmul.f32 %v206, %v332
    %v938 = vmul.f32 %v206, %v333
    %v939 = vmul.f32 %v207, %v332
    %v940 = vmul.f32 %v207, %v333
    %v941 = vmul.f32 %v208, %v332
    %v942 = vmul.f32 %v208, %v333
    %v943 = vmul.f32 %v209, %v332
    %v944 = vmul.f32 %v209, %v333
    %v945 = vmul.f32 %v937, -0.5477226
    %v946 = vmul.f32 %v938, -0.5477226
    %v947 = vmul.f32 %v939, -0.5477226
    %v948 = vmul.f32 %v940, -0.5477226
    %v949 = vmul.f32 %v941, -0.5477226
    %v950 = vmul.f32 %v942, -0.5477226
    %v951 = vmul.f32 %v943, -0.5477226
    %v952 = vmul.f32 %v944, -0.5477226
    %v953 = vadd.f32 %v929, %v945
    %v954 = vadd.f32 %v930, %v946
    %v955 = vadd.f32 %v931, %v947
    %v956 = vadd.f32 %v932, %v948
    %v957 = vadd.f32 %v933, %v949
    %v958 = vadd.f32 %v934, %v950
    %v959 = vadd.f32 %v935, %v951
    %v960 = vadd.f32 %v936, %v952
    %v961 = vmul.f32 %v107, %v282
    %v962 = vmul.f32 %v107, %v283
    %v963 = vmul.f32 %v108, %v282
    %v964 = vmul.f32 %v108, %v283
    %v965 = vmul.f32 %v109, %v282
    %v966 = vmul.f32 %v109, %v283
    %v967 = vmul.f32 %v110, %v282
    %v968 = vmul.f32 %v110, %v283
    %v969 = vmul.f32 %v961, -0.5477226
    %v970 = vmul.f32 %v962, -0.5477226
    %v971 = vmul.f32 %v963, -0.5477226
    %v972 = vmul.f32 %v964, -0.5477226
    %v973 = vmul.f32 %v965, -0.5477226
    %v974 = vmul.f32 %v966, -0.5477226
    %v975 = vmul.f32 %v967, -0.5477226
    %v976 = vmul.f32 %v968, -0.5477226
    %v977 = vmul.f32 %v148, %v332
    %v978 = vmul.f32 %v148, %v333
    %v979 = vmul.f32 %v149, %v332
    %v980 = vmul.f32 %v149, %v333
    %v981 = vmul.f32 %v150, %v332
    %v982 = vmul.f32 %v150, %v333
    %v983 = vmul.f32 %v151, %v332
    %v984 = vmul.f32 %v151, %v333
    %v985 = vmul.f32 %v977, -0.5477226
    %v986 = vmul.f32 %v978, -0.5477226
    %v987 = vmul.f32 %v979, -0.5477226
    %v988 = vmul.f32 %v980, -0.5477226
    %v989 = vmul.f32 %v981, -0.5477226
    %v990 = vmul.f32 %v982, -0.5477226
    %v991 = vmul.f32 %v983, -0.5477226
    %v992 = vmul.f32 %v984, -0.5477226
    %v993 = vadd.f32 %v969, %v985
    %v994 = vadd.f32 %v970, %v986
    %v995 = vadd.f32 %v971, %v987
    %v996 = vadd.f32 %v972, %v988
    %v997 = vadd.f32 %v973, %v989
    %v998 = vadd.f32 %v974, %v990
    %v999 = vadd.f32 %v975, %v991
    %v1000 = vadd.f32 %v976, %v992
    %v1001 = vmul.f32 %v206, %v314
    %v1002 = vmul.f32 %v206, %v315
    %v1003 = vmul.f32 %v207, %v314
    %v1004 = vmul.f32 %v207, %v315
    %v1005 = vmul.f32 %v208, %v314
    %v1006 = vmul.f32 %v208, %v315
    %v1007 = vmul.f32 %v209, %v314
    %v1008 = vmul.f32 %v209, %v315
    %v1009 = vmul.f32 %v1001, 0.31622776
    %v1010 = vmul.f32 %v1002, 0.31622776
    %v1011 = vmul.f32 %v1003, 0.31622776
    %v1012 = vmul.f32 %v1004, 0.31622776
    %v1013 = vmul.f32 %v1005, 0.31622776
    %v1014 = vmul.f32 %v1006, 0.31622776
    %v1015 = vmul.f32 %v1007, 0.31622776
    %v1016 = vmul.f32 %v1008, 0.31622776
    %v1017 = vadd.f32 %v993, %v1009
    %v1018 = vadd.f32 %v994, %v1010
    %v1019 = vadd.f32 %v995, %v1011
    %v1020 = vadd.f32 %v996, %v1012
    %v1021 = vadd.f32 %v997, %v1013
    %v1022 = vadd.f32 %v998, %v1014
    %v1023 = vadd.f32 %v999, %v1015
    %v1024 = vadd.f32 %v1000, %v1016
    %v1025 = vmul.f32 %v206, %v350
    %v1026 = vmul.f32 %v206, %v351
    %v1027 = vmul.f32 %v207, %v350
    %v1028 = vmul.f32 %v207, %v351
    %v1029 = vmul.f32 %v208, %v350
    %v1030 = vmul.f32 %v208, %v351
    %v1031 = vmul.f32 %v209, %v350
    %v1032 = vmul.f32 %v209, %v351
    %v1033 = vmul.f32 %v1025, -0.5477226
    %v1034 = vmul.f32 %v1026, -0.5477226
    %v1035 = vmul.f32 %v1027, -0.5477226
    %v1036 = vmul.f32 %v1028, -0.5477226
    %v1037 = vmul.f32 %v1029, -0.5477226
    %v1038 = vmul.f32 %v1030, -0.5477226
    %v1039 = vmul.f32 %v1031, -0.5477226
    %v1040 = vmul.f32 %v1032, -0.5477226
    %v1041 = vadd.f32 %v1017, %v1033
    %v1042 = vadd.f32 %v1018, %v1034
    %v1043 = vadd.f32 %v1019, %v1035
    %v1044 = vadd.f32 %v1020, %v1036
    %v1045 = vadd.f32 %v1021, %v1037
    %v1046 = vadd.f32 %v1022, %v1038
    %v1047 = vadd.f32 %v1023, %v1039
    %v1048 = vadd.f32 %v1024, %v1040
    %s1049 = scalar_lea.vmem [#allocation11], 40
    %1050 = vst [vmem:[%s1049] sm:$0x1] %v889
    %1051 = vst [vmem:[%s1049 + $0x1] sm:$0x1] %v890
    %1052 = vst [vmem:[%s1049 + $0x2] sm:$0x1] %v891
    %1053 = vst [vmem:[%s1049 + $0x3] sm:$0x1] %v892
    %1054 = vst [vmem:[%s1049 + $0x4] sm:$0x1] %v893
    %1055 = vst [vmem:[%s1049 + $0x5] sm:$0x1] %v894
    %1056 = vst [vmem:[%s1049 + $0x6] sm:$0x1] %v895
    %1057 = vst [vmem:[%s1049 + $0x7] sm:$0x1] %v896
    %s1058 = scalar_lea.vmem [#allocation11], 100
    %1059 = vst [vmem:[%s1058] sm:$0x1] %v953
    %1060 = vst [vmem:[%s1058 + $0x1] sm:$0x1] %v954
    %1061 = vst [vmem:[%s1058 + $0x2] sm:$0x1] %v955
    %1062 = vst [vmem:[%s1058 + $0x3] sm:$0x1] %v956
    %1063 = vst [vmem:[%s1058 + $0x4] sm:$0x1] %v957
    %1064 = vst [vmem:[%s1058 + $0x5] sm:$0x1] %v958
    %1065 = vst [vmem:[%s1058 + $0x6] sm:$0x1] %v959
    %1066 = vst [vmem:[%s1058 + $0x7] sm:$0x1] %v960
    %s1067 = scalar_lea.vmem [#allocation11], 160
    %1068 = vst [vmem:[%s1067] sm:$0x1] %v1041
    %1069 = vst [vmem:[%s1067 + $0x1] sm:$0x1] %v1042
    %1070 = vst [vmem:[%s1067 + $0x2] sm:$0x1] %v1043
    %1071 = vst [vmem:[%s1067 + $0x3] sm:$0x1] %v1044
    %1072 = vst [vmem:[%s1067 + $0x4] sm:$0x1] %v1045
    %1073 = vst [vmem:[%s1067 + $0x5] sm:$0x1] %v1046
    %1074 = vst [vmem:[%s1067 + $0x6] sm:$0x1] %v1047
    %1075 = vst [vmem:[%s1067 + $0x7] sm:$0x1] %v1048
    %v1076 = vmul.f32 %v280, %v211
    %v1077 = vmul.f32 %v280, %v212
    %v1078 = vmul.f32 %v280, %v213
    %v1079 = vmul.f32 %v280, %v214
    %v1080 = vmul.f32 %v281, %v211
    %v1081 = vmul.f32 %v281, %v212
    %v1082 = vmul.f32 %v281, %v213
    %v1083 = vmul.f32 %v281, %v214
    %v1084 = vmul.f32 %v1076, -0.5477226
    %v1085 = vmul.f32 %v1077, -0.5477226
    %v1086 = vmul.f32 %v1078, -0.5477226
    %v1087 = vmul.f32 %v1079, -0.5477226
    %v1088 = vmul.f32 %v1080, -0.5477226
    %v1089 = vmul.f32 %v1081, -0.5477226
    %v1090 = vmul.f32 %v1082, -0.5477226
    %v1091 = vmul.f32 %v1083, -0.5477226
    %v1092 = vmul.f32 %v293, %v153
    %v1093 = vmul.f32 %v293, %v154
    %v1094 = vmul.f32 %v293, %v155
    %v1095 = vmul.f32 %v293, %v156
    %v1096 = vmul.f32 %v294, %v153
    %v1097 = vmul.f32 %v294, %v154
    %v1098 = vmul.f32 %v294, %v155
    %v1099 = vmul.f32 %v294, %v156
    %v1100 = vmul.f32 %v1092, -0.5477226
    %v1101 = vmul.f32 %v1093, -0.5477226
    %v1102 = vmul.f32 %v1094, -0.5477226
    %v1103 = vmul.f32 %v1095, -0.5477226
    %v1104 = vmul.f32 %v1096, -0.5477226
    %v1105 = vmul.f32 %v1097, -0.5477226
    %v1106 = vmul.f32 %v1098, -0.5477226
    %v1107 = vmul.f32 %v1099, -0.5477226
    %v1108 = vadd.f32 %v1084, %v1100
    %v1109 = vadd.f32 %v1085, %v1101
    %v1110 = vadd.f32 %v1086, %v1102
    %v1111 = vadd.f32 %v1087, %v1103
    %v1112 = vadd.f32 %v1088, %v1104
    %v1113 = vadd.f32 %v1089, %v1105
    %v1114 = vadd.f32 %v1090, %v1106
    %v1115 = vadd.f32 %v1091, %v1107
    %v1116 = vmul.f32 %v311, %v111
    %v1117 = vmul.f32 %v311, %v112
    %v1118 = vmul.f32 %v311, %v113
    %v1119 = vmul.f32 %v311, %v114
    %v1120 = vmul.f32 %v312, %v111
    %v1121 = vmul.f32 %v312, %v112
    %v1122 = vmul.f32 %v312, %v113
    %v1123 = vmul.f32 %v312, %v114
    %v1124 = vmul.f32 %v1116, 0.31622776
    %v1125 = vmul.f32 %v1117, 0.31622776
    %v1126 = vmul.f32 %v1118, 0.31622776
    %v1127 = vmul.f32 %v1119, 0.31622776
    %v1128 = vmul.f32 %v1120, 0.31622776
    %v1129 = vmul.f32 %v1121, 0.31622776
    %v1130 = vmul.f32 %v1122, 0.31622776
    %v1131 = vmul.f32 %v1123, 0.31622776
    %v1132 = vadd.f32 %v1108, %v1124
    %v1133 = vadd.f32 %v1109, %v1125
    %v1134 = vadd.f32 %v1110, %v1126
    %v1135 = vadd.f32 %v1111, %v1127
    %v1136 = vadd.f32 %v1112, %v1128
    %v1137 = vadd.f32 %v1113, %v1129
    %v1138 = vadd.f32 %v1114, %v1130
    %v1139 = vadd.f32 %v1115, %v1131
    %v1140 = vmul.f32 %v347, %v111
    %v1141 = vmul.f32 %v347, %v112
    %v1142 = vmul.f32 %v347, %v113
    %v1143 = vmul.f32 %v347, %v114
    %v1144 = vmul.f32 %v348, %v111
    %v1145 = vmul.f32 %v348, %v112
    %v1146 = vmul.f32 %v348, %v113
    %v1147 = vmul.f32 %v348, %v114
    %v1148 = vmul.f32 %v1140, 0.5477226
    %v1149 = vmul.f32 %v1141, 0.5477226
    %v1150 = vmul.f32 %v1142, 0.5477226
    %v1151 = vmul.f32 %v1143, 0.5477226
    %v1152 = vmul.f32 %v1144, 0.5477226
    %v1153 = vmul.f32 %v1145, 0.5477226
    %v1154 = vmul.f32 %v1146, 0.5477226
    %v1155 = vmul.f32 %v1147, 0.5477226
    %v1156 = vadd.f32 %v1132, %v1148
    %v1157 = vadd.f32 %v1133, %v1149
    %v1158 = vadd.f32 %v1134, %v1150
    %v1159 = vadd.f32 %v1135, %v1151
    %v1160 = vadd.f32 %v1136, %v1152
    %v1161 = vadd.f32 %v1137, %v1153
    %v1162 = vadd.f32 %v1138, %v1154
    %v1163 = vadd.f32 %v1139, %v1155
    %v1164 = vmul.f32 %v293, %v111
    %v1165 = vmul.f32 %v293, %v112
    %v1166 = vmul.f32 %v293, %v113
    %v1167 = vmul.f32 %v293, %v114
    %v1168 = vmul.f32 %v294, %v111
    %v1169 = vmul.f32 %v294, %v112
    %v1170 = vmul.f32 %v294, %v113
    %v1171 = vmul.f32 %v294, %v114
    %v1172 = vmul.f32 %v1164, -0.5477226
    %v1173 = vmul.f32 %v1165, -0.5477226
    %v1174 = vmul.f32 %v1166, -0.5477226
    %v1175 = vmul.f32 %v1167, -0.5477226
    %v1176 = vmul.f32 %v1168, -0.5477226
    %v1177 = vmul.f32 %v1169, -0.5477226
    %v1178 = vmul.f32 %v1170, -0.5477226
    %v1179 = vmul.f32 %v1171, -0.5477226
    %v1180 = vmul.f32 %v311, %v153
    %v1181 = vmul.f32 %v311, %v154
    %v1182 = vmul.f32 %v311, %v155
    %v1183 = vmul.f32 %v311, %v156
    %v1184 = vmul.f32 %v312, %v153
    %v1185 = vmul.f32 %v312, %v154
    %v1186 = vmul.f32 %v312, %v155
    %v1187 = vmul.f32 %v312, %v156
    %v1188 = vmul.f32 %v1180, -0.6324555
    %v1189 = vmul.f32 %v1181, -0.6324555
    %v1190 = vmul.f32 %v1182, -0.6324555
    %v1191 = vmul.f32 %v1183, -0.6324555
    %v1192 = vmul.f32 %v1184, -0.6324555
    %v1193 = vmul.f32 %v1185, -0.6324555
    %v1194 = vmul.f32 %v1186, -0.6324555
    %v1195 = vmul.f32 %v1187, -0.6324555
    %v1196 = vadd.f32 %v1172, %v1188
    %v1197 = vadd.f32 %v1173, %v1189
    %v1198 = vadd.f32 %v1174, %v1190
    %v1199 = vadd.f32 %v1175, %v1191
    %v1200 = vadd.f32 %v1176, %v1192
    %v1201 = vadd.f32 %v1177, %v1193
    %v1202 = vadd.f32 %v1178, %v1194
    %v1203 = vadd.f32 %v1179, %v1195
    %v1204 = vmul.f32 %v329, %v211
    %v1205 = vmul.f32 %v329, %v212
    %v1206 = vmul.f32 %v329, %v213
    %v1207 = vmul.f32 %v329, %v214
    %v1208 = vmul.f32 %v330, %v211
    %v1209 = vmul.f32 %v330, %v212
    %v1210 = vmul.f32 %v330, %v213
    %v1211 = vmul.f32 %v330, %v214
    %v1212 = vmul.f32 %v1204, -0.5477226
    %v1213 = vmul.f32 %v1205, -0.5477226
    %v1214 = vmul.f32 %v1206, -0.5477226
    %v1215 = vmul.f32 %v1207, -0.5477226
    %v1216 = vmul.f32 %v1208, -0.5477226
    %v1217 = vmul.f32 %v1209, -0.5477226
    %v1218 = vmul.f32 %v1210, -0.5477226
    %v1219 = vmul.f32 %v1211, -0.5477226
    %v1220 = vadd.f32 %v1196, %v1212
    %v1221 = vadd.f32 %v1197, %v1213
    %v1222 = vadd.f32 %v1198, %v1214
    %v1223 = vadd.f32 %v1199, %v1215
    %v1224 = vadd.f32 %v1200, %v1216
    %v1225 = vadd.f32 %v1201, %v1217
    %v1226 = vadd.f32 %v1202, %v1218
    %v1227 = vadd.f32 %v1203, %v1219
    %v1228 = vmul.f32 %v280, %v111
    %v1229 = vmul.f32 %v280, %v112
    %v1230 = vmul.f32 %v280, %v113
    %v1231 = vmul.f32 %v280, %v114
    %v1232 = vmul.f32 %v281, %v111
    %v1233 = vmul.f32 %v281, %v112
    %v1234 = vmul.f32 %v281, %v113
    %v1235 = vmul.f32 %v281, %v114
    %v1236 = vmul.f32 %v1228, -0.5477226
    %v1237 = vmul.f32 %v1229, -0.5477226
    %v1238 = vmul.f32 %v1230, -0.5477226
    %v1239 = vmul.f32 %v1231, -0.5477226
    %v1240 = vmul.f32 %v1232, -0.5477226
    %v1241 = vmul.f32 %v1233, -0.5477226
    %v1242 = vmul.f32 %v1234, -0.5477226
    %v1243 = vmul.f32 %v1235, -0.5477226
    %v1244 = vmul.f32 %v311, %v211
    %v1245 = vmul.f32 %v311, %v212
    %v1246 = vmul.f32 %v311, %v213
    %v1247 = vmul.f32 %v311, %v214
    %v1248 = vmul.f32 %v312, %v211
    %v1249 = vmul.f32 %v312, %v212
    %v1250 = vmul.f32 %v312, %v213
    %v1251 = vmul.f32 %v312, %v214
    %v1252 = vmul.f32 %v1244, 0.31622776
    %v1253 = vmul.f32 %v1245, 0.31622776
    %v1254 = vmul.f32 %v1246, 0.31622776
    %v1255 = vmul.f32 %v1247, 0.31622776
    %v1256 = vmul.f32 %v1248, 0.31622776
    %v1257 = vmul.f32 %v1249, 0.31622776
    %v1258 = vmul.f32 %v1250, 0.31622776
    %v1259 = vmul.f32 %v1251, 0.31622776
    %v1260 = vadd.f32 %v1236, %v1252
    %v1261 = vadd.f32 %v1237, %v1253
    %v1262 = vadd.f32 %v1238, %v1254
    %v1263 = vadd.f32 %v1239, %v1255
    %v1264 = vadd.f32 %v1240, %v1256
    %v1265 = vadd.f32 %v1241, %v1257
    %v1266 = vadd.f32 %v1242, %v1258
    %v1267 = vadd.f32 %v1243, %v1259
    %v1268 = vmul.f32 %v329, %v153
    %v1269 = vmul.f32 %v329, %v154
    %v1270 = vmul.f32 %v329, %v155
    %v1271 = vmul.f32 %v329, %v156
    %v1272 = vmul.f32 %v330, %v153
    %v1273 = vmul.f32 %v330, %v154
    %v1274 = vmul.f32 %v330, %v155
    %v1275 = vmul.f32 %v330, %v156
    %v1276 = vmul.f32 %v1268, -0.5477226
    %v1277 = vmul.f32 %v1269, -0.5477226
    %v1278 = vmul.f32 %v1270, -0.5477226
    %v1279 = vmul.f32 %v1271, -0.5477226
    %v1280 = vmul.f32 %v1272, -0.5477226
    %v1281 = vmul.f32 %v1273, -0.5477226
    %v1282 = vmul.f32 %v1274, -0.5477226
    %v1283 = vmul.f32 %v1275, -0.5477226
    %v1284 = vadd.f32 %v1260, %v1276
    %v1285 = vadd.f32 %v1261, %v1277
    %v1286 = vadd.f32 %v1262, %v1278
    %v1287 = vadd.f32 %v1263, %v1279
    %v1288 = vadd.f32 %v1264, %v1280
    %v1289 = vadd.f32 %v1265, %v1281
    %v1290 = vadd.f32 %v1266, %v1282
    %v1291 = vadd.f32 %v1267, %v1283
    %v1292 = vmul.f32 %v347, %v211
    %v1293 = vmul.f32 %v347, %v212
    %v1294 = vmul.f32 %v347, %v213
    %v1295 = vmul.f32 %v347, %v214
    %v1296 = vmul.f32 %v348, %v211
    %v1297 = vmul.f32 %v348, %v212
    %v1298 = vmul.f32 %v348, %v213
    %v1299 = vmul.f32 %v348, %v214
    %v1300 = vmul.f32 %v1292, -0.5477226
    %v1301 = vmul.f32 %v1293, -0.5477226
    %v1302 = vmul.f32 %v1294, -0.5477226
    %v1303 = vmul.f32 %v1295, -0.5477226
    %v1304 = vmul.f32 %v1296, -0.5477226
    %v1305 = vmul.f32 %v1297, -0.5477226
    %v1306 = vmul.f32 %v1298, -0.5477226
    %v1307 = vmul.f32 %v1299, -0.5477226
    %v1308 = vadd.f32 %v1284, %v1300
    %v1309 = vadd.f32 %v1285, %v1301
    %v1310 = vadd.f32 %v1286, %v1302
    %v1311 = vadd.f32 %v1287, %v1303
    %v1312 = vadd.f32 %v1288, %v1304
    %v1313 = vadd.f32 %v1289, %v1305
    %v1314 = vadd.f32 %v1290, %v1306
    %v1315 = vadd.f32 %v1291, %v1307
    %s1316 = scalar_lea.vmem [#allocation11], 48
    %1317 = vst [vmem:[%s1316] sm:$0x1] %v1156
    %1318 = vst [vmem:[%s1316 + $0x1] sm:$0x1] %v1157
    %1319 = vst [vmem:[%s1316 + $0x2] sm:$0x1] %v1158
    %1320 = vst [vmem:[%s1316 + $0x3] sm:$0x1] %v1159
    %1321 = vst [vmem:[%s1316 + $0x4] sm:$0x1] %v1160
    %1322 = vst [vmem:[%s1316 + $0x5] sm:$0x1] %v1161
    %1323 = vst [vmem:[%s1316 + $0x6] sm:$0x1] %v1162
    %1324 = vst [vmem:[%s1316 + $0x7] sm:$0x1] %v1163
    %s1325 = scalar_lea.vmem [#allocation11], 108
    %1326 = vst [vmem:[%s1325] sm:$0x1] %v1220
    %1327 = vst [vmem:[%s1325 + $0x1] sm:$0x1] %v1221
    %1328 = vst [vmem:[%s1325 + $0x2] sm:$0x1] %v1222
    %1329 = vst [vmem:[%s1325 + $0x3] sm:$0x1] %v1223
    %1330 = vst [vmem:[%s1325 + $0x4] sm:$0x1] %v1224
    %1331 = vst [vmem:[%s1325 + $0x5] sm:$0x1] %v1225
    %1332 = vst [vmem:[%s1325 + $0x6] sm:$0x1] %v1226
    %1333 = vst [vmem:[%s1325 + $0x7] sm:$0x1] %v1227
    %s1334 = scalar_lea.vmem [#allocation11], 168
    %1335 = vst [vmem:[%s1334] sm:$0x1] %v1308
    %1336 = vst [vmem:[%s1334 + $0x1] sm:$0x1] %v1309
    %1337 = vst [vmem:[%s1334 + $0x2] sm:$0x1] %v1310
    %1338 = vst [vmem:[%s1334 + $0x3] sm:$0x1] %v1311
    %1339 = vst [vmem:[%s1334 + $0x4] sm:$0x1] %v1312
    %1340 = vst [vmem:[%s1334 + $0x5] sm:$0x1] %v1313
    %1341 = vst [vmem:[%s1334 + $0x6] sm:$0x1] %v1314
    %1342 = vst [vmem:[%s1334 + $0x7] sm:$0x1] %v1315
    %v1343 = vmul.f32 %v280, %v296
    %v1344 = vmul.f32 %v280, %v297
    %v1345 = vmul.f32 %v281, %v296
    %v1346 = vmul.f32 %v281, %v297
    %v1347 = vmul.f32 %v1343, -0.31622776
    %v1348 = vmul.f32 %v1344, -0.31622776
    %v1349 = vmul.f32 %v1345, -0.31622776
    %v1350 = vmul.f32 %v1346, -0.31622776
    %v1351 = vmul.f32 %v293, %v282
    %v1352 = vmul.f32 %v293, %v283
    %v1353 = vmul.f32 %v294, %v282
    %v1354 = vmul.f32 %v294, %v283
    %v1355 = vmul.f32 %v1351, 0.31622776
    %v1356 = vmul.f32 %v1352, 0.31622776
    %v1357 = vmul.f32 %v1353, 0.31622776
    %v1358 = vmul.f32 %v1354, 0.31622776
    %v1359 = vadd.f32 %v1347, %v1355
    %v1360 = vadd.f32 %v1348, %v1356
    %v1361 = vadd.f32 %v1349, %v1357
    %v1362 = vadd.f32 %v1350, %v1358
    %v1363 = vmul.f32 %v311, %v332
    %v1364 = vmul.f32 %v311, %v333
    %v1365 = vmul.f32 %v312, %v332
    %v1366 = vmul.f32 %v312, %v333
    %v1367 = vmul.f32 %v1363, 0.5477226
    %v1368 = vmul.f32 %v1364, 0.5477226
    %v1369 = vmul.f32 %v1365, 0.5477226
    %v1370 = vmul.f32 %v1366, 0.5477226
    %v1371 = vadd.f32 %v1359, %v1367
    %v1372 = vadd.f32 %v1360, %v1368
    %v1373 = vadd.f32 %v1361, %v1369
    %v1374 = vadd.f32 %v1362, %v1370
    %v1375 = vmul.f32 %v329, %v314
    %v1376 = vmul.f32 %v329, %v315
    %v1377 = vmul.f32 %v330, %v314
    %v1378 = vmul.f32 %v330, %v315
    %v1379 = vmul.f32 %v1375, -0.5477226
    %v1380 = vmul.f32 %v1376, -0.5477226
    %v1381 = vmul.f32 %v1377, -0.5477226
    %v1382 = vmul.f32 %v1378, -0.5477226
    %v1383 = vadd.f32 %v1371, %v1379
    %v1384 = vadd.f32 %v1372, %v1380
    %v1385 = vadd.f32 %v1373, %v1381
    %v1386 = vadd.f32 %v1374, %v1382
    %v1387 = vmul.f32 %v329, %v350
    %v1388 = vmul.f32 %v329, %v351
    %v1389 = vmul.f32 %v330, %v350
    %v1390 = vmul.f32 %v330, %v351
    %v1391 = vmul.f32 %v1387, 0.31622776
    %v1392 = vmul.f32 %v1388, 0.31622776
    %v1393 = vmul.f32 %v1389, 0.31622776
    %v1394 = vmul.f32 %v1390, 0.31622776
    %v1395 = vadd.f32 %v1383, %v1391
    %v1396 = vadd.f32 %v1384, %v1392
    %v1397 = vadd.f32 %v1385, %v1393
    %v1398 = vadd.f32 %v1386, %v1394
    %v1399 = vmul.f32 %v347, %v332
    %v1400 = vmul.f32 %v347, %v333
    %v1401 = vmul.f32 %v348, %v332
    %v1402 = vmul.f32 %v348, %v333
    %v1403 = vmul.f32 %v1399, -0.31622776
    %v1404 = vmul.f32 %v1400, -0.31622776
    %v1405 = vmul.f32 %v1401, -0.31622776
    %v1406 = vmul.f32 %v1402, -0.31622776
    %v1407 = vadd.f32 %v1395, %v1403
    %v1408 = vadd.f32 %v1396, %v1404
    %v1409 = vadd.f32 %v1397, %v1405
    %v1410 = vadd.f32 %v1398, %v1406
    %v1411 = vmul.f32 %v280, %v350
    %v1412 = vmul.f32 %v280, %v351
    %v1413 = vmul.f32 %v281, %v350
    %v1414 = vmul.f32 %v281, %v351
    %v1415 = vmul.f32 %v1411, -0.6324555
    %v1416 = vmul.f32 %v1412, -0.6324555
    %v1417 = vmul.f32 %v1413, -0.6324555
    %v1418 = vmul.f32 %v1414, -0.6324555
    %v1419 = vmul.f32 %v293, %v332
    %v1420 = vmul.f32 %v293, %v333
    %v1421 = vmul.f32 %v294, %v332
    %v1422 = vmul.f32 %v294, %v333
    %v1423 = vmul.f32 %v1419, -0.31622776
    %v1424 = vmul.f32 %v1420, -0.31622776
    %v1425 = vmul.f32 %v1421, -0.31622776
    %v1426 = vmul.f32 %v1422, -0.31622776
    %v1427 = vadd.f32 %v1415, %v1423
    %v1428 = vadd.f32 %v1416, %v1424
    %v1429 = vadd.f32 %v1417, %v1425
    %v1430 = vadd.f32 %v1418, %v1426
    %v1431 = vmul.f32 %v329, %v296
    %v1432 = vmul.f32 %v329, %v297
    %v1433 = vmul.f32 %v330, %v296
    %v1434 = vmul.f32 %v330, %v297
    %v1435 = vmul.f32 %v1431, 0.31622776
    %v1436 = vmul.f32 %v1432, 0.31622776
    %v1437 = vmul.f32 %v1433, 0.31622776
    %v1438 = vmul.f32 %v1434, 0.31622776
    %v1439 = vadd.f32 %v1427, %v1435
    %v1440 = vadd.f32 %v1428, %v1436
    %v1441 = vadd.f32 %v1429, %v1437
    %v1442 = vadd.f32 %v1430, %v1438
    %v1443 = vmul.f32 %v347, %v282
    %v1444 = vmul.f32 %v347, %v283
    %v1445 = vmul.f32 %v348, %v282
    %v1446 = vmul.f32 %v348, %v283
    %v1447 = vmul.f32 %v1443, 0.6324555
    %v1448 = vmul.f32 %v1444, 0.6324555
    %v1449 = vmul.f32 %v1445, 0.6324555
    %v1450 = vmul.f32 %v1446, 0.6324555
    %v1451 = vadd.f32 %v1439, %v1447
    %v1452 = vadd.f32 %v1440, %v1448
    %v1453 = vadd.f32 %v1441, %v1449
    %v1454 = vadd.f32 %v1442, %v1450
    %v1455 = vmul.f32 %v280, %v332
    %v1456 = vmul.f32 %v280, %v333
    %v1457 = vmul.f32 %v281, %v332
    %v1458 = vmul.f32 %v281, %v333
    %v1459 = vmul.f32 %v1455, 0.31622776
    %v1460 = vmul.f32 %v1456, 0.31622776
    %v1461 = vmul.f32 %v1457, 0.31622776
    %v1462 = vmul.f32 %v1458, 0.31622776
    %v1463 = vmul.f32 %v293, %v314
    %v1464 = vmul.f32 %v293, %v315
    %v1465 = vmul.f32 %v294, %v314
    %v1466 = vmul.f32 %v294, %v315
    %v1467 = vmul.f32 %v1463, 0.5477226
    %v1468 = vmul.f32 %v1464, 0.5477226
    %v1469 = vmul.f32 %v1465, 0.5477226
    %v1470 = vmul.f32 %v1466, 0.5477226
    %v1471 = vadd.f32 %v1459, %v1467
    %v1472 = vadd.f32 %v1460, %v1468
    %v1473 = vadd.f32 %v1461, %v1469
    %v1474 = vadd.f32 %v1462, %v1470
    %v1475 = vmul.f32 %v293, %v350
    %v1476 = vmul.f32 %v293, %v351
    %v1477 = vmul.f32 %v294, %v350
    %v1478 = vmul.f32 %v294, %v351
    %v1479 = vmul.f32 %v1475, 0.31622776
    %v1480 = vmul.f32 %v1476, 0.31622776
    %v1481 = vmul.f32 %v1477, 0.31622776
    %v1482 = vmul.f32 %v1478, 0.31622776
    %v1483 = vadd.f32 %v1471, %v1479
    %v1484 = vadd.f32 %v1472, %v1480
    %v1485 = vadd.f32 %v1473, %v1481
    %v1486 = vadd.f32 %v1474, %v1482
    %v1487 = vmul.f32 %v311, %v296
    %v1488 = vmul.f32 %v311, %v297
    %v1489 = vmul.f32 %v312, %v296
    %v1490 = vmul.f32 %v312, %v297
    %v1491 = vmul.f32 %v1487, -0.5477226
    %v1492 = vmul.f32 %v1488, -0.5477226
    %v1493 = vmul.f32 %v1489, -0.5477226
    %v1494 = vmul.f32 %v1490, -0.5477226
    %v1495 = vadd.f32 %v1483, %v1491
    %v1496 = vadd.f32 %v1484, %v1492
    %v1497 = vadd.f32 %v1485, %v1493
    %v1498 = vadd.f32 %v1486, %v1494
    %v1499 = vmul.f32 %v329, %v282
    %v1500 = vmul.f32 %v329, %v283
    %v1501 = vmul.f32 %v330, %v282
    %v1502 = vmul.f32 %v330, %v283
    %v1503 = vmul.f32 %v1499, -0.31622776
    %v1504 = vmul.f32 %v1500, -0.31622776
    %v1505 = vmul.f32 %v1501, -0.31622776
    %v1506 = vmul.f32 %v1502, -0.31622776
    %v1507 = vadd.f32 %v1495, %v1503
    %v1508 = vadd.f32 %v1496, %v1504
    %v1509 = vadd.f32 %v1497, %v1505
    %v1510 = vadd.f32 %v1498, %v1506
    %v1511 = vmul.f32 %v347, %v296
    %v1512 = vmul.f32 %v347, %v297
    %v1513 = vmul.f32 %v348, %v296
    %v1514 = vmul.f32 %v348, %v297
    %v1515 = vmul.f32 %v1511, -0.31622776
    %v1516 = vmul.f32 %v1512, -0.31622776
    %v1517 = vmul.f32 %v1513, -0.31622776
    %v1518 = vmul.f32 %v1514, -0.31622776
    %v1519 = vadd.f32 %v1507, %v1515
    %v1520 = vadd.f32 %v1508, %v1516
    %v1521 = vadd.f32 %v1509, %v1517
    %v1522 = vadd.f32 %v1510, %v1518
    %s1523 = scalar_lea.vmem [#allocation11], 56
    %1524 = vst [vmem:[%s1523] sm:$0x1] %v1407
    %1525 = vst [vmem:[%s1523 + $0x1] sm:$0x1] %v1408
    %1526 = vst [vmem:[%s1523 + $0x2] sm:$0x1] %v1409
    %1527 = vst [vmem:[%s1523 + $0x3] sm:$0x1] %v1410
    %s1528 = scalar_lea.vmem [#allocation11], 116
    %1529 = vst [vmem:[%s1528] sm:$0x1] %v1451
    %1530 = vst [vmem:[%s1528 + $0x1] sm:$0x1] %v1452
    %1531 = vst [vmem:[%s1528 + $0x2] sm:$0x1] %v1453
    %1532 = vst [vmem:[%s1528 + $0x3] sm:$0x1] %v1454
    %s1533 = scalar_lea.vmem [#allocation11], 176
    %1534 = vst [vmem:[%s1533] sm:$0x1] %v1519
    %1535 = vst [vmem:[%s1533 + $0x1] sm:$0x1] %v1520
    %1536 = vst [vmem:[%s1533 + $0x2] sm:$0x1] %v1521
    %1537 = vst [vmem:[%s1533 + $0x3] sm:$0x1] %v1522
    %v1538 = vmul.f32 %v83, %v282
    %v1539 = vmul.f32 %v83, %v283
    %v1540 = vmul.f32 %v84, %v282
    %v1541 = vmul.f32 %v84, %v283
    %v1542 = vmul.f32 %v85, %v282
    %v1543 = vmul.f32 %v85, %v283
    %v1544 = vmul.f32 %v83, %v296
    %v1545 = vmul.f32 %v83, %v297
    %v1546 = vmul.f32 %v84, %v296
    %v1547 = vmul.f32 %v84, %v297
    %v1548 = vmul.f32 %v85, %v296
    %v1549 = vmul.f32 %v85, %v297
    %v1550 = vmul.f32 %v83, %v314
    %v1551 = vmul.f32 %v83, %v315
    %v1552 = vmul.f32 %v84, %v314
    %v1553 = vmul.f32 %v84, %v315
    %v1554 = vmul.f32 %v85, %v314
    %v1555 = vmul.f32 %v85, %v315
    %v1556 = vmul.f32 %v83, %v332
    %v1557 = vmul.f32 %v83, %v333
    %v1558 = vmul.f32 %v84, %v332
    %v1559 = vmul.f32 %v84, %v333
    %v1560 = vmul.f32 %v85, %v332
    %v1561 = vmul.f32 %v85, %v333
    %v1562 = vmul.f32 %v83, %v350
    %v1563 = vmul.f32 %v83, %v351
    %v1564 = vmul.f32 %v84, %v350
    %v1565 = vmul.f32 %v84, %v351
    %v1566 = vmul.f32 %v85, %v350
    %v1567 = vmul.f32 %v85, %v351
    %1568 = vst [vmem:[#allocation13] sm:$0x1] %v1538
    %1569 = vst [vmem:[#allocation13 + $0x1] sm:$0x1] %v1539
    %1570 = vst [vmem:[#allocation13 + $0x2] sm:$0x1] %v1540
    %1571 = vst [vmem:[#allocation13 + $0x3] sm:$0x1] %v1541
    %1572 = vst [vmem:[#allocation13 + $0x4] sm:$0x1] %v1542
    %1573 = vst [vmem:[#allocation13 + $0x5] sm:$0x1] %v1543
    %s1574 = scalar_lea.vmem [#allocation13], 48
    %1575 = vst [vmem:[%s1574] sm:$0x1] %v1544
    %1576 = vst [vmem:[%s1574 + $0x1] sm:$0x1] %v1545
    %1577 = vst [vmem:[%s1574 + $0x2] sm:$0x1] %v1546
    %1578 = vst [vmem:[%s1574 + $0x3] sm:$0x1] %v1547
    %1579 = vst [vmem:[%s1574 + $0x4] sm:$0x1] %v1548
    %1580 = vst [vmem:[%s1574 + $0x5] sm:$0x1] %v1549
    %s1581 = scalar_lea.vmem [#allocation13], 96
    %1582 = vst [vmem:[%s1581] sm:$0x1] %v1550
    %1583 = vst [vmem:[%s1581 + $0x1] sm:$0x1] %v1551
    %1584 = vst [vmem:[%s1581 + $0x2] sm:$0x1] %v1552
    %1585 = vst [vmem:[%s1581 + $0x3] sm:$0x1] %v1553
    %1586 = vst [vmem:[%s1581 + $0x4] sm:$0x1] %v1554
    %1587 = vst [vmem:[%s1581 + $0x5] sm:$0x1] %v1555
    %s1588 = scalar_lea.vmem [#allocation13], 144
    %1589 = vst [vmem:[%s1588] sm:$0x1] %v1556
    %1590 = vst [vmem:[%s1588 + $0x1] sm:$0x1] %v1557
    %1591 = vst [vmem:[%s1588 + $0x2] sm:$0x1] %v1558
    %1592 = vst [vmem:[%s1588 + $0x3] sm:$0x1] %v1559
    %1593 = vst [vmem:[%s1588 + $0x4] sm:$0x1] %v1560
    %1594 = vst [vmem:[%s1588 + $0x5] sm:$0x1] %v1561
    %s1595 = scalar_lea.vmem [#allocation13], 192
    %1596 = vst [vmem:[%s1595] sm:$0x1] %v1562
    %1597 = vst [vmem:[%s1595 + $0x1] sm:$0x1] %v1563
    %1598 = vst [vmem:[%s1595 + $0x2] sm:$0x1] %v1564
    %1599 = vst [vmem:[%s1595 + $0x3] sm:$0x1] %v1565
    %1600 = vst [vmem:[%s1595 + $0x4] sm:$0x1] %v1566
    %1601 = vst [vmem:[%s1595 + $0x5] sm:$0x1] %v1567
    %v1602 = vmul.f32 %v630, 0.70710677
    %v1603 = vmul.f32 %v631, 0.70710677
    %v1604 = vmul.f32 %v632, 0.70710677
    %v1605 = vmul.f32 %v633, 0.70710677
    %v1606 = vmul.f32 %v634, 0.70710677
    %v1607 = vmul.f32 %v635, 0.70710677
    %v1608 = vmul.f32 %v636, 0.70710677
    %v1609 = vmul.f32 %v637, 0.70710677
    %v1610 = vmul.f32 %v638, 0.70710677
    %v1611 = vmul.f32 %v639, 0.70710677
    %v1612 = vmul.f32 %v640, 0.70710677
    %v1613 = vmul.f32 %v641, 0.70710677
    %v1614 = vmul.f32 %v642, 0.70710677
    %v1615 = vmul.f32 %v643, 0.70710677
    %v1616 = vmul.f32 %v644, 0.70710677
    %v1617 = vmul.f32 %v645, 0.70710677
    %v1618 = vadd.f32 %v614, %v1602
    %v1619 = vadd.f32 %v615, %v1603
    %v1620 = vadd.f32 %v616, %v1604
    %v1621 = vadd.f32 %v617, %v1605
    %v1622 = vadd.f32 %v618, %v1606
    %v1623 = vadd.f32 %v619, %v1607
    %v1624 = vadd.f32 %v620, %v1608
    %v1625 = vadd.f32 %v621, %v1609
    %v1626 = vadd.f32 %v622, %v1610
    %v1627 = vadd.f32 %v623, %v1611
    %v1628 = vadd.f32 %v624, %v1612
    %v1629 = vadd.f32 %v625, %v1613
    %v1630 = vadd.f32 %v626, %v1614
    %v1631 = vadd.f32 %v627, %v1615
    %v1632 = vadd.f32 %v628, %v1616
    %v1633 = vadd.f32 %v629, %v1617
    %v1634 = vmul.f32 %v678, 0.70710677
    %v1635 = vmul.f32 %v679, 0.70710677
    %v1636 = vmul.f32 %v680, 0.70710677
    %v1637 = vmul.f32 %v681, 0.70710677
    %v1638 = vmul.f32 %v682, 0.70710677
    %v1639 = vmul.f32 %v683, 0.70710677
    %v1640 = vmul.f32 %v684, 0.70710677
    %v1641 = vmul.f32 %v685, 0.70710677
    %v1642 = vmul.f32 %v686, 0.70710677
    %v1643 = vmul.f32 %v687, 0.70710677
    %v1644 = vmul.f32 %v688, 0.70710677
    %v1645 = vmul.f32 %v689, 0.70710677
    %v1646 = vmul.f32 %v690, 0.70710677
    %v1647 = vmul.f32 %v691, 0.70710677
    %v1648 = vmul.f32 %v692, 0.70710677
    %v1649 = vmul.f32 %v693, 0.70710677
    %v1650 = vadd.f32 %v1634, %v726
    %v1651 = vadd.f32 %v1635, %v727
    %v1652 = vadd.f32 %v1636, %v728
    %v1653 = vadd.f32 %v1637, %v729
    %v1654 = vadd.f32 %v1638, %v730
    %v1655 = vadd.f32 %v1639, %v731
    %v1656 = vadd.f32 %v1640, %v732
    %v1657 = vadd.f32 %v1641, %v733
    %v1658 = vadd.f32 %v1642, %v734
    %v1659 = vadd.f32 %v1643, %v735
    %v1660 = vadd.f32 %v1644, %v736
    %v1661 = vadd.f32 %v1645, %v737
    %v1662 = vadd.f32 %v1646, %v738
    %v1663 = vadd.f32 %v1647, %v739
    %v1664 = vadd.f32 %v1648, %v740
    %v1665 = vadd.f32 %v1649, %v741
    %v1666 = vmul.f32 %v115, -0.4082483
    %v1667 = vmul.f32 %v116, -0.4082483
    %v1668 = vmul.f32 %v117, -0.4082483
    %v1669 = vmul.f32 %v118, -0.4082483
    %v1670 = vmul.f32 %v119, -0.4082483
    %v1671 = vmul.f32 %v120, -0.4082483
    %v1672 = vmul.f32 %v121, -0.4082483
    %v1673 = vmul.f32 %v122, -0.4082483
    %v1674 = vmul.f32 %v123, -0.4082483
    %v1675 = vmul.f32 %v124, -0.4082483
    %v1676 = vmul.f32 %v125, -0.4082483
    %v1677 = vmul.f32 %v126, -0.4082483
    %v1678 = vmul.f32 %v127, -0.4082483
    %v1679 = vmul.f32 %v128, -0.4082483
    %v1680 = vmul.f32 %v129, -0.4082483
    %v1681 = vmul.f32 %v130, -0.4082483
    %v1682 = vmul.f32 %v115, -0.70710677
    %v1683 = vmul.f32 %v116, -0.70710677
    %v1684 = vmul.f32 %v117, -0.70710677
    %v1685 = vmul.f32 %v118, -0.70710677
    %v1686 = vmul.f32 %v119, -0.70710677
    %v1687 = vmul.f32 %v120, -0.70710677
    %v1688 = vmul.f32 %v121, -0.70710677
    %v1689 = vmul.f32 %v122, -0.70710677
    %v1690 = vmul.f32 %v123, -0.70710677
    %v1691 = vmul.f32 %v124, -0.70710677
    %v1692 = vmul.f32 %v125, -0.70710677
    %v1693 = vmul.f32 %v126, -0.70710677
    %v1694 = vmul.f32 %v127, -0.70710677
    %v1695 = vmul.f32 %v128, -0.70710677
    %v1696 = vmul.f32 %v129, -0.70710677
    %v1697 = vmul.f32 %v130, -0.70710677
    %v1698 = vmul.f32 %v157, 0.8164966
    %v1699 = vmul.f32 %v158, 0.8164966
    %v1700 = vmul.f32 %v159, 0.8164966
    %v1701 = vmul.f32 %v160, 0.8164966
    %v1702 = vmul.f32 %v161, 0.8164966
    %v1703 = vmul.f32 %v162, 0.8164966
    %v1704 = vmul.f32 %v163, 0.8164966
    %v1705 = vmul.f32 %v164, 0.8164966
    %v1706 = vmul.f32 %v165, 0.8164966
    %v1707 = vmul.f32 %v166, 0.8164966
    %v1708 = vmul.f32 %v167, 0.8164966
    %v1709 = vmul.f32 %v168, 0.8164966
    %v1710 = vmul.f32 %v169, 0.8164966
    %v1711 = vmul.f32 %v170, 0.8164966
    %v1712 = vmul.f32 %v171, 0.8164966
    %v1713 = vmul.f32 %v172, 0.8164966
    %v1714 = vadd.f32 %v1666, %v1698
    %v1715 = vadd.f32 %v1667, %v1699
    %v1716 = vadd.f32 %v1668, %v1700
    %v1717 = vadd.f32 %v1669, %v1701
    %v1718 = vadd.f32 %v1670, %v1702
    %v1719 = vadd.f32 %v1671, %v1703
    %v1720 = vadd.f32 %v1672, %v1704
    %v1721 = vadd.f32 %v1673, %v1705
    %v1722 = vadd.f32 %v1674, %v1706
    %v1723 = vadd.f32 %v1675, %v1707
    %v1724 = vadd.f32 %v1676, %v1708
    %v1725 = vadd.f32 %v1677, %v1709
    %v1726 = vadd.f32 %v1678, %v1710
    %v1727 = vadd.f32 %v1679, %v1711
    %v1728 = vadd.f32 %v1680, %v1712
    %v1729 = vadd.f32 %v1681, %v1713
    %v1730 = vmul.f32 %v215, -0.4082483
    %v1731 = vmul.f32 %v216, -0.4082483
    %v1732 = vmul.f32 %v217, -0.4082483
    %v1733 = vmul.f32 %v218, -0.4082483
    %v1734 = vmul.f32 %v219, -0.4082483
    %v1735 = vmul.f32 %v220, -0.4082483
    %v1736 = vmul.f32 %v221, -0.4082483
    %v1737 = vmul.f32 %v222, -0.4082483
    %v1738 = vmul.f32 %v223, -0.4082483
    %v1739 = vmul.f32 %v224, -0.4082483
    %v1740 = vmul.f32 %v225, -0.4082483
    %v1741 = vmul.f32 %v226, -0.4082483
    %v1742 = vmul.f32 %v227, -0.4082483
    %v1743 = vmul.f32 %v228, -0.4082483
    %v1744 = vmul.f32 %v229, -0.4082483
    %v1745 = vmul.f32 %v230, -0.4082483
    %v1746 = vadd.f32 %v1714, %v1730
    %v1747 = vadd.f32 %v1715, %v1731
    %v1748 = vadd.f32 %v1716, %v1732
    %v1749 = vadd.f32 %v1717, %v1733
    %v1750 = vadd.f32 %v1718, %v1734
    %v1751 = vadd.f32 %v1719, %v1735
    %v1752 = vadd.f32 %v1720, %v1736
    %v1753 = vadd.f32 %v1721, %v1737
    %v1754 = vadd.f32 %v1722, %v1738
    %v1755 = vadd.f32 %v1723, %v1739
    %v1756 = vadd.f32 %v1724, %v1740
    %v1757 = vadd.f32 %v1725, %v1741
    %v1758 = vadd.f32 %v1726, %v1742
    %v1759 = vadd.f32 %v1727, %v1743
    %v1760 = vadd.f32 %v1728, %v1744
    %v1761 = vadd.f32 %v1729, %v1745
    %v1762 = vmul.f32 %v215, 0.70710677
    %v1763 = vmul.f32 %v216, 0.70710677
    %v1764 = vmul.f32 %v217, 0.70710677
    %v1765 = vmul.f32 %v218, 0.70710677
    %v1766 = vmul.f32 %v219, 0.70710677
    %v1767 = vmul.f32 %v220, 0.70710677
    %v1768 = vmul.f32 %v221, 0.70710677
    %v1769 = vmul.f32 %v222, 0.70710677
    %v1770 = vmul.f32 %v223, 0.70710677
    %v1771 = vmul.f32 %v224, 0.70710677
    %v1772 = vmul.f32 %v225, 0.70710677
    %v1773 = vmul.f32 %v226, 0.70710677
    %v1774 = vmul.f32 %v227, 0.70710677
    %v1775 = vmul.f32 %v228, 0.70710677
    %v1776 = vmul.f32 %v229, 0.70710677
    %v1777 = vmul.f32 %v230, 0.70710677
    %v1778 = vadd.f32 %v1682, %v1762
    %v1779 = vadd.f32 %v1683, %v1763
    %v1780 = vadd.f32 %v1684, %v1764
    %v1781 = vadd.f32 %v1685, %v1765
    %v1782 = vadd.f32 %v1686, %v1766
    %v1783 = vadd.f32 %v1687, %v1767
    %v1784 = vadd.f32 %v1688, %v1768
    %v1785 = vadd.f32 %v1689, %v1769
    %v1786 = vadd.f32 %v1690, %v1770
    %v1787 = vadd.f32 %v1691, %v1771
    %v1788 = vadd.f32 %v1692, %v1772
    %v1789 = vadd.f32 %v1693, %v1773
    %v1790 = vadd.f32 %v1694, %v1774
    %v1791 = vadd.f32 %v1695, %v1775
    %v1792 = vadd.f32 %v1696, %v1776
    %v1793 = vadd.f32 %v1697, %v1777
    %v1794 = vmul.f32 %v518, 0.70710677
    %v1795 = vmul.f32 %v519, 0.70710677
    %v1796 = vmul.f32 %v520, 0.70710677
    %v1797 = vmul.f32 %v521, 0.70710677
    %v1798 = vmul.f32 %v522, 0.70710677
    %v1799 = vmul.f32 %v523, 0.70710677
    %v1800 = vmul.f32 %v524, 0.70710677
    %v1801 = vmul.f32 %v525, 0.70710677
    %v1802 = vmul.f32 %v526, 0.70710677
    %v1803 = vmul.f32 %v527, 0.70710677
    %v1804 = vmul.f32 %v528, 0.70710677
    %v1805 = vmul.f32 %v529, 0.70710677
    %v1806 = vmul.f32 %v530, 0.70710677
    %v1807 = vmul.f32 %v531, 0.70710677
    %v1808 = vmul.f32 %v532, 0.70710677
    %v1809 = vmul.f32 %v533, 0.70710677
    %v1810 = vadd.f32 %v1794, %v566
    %v1811 = vadd.f32 %v1795, %v567
    %v1812 = vadd.f32 %v1796, %v568
    %v1813 = vadd.f32 %v1797, %v569
    %v1814 = vadd.f32 %v1798, %v570
    %v1815 = vadd.f32 %v1799, %v571
    %v1816 = vadd.f32 %v1800, %v572
    %v1817 = vadd.f32 %v1801, %v573
    %v1818 = vadd.f32 %v1802, %v574
    %v1819 = vadd.f32 %v1803, %v575
    %v1820 = vadd.f32 %v1804, %v576
    %v1821 = vadd.f32 %v1805, %v577
    %v1822 = vadd.f32 %v1806, %v578
    %v1823 = vadd.f32 %v1807, %v579
    %v1824 = vadd.f32 %v1808, %v580
    %v1825 = vadd.f32 %v1809, %v581
    %s1826 = scalar_lea.vmem [#allocation13], 6
    %1827 = vst [vmem:[%s1826] sm:$0x1] %v1618
    %1828 = vst [vmem:[%s1826 + $0x1] sm:$0x1] %v1619
    %1829 = vst [vmem:[%s1826 + $0x2] sm:$0x1] %v1620
    %1830 = vst [vmem:[%s1826 + $0x3] sm:$0x1] %v1621
    %1831 = vst [vmem:[%s1826 + $0x4] sm:$0x1] %v1622
    %1832 = vst [vmem:[%s1826 + $0x5] sm:$0x1] %v1623
    %1833 = vst [vmem:[%s1826 + $0x6] sm:$0x1] %v1624
    %1834 = vst [vmem:[%s1826 + $0x7] sm:$0x1] %v1625
    %1835 = vst [vmem:[%s1826 + $0x8] sm:$0x1] %v1626
    %1836 = vst [vmem:[%s1826 + $0x9] sm:$0x1] %v1627
    %1837 = vst [vmem:[%s1826 + $0xa] sm:$0x1] %v1628
    %1838 = vst [vmem:[%s1826 + $0xb] sm:$0x1] %v1629
    %1839 = vst [vmem:[%s1826 + $0xc] sm:$0x1] %v1630
    %1840 = vst [vmem:[%s1826 + $0xd] sm:$0x1] %v1631
    %1841 = vst [vmem:[%s1826 + $0xe] sm:$0x1] %v1632
    %1842 = vst [vmem:[%s1826 + $0xf] sm:$0x1] %v1633
    %s1843 = scalar_lea.vmem [#allocation13], 54
    %1844 = vst [vmem:[%s1843] sm:$0x1] %v1650
    %1845 = vst [vmem:[%s1843 + $0x1] sm:$0x1] %v1651
    %1846 = vst [vmem:[%s1843 + $0x2] sm:$0x1] %v1652
    %1847 = vst [vmem:[%s1843 + $0x3] sm:$0x1] %v1653
    %1848 = vst [vmem:[%s1843 + $0x4] sm:$0x1] %v1654
    %1849 = vst [vmem:[%s1843 + $0x5] sm:$0x1] %v1655
    %1850 = vst [vmem:[%s1843 + $0x6] sm:$0x1] %v1656
    %1851 = vst [vmem:[%s1843 + $0x7] sm:$0x1] %v1657
    %1852 = vst [vmem:[%s1843 + $0x8] sm:$0x1] %v1658
    %1853 = vst [vmem:[%s1843 + $0x9] sm:$0x1] %v1659
    %1854 = vst [vmem:[%s1843 + $0xa] sm:$0x1] %v1660
    %1855 = vst [vmem:[%s1843 + $0xb] sm:$0x1] %v1661
    %1856 = vst [vmem:[%s1843 + $0xc] sm:$0x1] %v1662
    %1857 = vst [vmem:[%s1843 + $0xd] sm:$0x1] %v1663
    %1858 = vst [vmem:[%s1843 + $0xe] sm:$0x1] %v1664
    %1859 = vst [vmem:[%s1843 + $0xf] sm:$0x1] %v1665
    %s1860 = scalar_lea.vmem [#allocation13], 102
    %1861 = vst [vmem:[%s1860] sm:$0x1] %v1746
    %1862 = vst [vmem:[%s1860 + $0x1] sm:$0x1] %v1747
    %1863 = vst [vmem:[%s1860 + $0x2] sm:$0x1] %v1748
    %1864 = vst [vmem:[%s1860 + $0x3] sm:$0x1] %v1749
    %1865 = vst [vmem:[%s1860 + $0x4] sm:$0x1] %v1750
    %1866 = vst [vmem:[%s1860 + $0x5] sm:$0x1] %v1751
    %1867 = vst [vmem:[%s1860 + $0x6] sm:$0x1] %v1752
    %1868 = vst [vmem:[%s1860 + $0x7] sm:$0x1] %v1753
    %1869 = vst [vmem:[%s1860 + $0x8] sm:$0x1] %v1754
    %1870 = vst [vmem:[%s1860 + $0x9] sm:$0x1] %v1755
    %1871 = vst [vmem:[%s1860 + $0xa] sm:$0x1] %v1756
    %1872 = vst [vmem:[%s1860 + $0xb] sm:$0x1] %v1757
    %1873 = vst [vmem:[%s1860 + $0xc] sm:$0x1] %v1758
    %1874 = vst [vmem:[%s1860 + $0xd] sm:$0x1] %v1759
    %1875 = vst [vmem:[%s1860 + $0xe] sm:$0x1] %v1760
    %1876 = vst [vmem:[%s1860 + $0xf] sm:$0x1] %v1761
    %s1877 = scalar_lea.vmem [#allocation13], 150
    %1878 = vst [vmem:[%s1877] sm:$0x1] %v1810
    %1879 = vst [vmem:[%s1877 + $0x1] sm:$0x1] %v1811
    %1880 = vst [vmem:[%s1877 + $0x2] sm:$0x1] %v1812
    %1881 = vst [vmem:[%s1877 + $0x3] sm:$0x1] %v1813
    %1882 = vst [vmem:[%s1877 + $0x4] sm:$0x1] %v1814
    %1883 = vst [vmem:[%s1877 + $0x5] sm:$0x1] %v1815
    %1884 = vst [vmem:[%s1877 + $0x6] sm:$0x1] %v1816
    %1885 = vst [vmem:[%s1877 + $0x7] sm:$0x1] %v1817
    %1886 = vst [vmem:[%s1877 + $0x8] sm:$0x1] %v1818
    %1887 = vst [vmem:[%s1877 + $0x9] sm:$0x1] %v1819
    %1888 = vst [vmem:[%s1877 + $0xa] sm:$0x1] %v1820
    %1889 = vst [vmem:[%s1877 + $0xb] sm:$0x1] %v1821
    %1890 = vst [vmem:[%s1877 + $0xc] sm:$0x1] %v1822
    %1891 = vst [vmem:[%s1877 + $0xd] sm:$0x1] %v1823
    %1892 = vst [vmem:[%s1877 + $0xe] sm:$0x1] %v1824
    %1893 = vst [vmem:[%s1877 + $0xf] sm:$0x1] %v1825
    %s1894 = scalar_lea.vmem [#allocation13], 198
    %1895 = vst [vmem:[%s1894] sm:$0x1] %v1778
    %1896 = vst [vmem:[%s1894 + $0x1] sm:$0x1] %v1779
    %1897 = vst [vmem:[%s1894 + $0x2] sm:$0x1] %v1780
    %1898 = vst [vmem:[%s1894 + $0x3] sm:$0x1] %v1781
    %1899 = vst [vmem:[%s1894 + $0x4] sm:$0x1] %v1782
    %1900 = vst [vmem:[%s1894 + $0x5] sm:$0x1] %v1783
    %1901 = vst [vmem:[%s1894 + $0x6] sm:$0x1] %v1784
    %1902 = vst [vmem:[%s1894 + $0x7] sm:$0x1] %v1785
    %1903 = vst [vmem:[%s1894 + $0x8] sm:$0x1] %v1786
    %1904 = vst [vmem:[%s1894 + $0x9] sm:$0x1] %v1787
    %1905 = vst [vmem:[%s1894 + $0xa] sm:$0x1] %v1788
    %1906 = vst [vmem:[%s1894 + $0xb] sm:$0x1] %v1789
    %1907 = vst [vmem:[%s1894 + $0xc] sm:$0x1] %v1790
    %1908 = vst [vmem:[%s1894 + $0xd] sm:$0x1] %v1791
    %1909 = vst [vmem:[%s1894 + $0xe] sm:$0x1] %v1792
    %1910 = vst [vmem:[%s1894 + $0xf] sm:$0x1] %v1793
    %v1911 = vmul.f32 %v897, -0.4082483
    %v1912 = vmul.f32 %v898, -0.4082483
    %v1913 = vmul.f32 %v899, -0.4082483
    %v1914 = vmul.f32 %v900, -0.4082483
    %v1915 = vmul.f32 %v901, -0.4082483
    %v1916 = vmul.f32 %v902, -0.4082483
    %v1917 = vmul.f32 %v903, -0.4082483
    %v1918 = vmul.f32 %v904, -0.4082483
    %v1919 = vmul.f32 %v148, %v350
    %v1920 = vmul.f32 %v148, %v351
    %v1921 = vmul.f32 %v149, %v350
    %v1922 = vmul.f32 %v149, %v351
    %v1923 = vmul.f32 %v150, %v350
    %v1924 = vmul.f32 %v150, %v351
    %v1925 = vmul.f32 %v151, %v350
    %v1926 = vmul.f32 %v151, %v351
    %v1927 = vmul.f32 %v1919, -0.8164966
    %v1928 = vmul.f32 %v1920, -0.8164966
    %v1929 = vmul.f32 %v1921, -0.8164966
    %v1930 = vmul.f32 %v1922, -0.8164966
    %v1931 = vmul.f32 %v1923, -0.8164966
    %v1932 = vmul.f32 %v1924, -0.8164966
    %v1933 = vmul.f32 %v1925, -0.8164966
    %v1934 = vmul.f32 %v1926, -0.8164966
    %v1935 = vadd.f32 %v1911, %v1927
    %v1936 = vadd.f32 %v1912, %v1928
    %v1937 = vadd.f32 %v1913, %v1929
    %v1938 = vadd.f32 %v1914, %v1930
    %v1939 = vadd.f32 %v1915, %v1931
    %v1940 = vadd.f32 %v1916, %v1932
    %v1941 = vadd.f32 %v1917, %v1933
    %v1942 = vadd.f32 %v1918, %v1934
    %v1943 = vmul.f32 %v937, 0.4082483
    %v1944 = vmul.f32 %v938, 0.4082483
    %v1945 = vmul.f32 %v939, 0.4082483
    %v1946 = vmul.f32 %v940, 0.4082483
    %v1947 = vmul.f32 %v941, 0.4082483
    %v1948 = vmul.f32 %v942, 0.4082483
    %v1949 = vmul.f32 %v943, 0.4082483
    %v1950 = vmul.f32 %v944, 0.4082483
    %v1951 = vadd.f32 %v1935, %v1943
    %v1952 = vadd.f32 %v1936, %v1944
    %v1953 = vadd.f32 %v1937, %v1945
    %v1954 = vadd.f32 %v1938, %v1946
    %v1955 = vadd.f32 %v1939, %v1947
    %v1956 = vadd.f32 %v1940, %v1948
    %v1957 = vadd.f32 %v1941, %v1949
    %v1958 = vadd.f32 %v1942, %v1950
    %v1959 = vmul.f32 %v961, 0.4082483
    %v1960 = vmul.f32 %v962, 0.4082483
    %v1961 = vmul.f32 %v963, 0.4082483
    %v1962 = vmul.f32 %v964, 0.4082483
    %v1963 = vmul.f32 %v965, 0.4082483
    %v1964 = vmul.f32 %v966, 0.4082483
    %v1965 = vmul.f32 %v967, 0.4082483
    %v1966 = vmul.f32 %v968, 0.4082483
    %v1967 = vmul.f32 %v977, -0.4082483
    %v1968 = vmul.f32 %v978, -0.4082483
    %v1969 = vmul.f32 %v979, -0.4082483
    %v1970 = vmul.f32 %v980, -0.4082483
    %v1971 = vmul.f32 %v981, -0.4082483
    %v1972 = vmul.f32 %v982, -0.4082483
    %v1973 = vmul.f32 %v983, -0.4082483
    %v1974 = vmul.f32 %v984, -0.4082483
    %v1975 = vadd.f32 %v1959, %v1967
    %v1976 = vadd.f32 %v1960, %v1968
    %v1977 = vadd.f32 %v1961, %v1969
    %v1978 = vadd.f32 %v1962, %v1970
    %v1979 = vadd.f32 %v1963, %v1971
    %v1980 = vadd.f32 %v1964, %v1972
    %v1981 = vadd.f32 %v1965, %v1973
    %v1982 = vadd.f32 %v1966, %v1974
    %v1983 = vmul.f32 %v1001, 0.70710677
    %v1984 = vmul.f32 %v1002, 0.70710677
    %v1985 = vmul.f32 %v1003, 0.70710677
    %v1986 = vmul.f32 %v1004, 0.70710677
    %v1987 = vmul.f32 %v1005, 0.70710677
    %v1988 = vmul.f32 %v1006, 0.70710677
    %v1989 = vmul.f32 %v1007, 0.70710677
    %v1990 = vmul.f32 %v1008, 0.70710677
    %v1991 = vadd.f32 %v1975, %v1983
    %v1992 = vadd.f32 %v1976, %v1984
    %v1993 = vadd.f32 %v1977, %v1985
    %v1994 = vadd.f32 %v1978, %v1986
    %v1995 = vadd.f32 %v1979, %v1987
    %v1996 = vadd.f32 %v1980, %v1988
    %v1997 = vadd.f32 %v1981, %v1989
    %v1998 = vadd.f32 %v1982, %v1990
    %v1999 = vmul.f32 %v1025, 0.4082483
    %v2000 = vmul.f32 %v1026, 0.4082483
    %v2001 = vmul.f32 %v1027, 0.4082483
    %v2002 = vmul.f32 %v1028, 0.4082483
    %v2003 = vmul.f32 %v1029, 0.4082483
    %v2004 = vmul.f32 %v1030, 0.4082483
    %v2005 = vmul.f32 %v1031, 0.4082483
    %v2006 = vmul.f32 %v1032, 0.4082483
    %v2007 = vadd.f32 %v1991, %v1999
    %v2008 = vadd.f32 %v1992, %v2000
    %v2009 = vadd.f32 %v1993, %v2001
    %v2010 = vadd.f32 %v1994, %v2002
    %v2011 = vadd.f32 %v1995, %v2003
    %v2012 = vadd.f32 %v1996, %v2004
    %v2013 = vadd.f32 %v1997, %v2005
    %v2014 = vadd.f32 %v1998, %v2006
    %v2015 = vmul.f32 %v107, %v332
    %v2016 = vmul.f32 %v107, %v333
    %v2017 = vmul.f32 %v108, %v332
    %v2018 = vmul.f32 %v108, %v333
    %v2019 = vmul.f32 %v109, %v332
    %v2020 = vmul.f32 %v109, %v333
    %v2021 = vmul.f32 %v110, %v332
    %v2022 = vmul.f32 %v110, %v333
    %v2023 = vmul.f32 %v2015, 0.70710677
    %v2024 = vmul.f32 %v2016, 0.70710677
    %v2025 = vmul.f32 %v2017, 0.70710677
    %v2026 = vmul.f32 %v2018, 0.70710677
    %v2027 = vmul.f32 %v2019, 0.70710677
    %v2028 = vmul.f32 %v2020, 0.70710677
    %v2029 = vmul.f32 %v2021, 0.70710677
    %v2030 = vmul.f32 %v2022, 0.70710677
    %v2031 = vmul.f32 %v2015, -0.4082483
    %v2032 = vmul.f32 %v2016, -0.4082483
    %v2033 = vmul.f32 %v2017, -0.4082483
    %v2034 = vmul.f32 %v2018, -0.4082483
    %v2035 = vmul.f32 %v2019, -0.4082483
    %v2036 = vmul.f32 %v2020, -0.4082483
    %v2037 = vmul.f32 %v2021, -0.4082483
    %v2038 = vmul.f32 %v2022, -0.4082483
    %v2039 = vmul.f32 %v206, %v296
    %v2040 = vmul.f32 %v206, %v297
    %v2041 = vmul.f32 %v207, %v296
    %v2042 = vmul.f32 %v207, %v297
    %v2043 = vmul.f32 %v208, %v296
    %v2044 = vmul.f32 %v208, %v297
    %v2045 = vmul.f32 %v209, %v296
    %v2046 = vmul.f32 %v209, %v297
    %v2047 = vmul.f32 %v2039, -0.70710677
    %v2048 = vmul.f32 %v2040, -0.70710677
    %v2049 = vmul.f32 %v2041, -0.70710677
    %v2050 = vmul.f32 %v2042, -0.70710677
    %v2051 = vmul.f32 %v2043, -0.70710677
    %v2052 = vmul.f32 %v2044, -0.70710677
    %v2053 = vmul.f32 %v2045, -0.70710677
    %v2054 = vmul.f32 %v2046, -0.70710677
    %v2055 = vadd.f32 %v2023, %v2047
    %v2056 = vadd.f32 %v2024, %v2048
    %v2057 = vadd.f32 %v2025, %v2049
    %v2058 = vadd.f32 %v2026, %v2050
    %v2059 = vadd.f32 %v2027, %v2051
    %v2060 = vadd.f32 %v2028, %v2052
    %v2061 = vadd.f32 %v2029, %v2053
    %v2062 = vadd.f32 %v2030, %v2054
    %v2063 = vmul.f32 %v2039, -0.4082483
    %v2064 = vmul.f32 %v2040, -0.4082483
    %v2065 = vmul.f32 %v2041, -0.4082483
    %v2066 = vmul.f32 %v2042, -0.4082483
    %v2067 = vmul.f32 %v2043, -0.4082483
    %v2068 = vmul.f32 %v2044, -0.4082483
    %v2069 = vmul.f32 %v2045, -0.4082483
    %v2070 = vmul.f32 %v2046, -0.4082483
    %v2071 = vadd.f32 %v2031, %v2063
    %v2072 = vadd.f32 %v2032, %v2064
    %v2073 = vadd.f32 %v2033, %v2065
    %v2074 = vadd.f32 %v2034, %v2066
    %v2075 = vadd.f32 %v2035, %v2067
    %v2076 = vadd.f32 %v2036, %v2068
    %v2077 = vadd.f32 %v2037, %v2069
    %v2078 = vadd.f32 %v2038, %v2070
    %v2079 = vmul.f32 %v809, -0.70710677
    %v2080 = vmul.f32 %v810, -0.70710677
    %v2081 = vmul.f32 %v811, -0.70710677
    %v2082 = vmul.f32 %v812, -0.70710677
    %v2083 = vmul.f32 %v813, -0.70710677
    %v2084 = vmul.f32 %v814, -0.70710677
    %v2085 = vmul.f32 %v815, -0.70710677
    %v2086 = vmul.f32 %v816, -0.70710677
    %v2087 = vmul.f32 %v825, 0.4082483
    %v2088 = vmul.f32 %v826, 0.4082483
    %v2089 = vmul.f32 %v827, 0.4082483
    %v2090 = vmul.f32 %v828, 0.4082483
    %v2091 = vmul.f32 %v829, 0.4082483
    %v2092 = vmul.f32 %v830, 0.4082483
    %v2093 = vmul.f32 %v831, 0.4082483
    %v2094 = vmul.f32 %v832, 0.4082483
    %v2095 = vadd.f32 %v2079, %v2087
    %v2096 = vadd.f32 %v2080, %v2088
    %v2097 = vadd.f32 %v2081, %v2089
    %v2098 = vadd.f32 %v2082, %v2090
    %v2099 = vadd.f32 %v2083, %v2091
    %v2100 = vadd.f32 %v2084, %v2092
    %v2101 = vadd.f32 %v2085, %v2093
    %v2102 = vadd.f32 %v2086, %v2094
    %v2103 = vmul.f32 %v849, 0.4082483
    %v2104 = vmul.f32 %v850, 0.4082483
    %v2105 = vmul.f32 %v851, 0.4082483
    %v2106 = vmul.f32 %v852, 0.4082483
    %v2107 = vmul.f32 %v853, 0.4082483
    %v2108 = vmul.f32 %v854, 0.4082483
    %v2109 = vmul.f32 %v855, 0.4082483
    %v2110 = vmul.f32 %v856, 0.4082483
    %v2111 = vadd.f32 %v2095, %v2103
    %v2112 = vadd.f32 %v2096, %v2104
    %v2113 = vadd.f32 %v2097, %v2105
    %v2114 = vadd.f32 %v2098, %v2106
    %v2115 = vadd.f32 %v2099, %v2107
    %v2116 = vadd.f32 %v2100, %v2108
    %v2117 = vadd.f32 %v2101, %v2109
    %v2118 = vadd.f32 %v2102, %v2110
    %v2119 = vmul.f32 %v873, -0.4082483
    %v2120 = vmul.f32 %v874, -0.4082483
    %v2121 = vmul.f32 %v875, -0.4082483
    %v2122 = vmul.f32 %v876, -0.4082483
    %v2123 = vmul.f32 %v877, -0.4082483
    %v2124 = vmul.f32 %v878, -0.4082483
    %v2125 = vmul.f32 %v879, -0.4082483
    %v2126 = vmul.f32 %v880, -0.4082483
    %v2127 = vadd.f32 %v2111, %v2119
    %v2128 = vadd.f32 %v2112, %v2120
    %v2129 = vadd.f32 %v2113, %v2121
    %v2130 = vadd.f32 %v2114, %v2122
    %v2131 = vadd.f32 %v2115, %v2123
    %v2132 = vadd.f32 %v2116, %v2124
    %v2133 = vadd.f32 %v2117, %v2125
    %v2134 = vadd.f32 %v2118, %v2126
    %v2135 = vmul.f32 %v148, %v282
    %v2136 = vmul.f32 %v148, %v283
    %v2137 = vmul.f32 %v149, %v282
    %v2138 = vmul.f32 %v149, %v283
    %v2139 = vmul.f32 %v150, %v282
    %v2140 = vmul.f32 %v150, %v283
    %v2141 = vmul.f32 %v151, %v282
    %v2142 = vmul.f32 %v151, %v283
    %v2143 = vmul.f32 %v2135, 0.8164966
    %v2144 = vmul.f32 %v2136, 0.8164966
    %v2145 = vmul.f32 %v2137, 0.8164966
    %v2146 = vmul.f32 %v2138, 0.8164966
    %v2147 = vmul.f32 %v2139, 0.8164966
    %v2148 = vmul.f32 %v2140, 0.8164966
    %v2149 = vmul.f32 %v2141, 0.8164966
    %v2150 = vmul.f32 %v2142, 0.8164966
    %v2151 = vadd.f32 %v2071, %v2143
    %v2152 = vadd.f32 %v2072, %v2144
    %v2153 = vadd.f32 %v2073, %v2145
    %v2154 = vadd.f32 %v2074, %v2146
    %v2155 = vadd.f32 %v2075, %v2147
    %v2156 = vadd.f32 %v2076, %v2148
    %v2157 = vadd.f32 %v2077, %v2149
    %v2158 = vadd.f32 %v2078, %v2150
    %s2159 = scalar_lea.vmem [#allocation13], 22
    %2160 = vst [vmem:[%s2159] sm:$0x1] %v1951
    %2161 = vst [vmem:[%s2159 + $0x1] sm:$0x1] %v1952
    %2162 = vst [vmem:[%s2159 + $0x2] sm:$0x1] %v1953
    %2163 = vst [vmem:[%s2159 + $0x3] sm:$0x1] %v1954
    %2164 = vst [vmem:[%s2159 + $0x4] sm:$0x1] %v1955
    %2165 = vst [vmem:[%s2159 + $0x5] sm:$0x1] %v1956
    %2166 = vst [vmem:[%s2159 + $0x6] sm:$0x1] %v1957
    %2167 = vst [vmem:[%s2159 + $0x7] sm:$0x1] %v1958
    %s2168 = scalar_lea.vmem [#allocation13], 70
    %2169 = vst [vmem:[%s2168] sm:$0x1] %v2007
    %2170 = vst [vmem:[%s2168 + $0x1] sm:$0x1] %v2008
    %2171 = vst [vmem:[%s2168 + $0x2] sm:$0x1] %v2009
    %2172 = vst [vmem:[%s2168 + $0x3] sm:$0x1] %v2010
    %2173 = vst [vmem:[%s2168 + $0x4] sm:$0x1] %v2011
    %2174 = vst [vmem:[%s2168 + $0x5] sm:$0x1] %v2012
    %2175 = vst [vmem:[%s2168 + $0x6] sm:$0x1] %v2013
    %2176 = vst [vmem:[%s2168 + $0x7] sm:$0x1] %v2014
    %s2177 = scalar_lea.vmem [#allocation13], 118
    %2178 = vst [vmem:[%s2177] sm:$0x1] %v2055
    %2179 = vst [vmem:[%s2177 + $0x1] sm:$0x1] %v2056
    %2180 = vst [vmem:[%s2177 + $0x2] sm:$0x1] %v2057
    %2181 = vst [vmem:[%s2177 + $0x3] sm:$0x1] %v2058
    %2182 = vst [vmem:[%s2177 + $0x4] sm:$0x1] %v2059
    %2183 = vst [vmem:[%s2177 + $0x5] sm:$0x1] %v2060
    %2184 = vst [vmem:[%s2177 + $0x6] sm:$0x1] %v2061
    %2185 = vst [vmem:[%s2177 + $0x7] sm:$0x1] %v2062
    %s2186 = scalar_lea.vmem [#allocation13], 166
    %2187 = vst [vmem:[%s2186] sm:$0x1] %v2127
    %2188 = vst [vmem:[%s2186 + $0x1] sm:$0x1] %v2128
    %2189 = vst [vmem:[%s2186 + $0x2] sm:$0x1] %v2129
    %2190 = vst [vmem:[%s2186 + $0x3] sm:$0x1] %v2130
    %2191 = vst [vmem:[%s2186 + $0x4] sm:$0x1] %v2131
    %2192 = vst [vmem:[%s2186 + $0x5] sm:$0x1] %v2132
    %2193 = vst [vmem:[%s2186 + $0x6] sm:$0x1] %v2133
    %2194 = vst [vmem:[%s2186 + $0x7] sm:$0x1] %v2134
    %s2195 = scalar_lea.vmem [#allocation13], 214
    %2196 = vst [vmem:[%s2195] sm:$0x1] %v2151
    %2197 = vst [vmem:[%s2195 + $0x1] sm:$0x1] %v2152
    %2198 = vst [vmem:[%s2195 + $0x2] sm:$0x1] %v2153
    %2199 = vst [vmem:[%s2195 + $0x3] sm:$0x1] %v2154
    %2200 = vst [vmem:[%s2195 + $0x4] sm:$0x1] %v2155
    %2201 = vst [vmem:[%s2195 + $0x5] sm:$0x1] %v2156
    %2202 = vst [vmem:[%s2195 + $0x6] sm:$0x1] %v2157
    %2203 = vst [vmem:[%s2195 + $0x7] sm:$0x1] %v2158
    %v2204 = vmul.f32 %v280, %v86
    %v2205 = vmul.f32 %v280, %v87
    %v2206 = vmul.f32 %v280, %v88
    %v2207 = vmul.f32 %v281, %v86
    %v2208 = vmul.f32 %v281, %v87
    %v2209 = vmul.f32 %v281, %v88
    %v2210 = vmul.f32 %v293, %v86
    %v2211 = vmul.f32 %v293, %v87
    %v2212 = vmul.f32 %v293, %v88
    %v2213 = vmul.f32 %v294, %v86
    %v2214 = vmul.f32 %v294, %v87
    %v2215 = vmul.f32 %v294, %v88
    %v2216 = vmul.f32 %v311, %v86
    %v2217 = vmul.f32 %v311, %v87
    %v2218 = vmul.f32 %v311, %v88
    %v2219 = vmul.f32 %v312, %v86
    %v2220 = vmul.f32 %v312, %v87
    %v2221 = vmul.f32 %v312, %v88
    %v2222 = vmul.f32 %v329, %v86
    %v2223 = vmul.f32 %v329, %v87
    %v2224 = vmul.f32 %v329, %v88
    %v2225 = vmul.f32 %v330, %v86
    %v2226 = vmul.f32 %v330, %v87
    %v2227 = vmul.f32 %v330, %v88
    %v2228 = vmul.f32 %v347, %v86
    %v2229 = vmul.f32 %v347, %v87
    %v2230 = vmul.f32 %v347, %v88
    %v2231 = vmul.f32 %v348, %v86
    %v2232 = vmul.f32 %v348, %v87
    %v2233 = vmul.f32 %v348, %v88
    %s2234 = scalar_lea.vmem [#allocation13], 30
    %2235 = vst [vmem:[%s2234] sm:$0x1] %v2204
    %2236 = vst [vmem:[%s2234 + $0x1] sm:$0x1] %v2205
    %2237 = vst [vmem:[%s2234 + $0x2] sm:$0x1] %v2206
    %2238 = vst [vmem:[%s2234 + $0x3] sm:$0x1] %v2207
    %2239 = vst [vmem:[%s2234 + $0x4] sm:$0x1] %v2208
    %2240 = vst [vmem:[%s2234 + $0x5] sm:$0x1] %v2209
    %s2241 = scalar_lea.vmem [#allocation13], 78
    %2242 = vst [vmem:[%s2241] sm:$0x1] %v2210
    %2243 = vst [vmem:[%s2241 + $0x1] sm:$0x1] %v2211
    %2244 = vst [vmem:[%s2241 + $0x2] sm:$0x1] %v2212
    %2245 = vst [vmem:[%s2241 + $0x3] sm:$0x1] %v2213
    %2246 = vst [vmem:[%s2241 + $0x4] sm:$0x1] %v2214
    %2247 = vst [vmem:[%s2241 + $0x5] sm:$0x1] %v2215
    %s2248 = scalar_lea.vmem [#allocation13], 126
    %2249 = vst [vmem:[%s2248] sm:$0x1] %v2216
    %2250 = vst [vmem:[%s2248 + $0x1] sm:$0x1] %v2217
    %2251 = vst [vmem:[%s2248 + $0x2] sm:$0x1] %v2218
    %2252 = vst [vmem:[%s2248 + $0x3] sm:$0x1] %v2219
    %2253 = vst [vmem:[%s2248 + $0x4] sm:$0x1] %v2220
    %2254 = vst [vmem:[%s2248 + $0x5] sm:$0x1] %v2221
    %s2255 = scalar_lea.vmem [#allocation13], 174
    %2256 = vst [vmem:[%s2255] sm:$0x1] %v2222
    %2257 = vst [vmem:[%s2255 + $0x1] sm:$0x1] %v2223
    %2258 = vst [vmem:[%s2255 + $0x2] sm:$0x1] %v2224
    %2259 = vst [vmem:[%s2255 + $0x3] sm:$0x1] %v2225
    %2260 = vst [vmem:[%s2255 + $0x4] sm:$0x1] %v2226
    %2261 = vst [vmem:[%s2255 + $0x5] sm:$0x1] %v2227
    %s2262 = scalar_lea.vmem [#allocation13], 222
    %2263 = vst [vmem:[%s2262] sm:$0x1] %v2228
    %2264 = vst [vmem:[%s2262 + $0x1] sm:$0x1] %v2229
    %2265 = vst [vmem:[%s2262 + $0x2] sm:$0x1] %v2230
    %2266 = vst [vmem:[%s2262 + $0x3] sm:$0x1] %v2231
    %2267 = vst [vmem:[%s2262 + $0x4] sm:$0x1] %v2232
    %2268 = vst [vmem:[%s2262 + $0x5] sm:$0x1] %v2233
    %v2269 = vmul.f32 %v1164, 0.4082483
    %v2270 = vmul.f32 %v1165, 0.4082483
    %v2271 = vmul.f32 %v1166, 0.4082483
    %v2272 = vmul.f32 %v1167, 0.4082483
    %v2273 = vmul.f32 %v1168, 0.4082483
    %v2274 = vmul.f32 %v1169, 0.4082483
    %v2275 = vmul.f32 %v1170, 0.4082483
    %v2276 = vmul.f32 %v1171, 0.4082483
    %v2277 = vmul.f32 %v1204, -0.4082483
    %v2278 = vmul.f32 %v1205, -0.4082483
    %v2279 = vmul.f32 %v1206, -0.4082483
    %v2280 = vmul.f32 %v1207, -0.4082483
    %v2281 = vmul.f32 %v1208, -0.4082483
    %v2282 = vmul.f32 %v1209, -0.4082483
    %v2283 = vmul.f32 %v1210, -0.4082483
    %v2284 = vmul.f32 %v1211, -0.4082483
    %v2285 = vadd.f32 %v2269, %v2277
    %v2286 = vadd.f32 %v2270, %v2278
    %v2287 = vadd.f32 %v2271, %v2279
    %v2288 = vadd.f32 %v2272, %v2280
    %v2289 = vadd.f32 %v2273, %v2281
    %v2290 = vadd.f32 %v2274, %v2282
    %v2291 = vadd.f32 %v2275, %v2283
    %v2292 = vadd.f32 %v2276, %v2284
    %v2293 = vmul.f32 %v347, %v153
    %v2294 = vmul.f32 %v347, %v154
    %v2295 = vmul.f32 %v347, %v155
    %v2296 = vmul.f32 %v347, %v156
    %v2297 = vmul.f32 %v348, %v153
    %v2298 = vmul.f32 %v348, %v154
    %v2299 = vmul.f32 %v348, %v155
    %v2300 = vmul.f32 %v348, %v156
    %v2301 = vmul.f32 %v2293, 0.8164966
    %v2302 = vmul.f32 %v2294, 0.8164966
    %v2303 = vmul.f32 %v2295, 0.8164966
    %v2304 = vmul.f32 %v2296, 0.8164966
    %v2305 = vmul.f32 %v2297, 0.8164966
    %v2306 = vmul.f32 %v2298, 0.8164966
    %v2307 = vmul.f32 %v2299, 0.8164966
    %v2308 = vmul.f32 %v2300, 0.8164966
    %v2309 = vadd.f32 %v2285, %v2301
    %v2310 = vadd.f32 %v2286, %v2302
    %v2311 = vadd.f32 %v2287, %v2303
    %v2312 = vadd.f32 %v2288, %v2304
    %v2313 = vadd.f32 %v2289, %v2305
    %v2314 = vadd.f32 %v2290, %v2306
    %v2315 = vadd.f32 %v2291, %v2307
    %v2316 = vadd.f32 %v2292, %v2308
    %v2317 = vmul.f32 %v1228, -0.4082483
    %v2318 = vmul.f32 %v1229, -0.4082483
    %v2319 = vmul.f32 %v1230, -0.4082483
    %v2320 = vmul.f32 %v1231, -0.4082483
    %v2321 = vmul.f32 %v1232, -0.4082483
    %v2322 = vmul.f32 %v1233, -0.4082483
    %v2323 = vmul.f32 %v1234, -0.4082483
    %v2324 = vmul.f32 %v1235, -0.4082483
    %v2325 = vmul.f32 %v1244, -0.70710677
    %v2326 = vmul.f32 %v1245, -0.70710677
    %v2327 = vmul.f32 %v1246, -0.70710677
    %v2328 = vmul.f32 %v1247, -0.70710677
    %v2329 = vmul.f32 %v1248, -0.70710677
    %v2330 = vmul.f32 %v1249, -0.70710677
    %v2331 = vmul.f32 %v1250, -0.70710677
    %v2332 = vmul.f32 %v1251, -0.70710677
    %v2333 = vadd.f32 %v2317, %v2325
    %v2334 = vadd.f32 %v2318, %v2326
    %v2335 = vadd.f32 %v2319, %v2327
    %v2336 = vadd.f32 %v2320, %v2328
    %v2337 = vadd.f32 %v2321, %v2329
    %v2338 = vadd.f32 %v2322, %v2330
    %v2339 = vadd.f32 %v2323, %v2331
    %v2340 = vadd.f32 %v2324, %v2332
    %v2341 = vmul.f32 %v1268, 0.4082483
    %v2342 = vmul.f32 %v1269, 0.4082483
    %v2343 = vmul.f32 %v1270, 0.4082483
    %v2344 = vmul.f32 %v1271, 0.4082483
    %v2345 = vmul.f32 %v1272, 0.4082483
    %v2346 = vmul.f32 %v1273, 0.4082483
    %v2347 = vmul.f32 %v1274, 0.4082483
    %v2348 = vmul.f32 %v1275, 0.4082483
    %v2349 = vadd.f32 %v2333, %v2341
    %v2350 = vadd.f32 %v2334, %v2342
    %v2351 = vadd.f32 %v2335, %v2343
    %v2352 = vadd.f32 %v2336, %v2344
    %v2353 = vadd.f32 %v2337, %v2345
    %v2354 = vadd.f32 %v2338, %v2346
    %v2355 = vadd.f32 %v2339, %v2347
    %v2356 = vadd.f32 %v2340, %v2348
    %v2357 = vmul.f32 %v1292, -0.4082483
    %v2358 = vmul.f32 %v1293, -0.4082483
    %v2359 = vmul.f32 %v1294, -0.4082483
    %v2360 = vmul.f32 %v1295, -0.4082483
    %v2361 = vmul.f32 %v1296, -0.4082483
    %v2362 = vmul.f32 %v1297, -0.4082483
    %v2363 = vmul.f32 %v1298, -0.4082483
    %v2364 = vmul.f32 %v1299, -0.4082483
    %v2365 = vadd.f32 %v2349, %v2357
    %v2366 = vadd.f32 %v2350, %v2358
    %v2367 = vadd.f32 %v2351, %v2359
    %v2368 = vadd.f32 %v2352, %v2360
    %v2369 = vadd.f32 %v2353, %v2361
    %v2370 = vadd.f32 %v2354, %v2362
    %v2371 = vadd.f32 %v2355, %v2363
    %v2372 = vadd.f32 %v2356, %v2364
    %v2373 = vmul.f32 %v293, %v211
    %v2374 = vmul.f32 %v293, %v212
    %v2375 = vmul.f32 %v293, %v213
    %v2376 = vmul.f32 %v293, %v214
    %v2377 = vmul.f32 %v294, %v211
    %v2378 = vmul.f32 %v294, %v212
    %v2379 = vmul.f32 %v294, %v213
    %v2380 = vmul.f32 %v294, %v214
    %v2381 = vmul.f32 %v2373, 0.70710677
    %v2382 = vmul.f32 %v2374, 0.70710677
    %v2383 = vmul.f32 %v2375, 0.70710677
    %v2384 = vmul.f32 %v2376, 0.70710677
    %v2385 = vmul.f32 %v2377, 0.70710677
    %v2386 = vmul.f32 %v2378, 0.70710677
    %v2387 = vmul.f32 %v2379, 0.70710677
    %v2388 = vmul.f32 %v2380, 0.70710677
    %v2389 = vmul.f32 %v2373, 0.4082483
    %v2390 = vmul.f32 %v2374, 0.4082483
    %v2391 = vmul.f32 %v2375, 0.4082483
    %v2392 = vmul.f32 %v2376, 0.4082483
    %v2393 = vmul.f32 %v2377, 0.4082483
    %v2394 = vmul.f32 %v2378, 0.4082483
    %v2395 = vmul.f32 %v2379, 0.4082483
    %v2396 = vmul.f32 %v2380, 0.4082483
    %v2397 = vmul.f32 %v329, %v111
    %v2398 = vmul.f32 %v329, %v112
    %v2399 = vmul.f32 %v329, %v113
    %v2400 = vmul.f32 %v329, %v114
    %v2401 = vmul.f32 %v330, %v111
    %v2402 = vmul.f32 %v330, %v112
    %v2403 = vmul.f32 %v330, %v113
    %v2404 = vmul.f32 %v330, %v114
    %v2405 = vmul.f32 %v2397, -0.70710677
    %v2406 = vmul.f32 %v2398, -0.70710677
    %v2407 = vmul.f32 %v2399, -0.70710677
    %v2408 = vmul.f32 %v2400, -0.70710677
    %v2409 = vmul.f32 %v2401, -0.70710677
    %v2410 = vmul.f32 %v2402, -0.70710677
    %v2411 = vmul.f32 %v2403, -0.70710677
    %v2412 = vmul.f32 %v2404, -0.70710677
    %v2413 = vadd.f32 %v2381, %v2405
    %v2414 = vadd.f32 %v2382, %v2406
    %v2415 = vadd.f32 %v2383, %v2407
    %v2416 = vadd.f32 %v2384, %v2408
    %v2417 = vadd.f32 %v2385, %v2409
    %v2418 = vadd.f32 %v2386, %v2410
    %v2419 = vadd.f32 %v2387, %v2411
    %v2420 = vadd.f32 %v2388, %v2412
    %v2421 = vmul.f32 %v2397, 0.4082483
    %v2422 = vmul.f32 %v2398, 0.4082483
    %v2423 = vmul.f32 %v2399, 0.4082483
    %v2424 = vmul.f32 %v2400, 0.4082483
    %v2425 = vmul.f32 %v2401, 0.4082483
    %v2426 = vmul.f32 %v2402, 0.4082483
    %v2427 = vmul.f32 %v2403, 0.4082483
    %v2428 = vmul.f32 %v2404, 0.4082483
    %v2429 = vadd.f32 %v2389, %v2421
    %v2430 = vadd.f32 %v2390, %v2422
    %v2431 = vadd.f32 %v2391, %v2423
    %v2432 = vadd.f32 %v2392, %v2424
    %v2433 = vadd.f32 %v2393, %v2425
    %v2434 = vadd.f32 %v2394, %v2426
    %v2435 = vadd.f32 %v2395, %v2427
    %v2436 = vadd.f32 %v2396, %v2428
    %v2437 = vmul.f32 %v1076, 0.4082483
    %v2438 = vmul.f32 %v1077, 0.4082483
    %v2439 = vmul.f32 %v1078, 0.4082483
    %v2440 = vmul.f32 %v1079, 0.4082483
    %v2441 = vmul.f32 %v1080, 0.4082483
    %v2442 = vmul.f32 %v1081, 0.4082483
    %v2443 = vmul.f32 %v1082, 0.4082483
    %v2444 = vmul.f32 %v1083, 0.4082483
    %v2445 = vmul.f32 %v1092, -0.4082483
    %v2446 = vmul.f32 %v1093, -0.4082483
    %v2447 = vmul.f32 %v1094, -0.4082483
    %v2448 = vmul.f32 %v1095, -0.4082483
    %v2449 = vmul.f32 %v1096, -0.4082483
    %v2450 = vmul.f32 %v1097, -0.4082483
    %v2451 = vmul.f32 %v1098, -0.4082483
    %v2452 = vmul.f32 %v1099, -0.4082483
    %v2453 = vadd.f32 %v2437, %v2445
    %v2454 = vadd.f32 %v2438, %v2446
    %v2455 = vadd.f32 %v2439, %v2447
    %v2456 = vadd.f32 %v2440, %v2448
    %v2457 = vadd.f32 %v2441, %v2449
    %v2458 = vadd.f32 %v2442, %v2450
    %v2459 = vadd.f32 %v2443, %v2451
    %v2460 = vadd.f32 %v2444, %v2452
    %v2461 = vmul.f32 %v1116, 0.70710677
    %v2462 = vmul.f32 %v1117, 0.70710677
    %v2463 = vmul.f32 %v1118, 0.70710677
    %v2464 = vmul.f32 %v1119, 0.70710677
    %v2465 = vmul.f32 %v1120, 0.70710677
    %v2466 = vmul.f32 %v1121, 0.70710677
    %v2467 = vmul.f32 %v1122, 0.70710677
    %v2468 = vmul.f32 %v1123, 0.70710677
    %v2469 = vadd.f32 %v2453, %v2461
    %v2470 = vadd.f32 %v2454, %v2462
    %v2471 = vadd.f32 %v2455, %v2463
    %v2472 = vadd.f32 %v2456, %v2464
    %v2473 = vadd.f32 %v2457, %v2465
    %v2474 = vadd.f32 %v2458, %v2466
    %v2475 = vadd.f32 %v2459, %v2467
    %v2476 = vadd.f32 %v2460, %v2468
    %v2477 = vmul.f32 %v1140, -0.4082483
    %v2478 = vmul.f32 %v1141, -0.4082483
    %v2479 = vmul.f32 %v1142, -0.4082483
    %v2480 = vmul.f32 %v1143, -0.4082483
    %v2481 = vmul.f32 %v1144, -0.4082483
    %v2482 = vmul.f32 %v1145, -0.4082483
    %v2483 = vmul.f32 %v1146, -0.4082483
    %v2484 = vmul.f32 %v1147, -0.4082483
    %v2485 = vadd.f32 %v2469, %v2477
    %v2486 = vadd.f32 %v2470, %v2478
    %v2487 = vadd.f32 %v2471, %v2479
    %v2488 = vadd.f32 %v2472, %v2480
    %v2489 = vadd.f32 %v2473, %v2481
    %v2490 = vadd.f32 %v2474, %v2482
    %v2491 = vadd.f32 %v2475, %v2483
    %v2492 = vadd.f32 %v2476, %v2484
    %v2493 = vmul.f32 %v280, %v153
    %v2494 = vmul.f32 %v280, %v154
    %v2495 = vmul.f32 %v280, %v155
    %v2496 = vmul.f32 %v280, %v156
    %v2497 = vmul.f32 %v281, %v153
    %v2498 = vmul.f32 %v281, %v154
    %v2499 = vmul.f32 %v281, %v155
    %v2500 = vmul.f32 %v281, %v156
    %v2501 = vmul.f32 %v2493, -0.8164966
    %v2502 = vmul.f32 %v2494, -0.8164966
    %v2503 = vmul.f32 %v2495, -0.8164966
    %v2504 = vmul.f32 %v2496, -0.8164966
    %v2505 = vmul.f32 %v2497, -0.8164966
    %v2506 = vmul.f32 %v2498, -0.8164966
    %v2507 = vmul.f32 %v2499, -0.8164966
    %v2508 = vmul.f32 %v2500, -0.8164966
    %v2509 = vadd.f32 %v2429, %v2501
    %v2510 = vadd.f32 %v2430, %v2502
    %v2511 = vadd.f32 %v2431, %v2503
    %v2512 = vadd.f32 %v2432, %v2504
    %v2513 = vadd.f32 %v2433, %v2505
    %v2514 = vadd.f32 %v2434, %v2506
    %v2515 = vadd.f32 %v2435, %v2507
    %v2516 = vadd.f32 %v2436, %v2508
    %s2517 = scalar_lea.vmem [#allocation13], 36
    %2518 = vst [vmem:[%s2517] sm:$0x1] %v2309
    %2519 = vst [vmem:[%s2517 + $0x1] sm:$0x1] %v2310
    %2520 = vst [vmem:[%s2517 + $0x2] sm:$0x1] %v2311
    %2521 = vst [vmem:[%s2517 + $0x3] sm:$0x1] %v2312
    %2522 = vst [vmem:[%s2517 + $0x4] sm:$0x1] %v2313
    %2523 = vst [vmem:[%s2517 + $0x5] sm:$0x1] %v2314
    %2524 = vst [vmem:[%s2517 + $0x6] sm:$0x1] %v2315
    %2525 = vst [vmem:[%s2517 + $0x7] sm:$0x1] %v2316
    %s2526 = scalar_lea.vmem [#allocation13], 84
    %2527 = vst [vmem:[%s2526] sm:$0x1] %v2365
    %2528 = vst [vmem:[%s2526 + $0x1] sm:$0x1] %v2366
    %2529 = vst [vmem:[%s2526 + $0x2] sm:$0x1] %v2367
    %2530 = vst [vmem:[%s2526 + $0x3] sm:$0x1] %v2368
    %2531 = vst [vmem:[%s2526 + $0x4] sm:$0x1] %v2369
    %2532 = vst [vmem:[%s2526 + $0x5] sm:$0x1] %v2370
    %2533 = vst [vmem:[%s2526 + $0x6] sm:$0x1] %v2371
    %2534 = vst [vmem:[%s2526 + $0x7] sm:$0x1] %v2372
    %s2535 = scalar_lea.vmem [#allocation13], 132
    %2536 = vst [vmem:[%s2535] sm:$0x1] %v2413
    %2537 = vst [vmem:[%s2535 + $0x1] sm:$0x1] %v2414
    %2538 = vst [vmem:[%s2535 + $0x2] sm:$0x1] %v2415
    %2539 = vst [vmem:[%s2535 + $0x3] sm:$0x1] %v2416
    %2540 = vst [vmem:[%s2535 + $0x4] sm:$0x1] %v2417
    %2541 = vst [vmem:[%s2535 + $0x5] sm:$0x1] %v2418
    %2542 = vst [vmem:[%s2535 + $0x6] sm:$0x1] %v2419
    %2543 = vst [vmem:[%s2535 + $0x7] sm:$0x1] %v2420
    %s2544 = scalar_lea.vmem [#allocation13], 180
    %2545 = vst [vmem:[%s2544] sm:$0x1] %v2485
    %2546 = vst [vmem:[%s2544 + $0x1] sm:$0x1] %v2486
    %2547 = vst [vmem:[%s2544 + $0x2] sm:$0x1] %v2487
    %2548 = vst [vmem:[%s2544 + $0x3] sm:$0x1] %v2488
    %2549 = vst [vmem:[%s2544 + $0x4] sm:$0x1] %v2489
    %2550 = vst [vmem:[%s2544 + $0x5] sm:$0x1] %v2490
    %2551 = vst [vmem:[%s2544 + $0x6] sm:$0x1] %v2491
    %2552 = vst [vmem:[%s2544 + $0x7] sm:$0x1] %v2492
    %s2553 = scalar_lea.vmem [#allocation13], 228
    %2554 = vst [vmem:[%s2553] sm:$0x1] %v2509
    %2555 = vst [vmem:[%s2553 + $0x1] sm:$0x1] %v2510
    %2556 = vst [vmem:[%s2553 + $0x2] sm:$0x1] %v2511
    %2557 = vst [vmem:[%s2553 + $0x3] sm:$0x1] %v2512
    %2558 = vst [vmem:[%s2553 + $0x4] sm:$0x1] %v2513
    %2559 = vst [vmem:[%s2553 + $0x5] sm:$0x1] %v2514
    %2560 = vst [vmem:[%s2553 + $0x6] sm:$0x1] %v2515
    %2561 = vst [vmem:[%s2553 + $0x7] sm:$0x1] %v2516
    %v2562 = vmul.f32 %v280, %v314
    %v2563 = vmul.f32 %v280, %v315
    %v2564 = vmul.f32 %v281, %v314
    %v2565 = vmul.f32 %v281, %v315
    %v2566 = vmul.f32 %v2562, 0.5345225
    %v2567 = vmul.f32 %v2563, 0.5345225
    %v2568 = vmul.f32 %v2564, 0.5345225
    %v2569 = vmul.f32 %v2565, 0.5345225
    %v2570 = vmul.f32 %v1419, -0.46291006
    %v2571 = vmul.f32 %v1420, -0.46291006
    %v2572 = vmul.f32 %v1421, -0.46291006
    %v2573 = vmul.f32 %v1422, -0.46291006
    %v2574 = vadd.f32 %v2566, %v2570
    %v2575 = vadd.f32 %v2567, %v2571
    %v2576 = vadd.f32 %v2568, %v2572
    %v2577 = vadd.f32 %v2569, %v2573
    %v2578 = vmul.f32 %v311, %v282
    %v2579 = vmul.f32 %v311, %v283
    %v2580 = vmul.f32 %v312, %v282
    %v2581 = vmul.f32 %v312, %v283
    %v2582 = vmul.f32 %v2578, 0.5345225
    %v2583 = vmul.f32 %v2579, 0.5345225
    %v2584 = vmul.f32 %v2580, 0.5345225
    %v2585 = vmul.f32 %v2581, 0.5345225
    %v2586 = vadd.f32 %v2574, %v2582
    %v2587 = vadd.f32 %v2575, %v2583
    %v2588 = vadd.f32 %v2576, %v2584
    %v2589 = vadd.f32 %v2577, %v2585
    %v2590 = vmul.f32 %v1431, -0.46291006
    %v2591 = vmul.f32 %v1432, -0.46291006
    %v2592 = vmul.f32 %v1433, -0.46291006
    %v2593 = vmul.f32 %v1434, -0.46291006
    %v2594 = vadd.f32 %v2586, %v2590
    %v2595 = vadd.f32 %v2587, %v2591
    %v2596 = vadd.f32 %v2588, %v2592
    %v2597 = vadd.f32 %v2589, %v2593
    %v2598 = vmul.f32 %v1455, -0.46291006
    %v2599 = vmul.f32 %v1456, -0.46291006
    %v2600 = vmul.f32 %v1457, -0.46291006
    %v2601 = vmul.f32 %v1458, -0.46291006
    %v2602 = vmul.f32 %v1463, -0.26726124
    %v2603 = vmul.f32 %v1464, -0.26726124
    %v2604 = vmul.f32 %v1465, -0.26726124
    %v2605 = vmul.f32 %v1466, -0.26726124
    %v2606 = vadd.f32 %v2598, %v2602
    %v2607 = vadd.f32 %v2599, %v2603
    %v2608 = vadd.f32 %v2600, %v2604
    %v2609 = vadd.f32 %v2601, %v2605
    %v2610 = vmul.f32 %v1475, 0.46291006
    %v2611 = vmul.f32 %v1476, 0.46291006
    %v2612 = vmul.f32 %v1477, 0.46291006
    %v2613 = vmul.f32 %v1478, 0.46291006
    %v2614 = vadd.f32 %v2606, %v2610
    %v2615 = vadd.f32 %v2607, %v2611
    %v2616 = vadd.f32 %v2608, %v2612
    %v2617 = vadd.f32 %v2609, %v2613
    %v2618 = vmul.f32 %v1487, -0.26726124
    %v2619 = vmul.f32 %v1488, -0.26726124
    %v2620 = vmul.f32 %v1489, -0.26726124
    %v2621 = vmul.f32 %v1490, -0.26726124
    %v2622 = vadd.f32 %v2614, %v2618
    %v2623 = vadd.f32 %v2615, %v2619
    %v2624 = vadd.f32 %v2616, %v2620
    %v2625 = vadd.f32 %v2617, %v2621
    %v2626 = vmul.f32 %v1499, -0.46291006
    %v2627 = vmul.f32 %v1500, -0.46291006
    %v2628 = vmul.f32 %v1501, -0.46291006
    %v2629 = vmul.f32 %v1502, -0.46291006
    %v2630 = vadd.f32 %v2622, %v2626
    %v2631 = vadd.f32 %v2623, %v2627
    %v2632 = vadd.f32 %v2624, %v2628
    %v2633 = vadd.f32 %v2625, %v2629
    %v2634 = vmul.f32 %v1511, 0.46291006
    %v2635 = vmul.f32 %v1512, 0.46291006
    %v2636 = vmul.f32 %v1513, 0.46291006
    %v2637 = vmul.f32 %v1514, 0.46291006
    %v2638 = vadd.f32 %v2630, %v2634
    %v2639 = vadd.f32 %v2631, %v2635
    %v2640 = vadd.f32 %v2632, %v2636
    %v2641 = vadd.f32 %v2633, %v2637
    %v2642 = vmul.f32 %v284, 0.5345225
    %v2643 = vmul.f32 %v285, 0.5345225
    %v2644 = vmul.f32 %v286, 0.5345225
    %v2645 = vmul.f32 %v287, 0.5345225
    %v2646 = vmul.f32 %v298, -0.26726124
    %v2647 = vmul.f32 %v299, -0.26726124
    %v2648 = vmul.f32 %v300, -0.26726124
    %v2649 = vmul.f32 %v301, -0.26726124
    %v2650 = vadd.f32 %v2642, %v2646
    %v2651 = vadd.f32 %v2643, %v2647
    %v2652 = vadd.f32 %v2644, %v2648
    %v2653 = vadd.f32 %v2645, %v2649
    %v2654 = vmul.f32 %v298, 0.46291006
    %v2655 = vmul.f32 %v299, 0.46291006
    %v2656 = vmul.f32 %v300, 0.46291006
    %v2657 = vmul.f32 %v301, 0.46291006
    %v2658 = vmul.f32 %v316, -0.5345225
    %v2659 = vmul.f32 %v317, -0.5345225
    %v2660 = vmul.f32 %v318, -0.5345225
    %v2661 = vmul.f32 %v319, -0.5345225
    %v2662 = vadd.f32 %v2650, %v2658
    %v2663 = vadd.f32 %v2651, %v2659
    %v2664 = vadd.f32 %v2652, %v2660
    %v2665 = vadd.f32 %v2653, %v2661
    %v2666 = vmul.f32 %v334, -0.26726124
    %v2667 = vmul.f32 %v335, -0.26726124
    %v2668 = vmul.f32 %v336, -0.26726124
    %v2669 = vmul.f32 %v337, -0.26726124
    %v2670 = vadd.f32 %v2662, %v2666
    %v2671 = vadd.f32 %v2663, %v2667
    %v2672 = vadd.f32 %v2664, %v2668
    %v2673 = vadd.f32 %v2665, %v2669
    %v2674 = vmul.f32 %v334, -0.46291006
    %v2675 = vmul.f32 %v335, -0.46291006
    %v2676 = vmul.f32 %v336, -0.46291006
    %v2677 = vmul.f32 %v337, -0.46291006
    %v2678 = vadd.f32 %v2654, %v2674
    %v2679 = vadd.f32 %v2655, %v2675
    %v2680 = vadd.f32 %v2656, %v2676
    %v2681 = vadd.f32 %v2657, %v2677
    %v2682 = vmul.f32 %v352, 0.5345225
    %v2683 = vmul.f32 %v353, 0.5345225
    %v2684 = vmul.f32 %v354, 0.5345225
    %v2685 = vmul.f32 %v355, 0.5345225
    %v2686 = vadd.f32 %v2670, %v2682
    %v2687 = vadd.f32 %v2671, %v2683
    %v2688 = vadd.f32 %v2672, %v2684
    %v2689 = vadd.f32 %v2673, %v2685
    %v2690 = vmul.f32 %v1343, -0.46291006
    %v2691 = vmul.f32 %v1344, -0.46291006
    %v2692 = vmul.f32 %v1345, -0.46291006
    %v2693 = vmul.f32 %v1346, -0.46291006
    %v2694 = vmul.f32 %v1351, -0.46291006
    %v2695 = vmul.f32 %v1352, -0.46291006
    %v2696 = vmul.f32 %v1353, -0.46291006
    %v2697 = vmul.f32 %v1354, -0.46291006
    %v2698 = vadd.f32 %v2690, %v2694
    %v2699 = vadd.f32 %v2691, %v2695
    %v2700 = vadd.f32 %v2692, %v2696
    %v2701 = vadd.f32 %v2693, %v2697
    %v2702 = vmul.f32 %v1363, -0.26726124
    %v2703 = vmul.f32 %v1364, -0.26726124
    %v2704 = vmul.f32 %v1365, -0.26726124
    %v2705 = vmul.f32 %v1366, -0.26726124
    %v2706 = vadd.f32 %v2698, %v2702
    %v2707 = vadd.f32 %v2699, %v2703
    %v2708 = vadd.f32 %v2700, %v2704
    %v2709 = vadd.f32 %v2701, %v2705
    %v2710 = vmul.f32 %v1375, -0.26726124
    %v2711 = vmul.f32 %v1376, -0.26726124
    %v2712 = vmul.f32 %v1377, -0.26726124
    %v2713 = vmul.f32 %v1378, -0.26726124
    %v2714 = vadd.f32 %v2706, %v2710
    %v2715 = vadd.f32 %v2707, %v2711
    %v2716 = vadd.f32 %v2708, %v2712
    %v2717 = vadd.f32 %v2709, %v2713
    %v2718 = vmul.f32 %v1387, -0.46291006
    %v2719 = vmul.f32 %v1388, -0.46291006
    %v2720 = vmul.f32 %v1389, -0.46291006
    %v2721 = vmul.f32 %v1390, -0.46291006
    %v2722 = vadd.f32 %v2714, %v2718
    %v2723 = vadd.f32 %v2715, %v2719
    %v2724 = vadd.f32 %v2716, %v2720
    %v2725 = vadd.f32 %v2717, %v2721
    %v2726 = vmul.f32 %v1399, -0.46291006
    %v2727 = vmul.f32 %v1400, -0.46291006
    %v2728 = vmul.f32 %v1401, -0.46291006
    %v2729 = vmul.f32 %v1402, -0.46291006
    %v2730 = vadd.f32 %v2722, %v2726
    %v2731 = vadd.f32 %v2723, %v2727
    %v2732 = vadd.f32 %v2724, %v2728
    %v2733 = vadd.f32 %v2725, %v2729
    %v2734 = vmul.f32 %v311, %v350
    %v2735 = vmul.f32 %v311, %v351
    %v2736 = vmul.f32 %v312, %v350
    %v2737 = vmul.f32 %v312, %v351
    %v2738 = vmul.f32 %v2734, 0.5345225
    %v2739 = vmul.f32 %v2735, 0.5345225
    %v2740 = vmul.f32 %v2736, 0.5345225
    %v2741 = vmul.f32 %v2737, 0.5345225
    %v2742 = vadd.f32 %v2678, %v2738
    %v2743 = vadd.f32 %v2679, %v2739
    %v2744 = vadd.f32 %v2680, %v2740
    %v2745 = vadd.f32 %v2681, %v2741
    %v2746 = vmul.f32 %v347, %v314
    %v2747 = vmul.f32 %v347, %v315
    %v2748 = vmul.f32 %v348, %v314
    %v2749 = vmul.f32 %v348, %v315
    %v2750 = vmul.f32 %v2746, 0.5345225
    %v2751 = vmul.f32 %v2747, 0.5345225
    %v2752 = vmul.f32 %v2748, 0.5345225
    %v2753 = vmul.f32 %v2749, 0.5345225
    %v2754 = vadd.f32 %v2742, %v2750
    %v2755 = vadd.f32 %v2743, %v2751
    %v2756 = vadd.f32 %v2744, %v2752
    %v2757 = vadd.f32 %v2745, %v2753
    %s2758 = scalar_lea.vmem [#allocation13], 44
    %2759 = vst [vmem:[%s2758] sm:$0x1] %v2594
    %2760 = vst [vmem:[%s2758 + $0x1] sm:$0x1] %v2595
    %2761 = vst [vmem:[%s2758 + $0x2] sm:$0x1] %v2596
    %2762 = vst [vmem:[%s2758 + $0x3] sm:$0x1] %v2597
    %s2763 = scalar_lea.vmem [#allocation13], 92
    %2764 = vst [vmem:[%s2763] sm:$0x1] %v2638
    %2765 = vst [vmem:[%s2763 + $0x1] sm:$0x1] %v2639
    %2766 = vst [vmem:[%s2763 + $0x2] sm:$0x1] %v2640
    %2767 = vst [vmem:[%s2763 + $0x3] sm:$0x1] %v2641
    %s2768 = scalar_lea.vmem [#allocation13], 140
    %2769 = vst [vmem:[%s2768] sm:$0x1] %v2686
    %2770 = vst [vmem:[%s2768 + $0x1] sm:$0x1] %v2687
    %2771 = vst [vmem:[%s2768 + $0x2] sm:$0x1] %v2688
    %2772 = vst [vmem:[%s2768 + $0x3] sm:$0x1] %v2689
    %s2773 = scalar_lea.vmem [#allocation13], 188
    %2774 = vst [vmem:[%s2773] sm:$0x1] %v2730
    %2775 = vst [vmem:[%s2773 + $0x1] sm:$0x1] %v2731
    %2776 = vst [vmem:[%s2773 + $0x2] sm:$0x1] %v2732
    %2777 = vst [vmem:[%s2773 + $0x3] sm:$0x1] %v2733
    %s2778 = scalar_lea.vmem [#allocation13], 236
    %2779 = vst [vmem:[%s2778] sm:$0x1] %v2754
    %2780 = vst [vmem:[%s2778 + $0x1] sm:$0x1] %v2755
    %2781 = vst [vmem:[%s2778 + $0x2] sm:$0x1] %v2756
    %2782 = vst [vmem:[%s2778 + $0x3] sm:$0x1] %v2757
    // Predicated region
    $region42: #{tpu_custom_call.1} parent=1 // pred_check
      _
    $region43: #{tpu_custom_call.1} parent=1 // pred_check_branch
      %2784 = sbr.rel (0) target = $region45
    $region44: #{tpu_custom_call.1} parent=1 // pred_region
      %s2786 = ssub.s32 464, 464
      %2787 = vsyncadd [#allocation4], %s2786
      %s2788 = sshll.u32 [#allocation10], 4
      %s2789 = int_to_ptr.vmem [resolvable:$true] %s2788
      %2794 = dma.vmem_to_hbm [thread:$0]  %s2789, 464, %s6, [#allocation4], 16, 16, 1
    $region45: #{tpu_custom_call.1} parent=1 // pred_fallthru
      _
    // Predicated region
    $region46: #{tpu_custom_call.1} parent=1 // pred_check
      _
    $region47: #{tpu_custom_call.1} parent=1 // pred_check_branch
      %2796 = sbr.rel (0) target = $region49
    $region48: #{tpu_custom_call.1} parent=1 // pred_region
      %s2798 = ssub.s32 2880, 2880
      %2799 = vsyncadd [#allocation12], %s2798
      %s2800 = sshll.u32 [#allocation11], 4
      %s2801 = int_to_ptr.vmem [resolvable:$true] %s2800
      %2806 = dma.vmem_to_hbm [thread:$0]  %s2801, 2880, %s7, [#allocation12], 16, 16, 1
    $region49: #{tpu_custom_call.1} parent=1 // pred_fallthru
      _
    // Predicated region
    $region50: #{tpu_custom_call.1} parent=1 // pred_check
      _
    $region51: #{tpu_custom_call.1} parent=1 // pred_check_branch
      %2808 = sbr.rel (0) target = $region53
    $region52: #{tpu_custom_call.1} parent=1 // pred_region
      %s2810 = ssub.s32 3840, 3840
      %2811 = vsyncadd [#allocation12], %s2810
      %s2812 = sshll.u32 [#allocation13], 4
      %s2813 = int_to_ptr.vmem [resolvable:$true] %s2812
      %2818 = dma.vmem_to_hbm [thread:$0]  %s2813, 3840, %s8, [#allocation12], 16, 16, 1
    $region53: #{tpu_custom_call.1} parent=1 // pred_fallthru
      _
    // Predicated region
    $region54: #{tpu_custom_call.1} parent=1 // pred_check
      _
    $region55: #{tpu_custom_call.1} parent=1 // pred_check_branch
      %2820 = sbr.rel (0) target = $region57
    $region56: #{tpu_custom_call.1} parent=1 // pred_region
      %2821 = dma.done [#allocation4], 464
    $region57: #{tpu_custom_call.1} parent=1 // pred_fallthru
      _
    // Predicated region
    $region58: #{tpu_custom_call.1} parent=1 // pred_check
      _
    $region59: #{tpu_custom_call.1} parent=1 // pred_check_branch
      %2823 = sbr.rel (0) target = $region61
    $region60: #{tpu_custom_call.1} parent=1 // pred_region
      %2824 = dma.done [#allocation12], 2880
    $region61: #{tpu_custom_call.1} parent=1 // pred_fallthru
      _
    // Predicated region
    $region62: #{tpu_custom_call.1} parent=1 // pred_check
      _
    $region63: #{tpu_custom_call.1} parent=1 // pred_check_branch
      %2826 = sbr.rel (0) target = $region65
    $region64: #{tpu_custom_call.1} parent=1 // pred_region
      %2827 = dma.done [#allocation12], 3840
    $region65: #{tpu_custom_call.1} parent=1 // pred_fallthru
      _
    %2828 = vsyncpa [#allocation3], 1
    %2829 = vsyncpa [#allocation6], 1
    %2830 = vsyncpa [#allocation9], 1
    %2831 = vsyncpa [#allocation4], 1
    %2832 = vsyncpa [#allocation12], 1

</llo_original>
